<compile_context>
chip_gen: v6e
topology: v6e:2x2x1
jax: 0.10.0
libtpu: 0.0.40
codegen_flags: <defaults>
</compile_context>

<pallas_src>
import functools

import jax
import jax.numpy as jnp
from jax.experimental import pallas as pl
from jax.experimental.pallas import tpu as pltpu

EPS = 1e-5  # nn.LayerNorm default eps


# ----------------------------- shared helpers --------------------------------

def _layernorm(x, gamma, beta):
    """f32 LayerNorm over the last axis (gamma/beta broadcastable)."""
    mean = jnp.mean(x, axis=-1, keepdims=True)
    var = jnp.mean(jnp.square(x - mean), axis=-1, keepdims=True)
    return (x - mean) * jax.lax.rsqrt(var + EPS) * gamma + beta


def _dot_wt(x, w):
    """x @ w.T with f32 accumulation (w in PyTorch [out, in] convention)."""
    return jax.lax.dot_general(x, w, (((1,), (1,)), ((), ())),
                               preferred_element_type=jnp.float32)


# --------------------------------- kernel ------------------------------------

def encoder_kernel(x_ref,                       # (Bb, T, D)  input block
                   lag_ref, lab_ref,            # (1, 1, D)   attn LayerNorm
                   wq_ref, wk_ref, wv_ref,      # (1, D, D)   [out, in]
                   wot_ref,                     # (1, D, D)   Wo^T ([in, out])
                   lfg_ref, lfb_ref,            # (1, 1, D)   ffn LayerNorm
                   w1_ref, b1_ref,              # (1, 4D, D), (1, 1, 4D)
                   w2_ref, b2_ref,              # (1, D, 4D), (1, 1, D)
                   log_ref, lob_ref,            # (1, D)      final LayerNorm
                   out_ref,                     # (Bb, T, D)
                   h_ref,                       # (Bb*T, D) f32 VMEM residual
                   *, num_layers, num_heads, block_b, seq_len):
    l = pl.program_id(1)
    T = seq_len
    M, D = h_ref.shape
    dh = D // num_heads
    md = wq_ref.dtype                       # matmul operand dtype (bf16 reco.)

    # ---- layer 0: load the batch block, apply the is_first LayerNorm --------
    @pl.when(l == 0)
    def _():
        x0 = x_ref[...].reshape(M, D).astype(jnp.float32)
        h_ref[...] = _layernorm(x0, lag_ref[0], lab_ref[0])

    h = h_ref[...]                          # (M, D) residual stream, f32

    # ---------------- self-attention sub-block -------------------------------
    xn = _layernorm(h, lag_ref[0], lab_ref[0])
    # is_first (l==0): attention input is the (already LayerNorm'd) residual.
    xn = jnp.where(l == 0, h, xn)
    xn_m = xn.astype(md)

    attn = jnp.zeros((M, D), jnp.float32)
    for hd in range(num_heads):             # static unroll over heads
        lo = hd * dh
        # Per-head projections via sublane-aligned weight-row slices
        # (attention scale is already folded into wq).
        q_h = _dot_wt(xn_m, wq_ref[0, pl.ds(lo, dh), :])          # (M, dh) f32
        k_h = _dot_wt(xn_m, wk_ref[0, pl.ds(lo, dh), :])
        v_h = _dot_wt(xn_m, wv_ref[0, pl.ds(lo, dh), :])
        q_b = q_h.reshape(block_b, T, dh).astype(md)
        k_b = k_h.reshape(block_b, T, dh).astype(md)
        v_b = v_h.reshape(block_b, T, dh).astype(md)
        logits = jnp.einsum("bqd,bkd->bqk", q_b, k_b,
                            preferred_element_type=jnp.float32)   # (Bb, T, T)
        mx = jnp.max(logits, axis=-1, keepdims=True)
        e = jnp.exp(logits - mx)
        inv = pl.reciprocal(jnp.sum(e, axis=-1, keepdims=True), approx=True)
        p = (e * inv).astype(md)
        o_b = jnp.einsum("bqk,bkd->bqd", p, v_b,
                         preferred_element_type=jnp.float32)      # (Bb, T, dh)
        o_m = o_b.reshape(M, dh).astype(md)
        # Accumulate head output straight into the Wo projection via rows of
        # the pre-transposed Wo (sublane slice, no lane concat).
        attn = attn + jax.lax.dot_general(
            o_m, wot_ref[0, pl.ds(lo, dh), :],
            (((1,), (0,)), ((), ())), preferred_element_type=jnp.float32)
    h = h + attn

    # ---------------- feed-forward sub-block ---------------------------------
    xn2 = _layernorm(h, lfg_ref[0], lfb_ref[0]).astype(md)
    # TODO(synk): at real d_model/T, tile the 4*D hidden dim here to stay inside
    # v7x's smaller scoped VMEM instead of materializing the full (M, 4D) hid.
    hid = _dot_wt(xn2, w1_ref[0]) + b1_ref[0]
    hid = jnp.maximum(hid, 0.0).astype(md)
    h = h + (_dot_wt(hid, w2_ref[0]) + b2_ref[0])

    h_ref[...] = h                          # carry residual to next layer step

    # ---- after the last block: final encoder LayerNorm + writeback ----------
    @pl.when(l == num_layers - 1)
    def _():
        y = _layernorm(h, log_ref[...], lob_ref[...])
        out_ref[...] = y.reshape(block_b, T, D).astype(out_ref.dtype)


# --------------------------------- wrapper ------------------------------------

def transformer_encoder(params, x, *, num_heads, block_b=None,
                        vmem_limit_bytes=None):
    """Pallas implementation of TransformerEncoder.forward (dropout = 0).

    `params` must be the output of `prepare_params` (scale folded into wq,
    wo stored transposed, matmul weights cast to bf16).
    """
    B, T, D = x.shape
    L = params["wq"].shape[0]
    assert L >= 1, "num_blocks == 0 not supported by the fused kernel"
    assert D % num_heads == 0
    Dh = params["w1"].shape[1]              # 4 * d_model

    if block_b is None:
        # Fold batch rows into the matmul M dim (target >=128 rows) while
        # keeping >=2 batch blocks so both v7x TensorCores get work.
        block_b = 1
        while (block_b * T < 128 and B % (2 * block_b) == 0
               and B // (2 * block_b) >= 2):
            block_b *= 2
    assert B % block_b == 0
    nb = B // block_b

    if vmem_limit_bytes is None:
        wd = jnp.dtype(params["wq"].dtype).itemsize
        per_layer_w = (4 * D * D + 2 * Dh * D) * wd     # qkvo + w1 + w2
        act = block_b * T * max(D, Dh) * 4
        vmem_limit_bytes = min(100 * 1024 * 1024,
                               max(32 * 1024 * 1024,
                                   4 * per_layer_w + 24 * act))

    kernel = functools.partial(encoder_kernel, num_layers=L,
                               num_heads=num_heads, block_b=block_b, seq_len=T)

    layer3 = lambda b, l: (l, 0, 0)         # per-layer streamed blocks
    batch3 = lambda b, l: (b, 0, 0)         # per-batch-block, constant over l
    const2 = lambda b, l: (0, 0)            # resident once (final LayerNorm)

    in_specs = [
        pl.BlockSpec((block_b, T, D), batch3),   # x
        pl.BlockSpec((1, 1, D), layer3),         # ln_attn_g
        pl.BlockSpec((1, 1, D), layer3),         # ln_attn_b
        pl.BlockSpec((1, D, D), layer3),         # wq (scale folded in)
        pl.BlockSpec((1, D, D), layer3),         # wk
        pl.BlockSpec((1, D, D), layer3),         # wv
        pl.BlockSpec((1, D, D), layer3),         # wo^T
        pl.BlockSpec((1, 1, D), layer3),         # ln_ffn_g
        pl.BlockSpec((1, 1, D), layer3),         # ln_ffn_b
        pl.BlockSpec((1, Dh, D), layer3),        # w1
        pl.BlockSpec((1, 1, Dh), layer3),        # b1
        pl.BlockSpec((1, D, Dh), layer3),        # w2
        pl.BlockSpec((1, 1, D), layer3),         # b2
        pl.BlockSpec((1, D), const2),            # ln_out_g
        pl.BlockSpec((1, D), const2),            # ln_out_b
    ]

    args = (x,
            params["ln_attn_g"], params["ln_attn_b"],
            params["wq"], params["wk"], params["wv"], params["wo_t"],
            params["ln_ffn_g"], params["ln_ffn_b"],
            params["w1"], params["b1"], params["w2"], params["b2"],
            params["ln_out_g"], params["ln_out_b"])

    return pl.pallas_call(
        kernel,
        out_shape=jax.ShapeDtypeStruct((B, T, D), x.dtype),
        grid_spec=pltpu.PrefetchScalarGridSpec(
            num_scalar_prefetch=0,
            grid=(nb, L),
            in_specs=in_specs,
            out_specs=pl.BlockSpec((block_b, T, D), batch3),
            scratch_shapes=[pltpu.VMEM((block_b * T, D), jnp.float32)]),
        compiler_params=pltpu.CompilerParams(
            dimension_semantics=("parallel", "arbitrary"),
            vmem_limit_bytes=int(vmem_limit_bytes)),
    )(*args)


# ---------------------------------- params ------------------------------------

def init_params(key, num_blocks, d_model):
    """Raw f32 parameters in the PyTorch layout ([out, in] Linear weights)."""
    L, D, Dh = num_blocks, d_model, 4 * d_model
    ks = jax.random.split(key, 8)
    w = lambda k, s: (0.1 * jax.random.normal(k, s)).astype(jnp.float32)
    return {
        "ln_attn_g": jnp.ones((L, 1, D), jnp.float32),
        "ln_attn_b": jnp.zeros((L, 1, D), jnp.float32),
        "ln_ffn_g": jnp.ones((L, 1, D), jnp.float32),
        "ln_ffn_b": jnp.zeros((L, 1, D), jnp.float32),
        "ln_out_g": jnp.ones((1, D), jnp.float32),
        "ln_out_b": jnp.zeros((1, D), jnp.float32),
        "wq": w(ks[0], (L, D, D)), "wk": w(ks[1], (L, D, D)),
        "wv": w(ks[2], (L, D, D)), "wo": w(ks[3], (L, D, D)),
        "w1": w(ks[4], (L, Dh, D)), "b1": w(ks[5], (L, 1, Dh)),
        "w2": w(ks[6], (L, D, Dh)), "b2": w(ks[7], (L, 1, D)),
    }


def prepare_params(params, num_heads, weight_dtype=jnp.bfloat16):
    """Host-side, one-time parameter prep: fold attention scale into Wq,
    transpose Wo (so the kernel only slices weight rows), cast matmul
    weights to `weight_dtype`.  LayerNorm params and biases stay f32."""
    D = params["wq"].shape[-1]
    dh = D // num_heads
    p = dict(params)
    p["wq"] = (params["wq"] * (dh ** -0.5)).astype(weight_dtype)
    p["wk"] = params["wk"].astype(weight_dtype)
    p["wv"] = params["wv"].astype(weight_dtype)
    p["wo_t"] = jnp.transpose(params["wo"], (0, 2, 1)).astype(weight_dtype)
    del p["wo"]
    p["w1"] = params["w1"].astype(weight_dtype)
    p["w2"] = params["w2"].astype(weight_dtype)
    return p


# ----------------------------- pure-JAX reference ----------------------------

def encoder_ref(params, x, *, num_heads):
    """Pure-JAX reference using the SAME prepared params and the same bf16
    matmul quantization points as the kernel (f32 accumulation)."""
    md = params["wq"].dtype
    f32 = jnp.float32
    L = params["wq"].shape[0]
    B, T, D = x.shape
    dh = D // num_heads
    h = x.astype(f32)
    for l in range(L):
        g, b = params["ln_attn_g"][l, 0], params["ln_attn_b"][l, 0]
        if l == 0:                      # is_first block
            h = _layernorm(h, g, b)
            xn = h
        else:
            xn = _layernorm(h, g, b)
        xm = xn.astype(md)
        q = jnp.einsum("btd,ed->bte", xm, params["wq"][l],
                       preferred_element_type=f32)
        k = jnp.einsum("btd,ed->bte", xm, params["wk"][l],
                       preferred_element_type=f32)
        v = jnp.einsum("btd,ed->bte", xm, params["wv"][l],
                       preferred_element_type=f32)
        q = q.reshape(B, T, num_heads, dh).transpose(0, 2, 1, 3).astype(md)
        k = k.reshape(B, T, num_heads, dh).transpose(0, 2, 1, 3).astype(md)
        v = v.reshape(B, T, num_heads, dh).transpose(0, 2, 1, 3).astype(md)
        logits = jnp.einsum("bhtd,bhsd->bhts", q, k, preferred_element_type=f32)
        p = jax.nn.softmax(logits, axis=-1).astype(md)
        o = jnp.einsum("bhts,bhsd->bhtd", p, v, preferred_element_type=f32)
        o = o.transpose(0, 2, 1, 3).reshape(B, T, D).astype(md)
        attn = jnp.einsum("btd,de->bte", o, params["wo_t"][l],
                          preferred_element_type=f32)
        h = h + attn
        xn2 = _layernorm(h, params["ln_ffn_g"][l, 0],
                         params["ln_ffn_b"][l, 0]).astype(md)
        hid = jnp.einsum("btd,ed->bte", xn2, params["w1"][l],
                         preferred_element_type=f32) + params["b1"][l, 0]
        hid = jnp.maximum(hid, 0.0).astype(md)
        y = jnp.einsum("bte,de->btd", hid, params["w2"][l],
                       preferred_element_type=f32) + params["b2"][l, 0]
        h = h + y
    return _layernorm(h, params["ln_out_g"][0], params["ln_out_b"][0])


# ----------------------------------- main --------------------------------------

if __name__ == "__main__":
    B, T, D, H, L = 2, 8, 32, 4, 2   # batch, source_len, d_model, heads, blocks

    key = jax.random.PRNGKey(0)
    k_in, k_par = jax.random.split(key)
    x = jax.random.normal(k_in, (B, T, D), dtype=jnp.float32)

    raw = init_params(k_par, L, D)
    prep = prepare_params(raw, num_heads=H, weight_dtype=jnp.bfloat16)

    out = transformer_encoder(prep, x, num_heads=H)
    out = jax.block_until_ready(out)

    ref = encoder_ref(prep, x, num_heads=H)
    assert out.shape == (B, T, D)
    assert bool(jnp.all(jnp.isfinite(out)))
    err = jnp.max(jnp.abs(out - ref))
    # bf16 matmul quantization is matched in the reference; remaining error is
    # the EUP approximate-reciprocal softmax denominator + accumulation order.
    assert jnp.allclose(out, ref, rtol=2e-2, atol=2e-2), f"max abs err = {err}"

    print("KERNEL_OK")
</pallas_src>

<mosaic_0001>
module attributes {stable_mosaic.version = 11 : i64} {
  func.func @encoder_kernel(%arg0: i32, %arg1: i32, %arg2: memref<1x8x32xf32, #tpu.memory_space<vmem>>, %arg3: memref<1x1x32xf32, #tpu.memory_space<vmem>>, %arg4: memref<1x1x32xf32, #tpu.memory_space<vmem>>, %arg5: memref<1x32x32xbf16, #tpu.memory_space<vmem>>, %arg6: memref<1x32x32xbf16, #tpu.memory_space<vmem>>, %arg7: memref<1x32x32xbf16, #tpu.memory_space<vmem>>, %arg8: memref<1x32x32xbf16, #tpu.memory_space<vmem>>, %arg9: memref<1x1x32xf32, #tpu.memory_space<vmem>>, %arg10: memref<1x1x32xf32, #tpu.memory_space<vmem>>, %arg11: memref<1x128x32xbf16, #tpu.memory_space<vmem>>, %arg12: memref<1x1x128xf32, #tpu.memory_space<vmem>>, %arg13: memref<1x32x128xbf16, #tpu.memory_space<vmem>>, %arg14: memref<1x1x32xf32, #tpu.memory_space<vmem>>, %arg15: memref<1x32xf32, #tpu.memory_space<vmem>>, %arg16: memref<1x32xf32, #tpu.memory_space<vmem>>, %arg17: memref<1x8x32xf32, #tpu.memory_space<vmem>>, %arg18: memref<8x32xf32, #tpu.memory_space<vmem>>) attributes {dimension_semantics = [#tpu.dimension_semantics<parallel>, #tpu.dimension_semantics<arbitrary>], iteration_bounds = array<i64: 2, 2>, scalar_prefetch = 0 : i64, scratch_operands = 1 : i64, tpu.core_type = #tpu.core_type<tc>, window_params = [{transform_indices = @transform_0, window_bounds = array<i64: 1, 8, 32>}, {transform_indices = @transform_1, window_bounds = array<i64: 1, 1, 32>}, {transform_indices = @transform_2, window_bounds = array<i64: 1, 1, 32>}, {transform_indices = @transform_3, window_bounds = array<i64: 1, 32, 32>}, {transform_indices = @transform_4, window_bounds = array<i64: 1, 32, 32>}, {transform_indices = @transform_5, window_bounds = array<i64: 1, 32, 32>}, {transform_indices = @transform_6, window_bounds = array<i64: 1, 32, 32>}, {transform_indices = @transform_7, window_bounds = array<i64: 1, 1, 32>}, {transform_indices = @transform_8, window_bounds = array<i64: 1, 1, 32>}, {transform_indices = @transform_9, window_bounds = array<i64: 1, 128, 32>}, {transform_indices = @transform_10, window_bounds = array<i64: 1, 1, 128>}, {transform_indices = @transform_11, window_bounds = array<i64: 1, 32, 128>}, {transform_indices = @transform_12, window_bounds = array<i64: 1, 1, 32>}, {pipeline_mode = #tpu.pipeline_mode<synchronous>, transform_indices = @transform_13, window_bounds = array<i64: 1, 32>}, {pipeline_mode = #tpu.pipeline_mode<synchronous>, transform_indices = @transform_14, window_bounds = array<i64: 1, 32>}, {transform_indices = @transform_15, window_bounds = array<i64: 1, 8, 32>}]} {
    %c0_i32 = arith.constant 0 : i32
    %0 = arith.cmpi eq, %arg1, %c0_i32 : i32
    %1 = arith.extui %0 : i1 to i32
    %c0_i32_0 = arith.constant 0 : i32
    %2 = arith.cmpi ne, %1, %c0_i32_0 : i32
    scf.if %2 {
      %c0_120 = arith.constant 0 : index
      %c0_121 = arith.constant 0 : index
      %c0_122 = arith.constant 0 : index
      %220 = vector.load %arg2[%c0_120, %c0_121, %c0_122] : memref<1x8x32xf32, #tpu.memory_space<vmem>>, vector<1x8x32xf32>
      %221 = vector.shape_cast %220 : vector<1x8x32xf32> to vector<8x32xf32>
      %c0_123 = arith.constant 0 : index
      %c0_124 = arith.constant 0 : index
      %c0_125 = arith.constant 0 : index
      %222 = vector.load %arg3[%c0_123, %c0_124, %c0_125] : memref<1x1x32xf32, #tpu.memory_space<vmem>>, vector<1x1x32xf32>
      %223 = vector.shape_cast %222 : vector<1x1x32xf32> to vector<1x32xf32>
      %c0_126 = arith.constant 0 : index
      %c0_127 = arith.constant 0 : index
      %c0_128 = arith.constant 0 : index
      %224 = vector.load %arg4[%c0_126, %c0_127, %c0_128] : memref<1x1x32xf32, #tpu.memory_space<vmem>>, vector<1x1x32xf32>
      %225 = vector.shape_cast %224 : vector<1x1x32xf32> to vector<1x32xf32>
      %cst_129 = arith.constant dense<0.000000e+00> : vector<8xf32>
      %226 = vector.multi_reduction <add>, %221, %cst_129 [1] : vector<8x32xf32> to vector<8xf32>
      %227 = vector.shape_cast %226 : vector<8xf32> to vector<8x1xf32>
      %cst_130 = arith.constant 3.200000e+01 : f32
      %228 = vector.broadcast %cst_130 : f32 to vector<8x1xf32>
      %229 = arith.divf %227, %228 : vector<8x1xf32>
      %230 = vector.broadcast %229 : vector<8x1xf32> to vector<8x32xf32>
      %231 = arith.subf %221, %230 : vector<8x32xf32>
      %232 = arith.mulf %231, %231 : vector<8x32xf32>
      %cst_131 = arith.constant dense<0.000000e+00> : vector<8xf32>
      %233 = vector.multi_reduction <add>, %232, %cst_131 [1] : vector<8x32xf32> to vector<8xf32>
      %234 = vector.shape_cast %233 : vector<8xf32> to vector<8x1xf32>
      %cst_132 = arith.constant 3.200000e+01 : f32
      %235 = vector.broadcast %cst_132 : f32 to vector<8x1xf32>
      %236 = arith.divf %234, %235 : vector<8x1xf32>
      %237 = vector.broadcast %229 : vector<8x1xf32> to vector<8x32xf32>
      %238 = arith.subf %221, %237 : vector<8x32xf32>
      %cst_133 = arith.constant 9.99999974E-6 : f32
      %239 = vector.broadcast %cst_133 : f32 to vector<8x1xf32>
      %240 = arith.addf %236, %239 : vector<8x1xf32>
      %241 = math.rsqrt %240 : vector<8x1xf32>
      %242 = vector.broadcast %241 : vector<8x1xf32> to vector<8x32xf32>
      %243 = arith.mulf %238, %242 : vector<8x32xf32>
      %244 = vector.broadcast %223 : vector<1x32xf32> to vector<8x32xf32>
      %245 = arith.mulf %243, %244 : vector<8x32xf32>
      %246 = vector.broadcast %225 : vector<1x32xf32> to vector<8x32xf32>
      %247 = arith.addf %245, %246 : vector<8x32xf32>
      %c0_134 = arith.constant 0 : index
      %c0_135 = arith.constant 0 : index
      %248 = vector.load %arg18[%c0_134, %c0_135] : memref<8x32xf32, #tpu.memory_space<vmem>>, vector<8x32xf32>
      tpu.vector_store %arg18[%c0_134, %c0_135], %247 {strides = array<i32>} : memref<8x32xf32, #tpu.memory_space<vmem>>, vector<8x32xf32>,
    } else {
    }
    %c0 = arith.constant 0 : index
    %c0_1 = arith.constant 0 : index
    %3 = vector.load %arg18[%c0, %c0_1] : memref<8x32xf32, #tpu.memory_space<vmem>>, vector<8x32xf32>
    %c0_2 = arith.constant 0 : index
    %c0_3 = arith.constant 0 : index
    %c0_4 = arith.constant 0 : index
    %4 = vector.load %arg3[%c0_2, %c0_3, %c0_4] : memref<1x1x32xf32, #tpu.memory_space<vmem>>, vector<1x1x32xf32>
    %5 = vector.shape_cast %4 : vector<1x1x32xf32> to vector<1x32xf32>
    %c0_5 = arith.constant 0 : index
    %c0_6 = arith.constant 0 : index
    %c0_7 = arith.constant 0 : index
    %6 = vector.load %arg4[%c0_5, %c0_6, %c0_7] : memref<1x1x32xf32, #tpu.memory_space<vmem>>, vector<1x1x32xf32>
    %7 = vector.shape_cast %6 : vector<1x1x32xf32> to vector<1x32xf32>
    %cst = arith.constant dense<0.000000e+00> : vector<8xf32>
    %8 = vector.multi_reduction <add>, %3, %cst [1] : vector<8x32xf32> to vector<8xf32>
    %9 = vector.shape_cast %8 : vector<8xf32> to vector<8x1xf32>
    %cst_8 = arith.constant 3.200000e+01 : f32
    %10 = vector.broadcast %cst_8 : f32 to vector<8x1xf32>
    %11 = arith.divf %9, %10 : vector<8x1xf32>
    %12 = vector.broadcast %11 : vector<8x1xf32> to vector<8x32xf32>
    %13 = arith.subf %3, %12 : vector<8x32xf32>
    %14 = arith.mulf %13, %13 : vector<8x32xf32>
    %cst_9 = arith.constant dense<0.000000e+00> : vector<8xf32>
    %15 = vector.multi_reduction <add>, %14, %cst_9 [1] : vector<8x32xf32> to vector<8xf32>
    %16 = vector.shape_cast %15 : vector<8xf32> to vector<8x1xf32>
    %cst_10 = arith.constant 3.200000e+01 : f32
    %17 = vector.broadcast %cst_10 : f32 to vector<8x1xf32>
    %18 = arith.divf %16, %17 : vector<8x1xf32>
    %19 = vector.broadcast %11 : vector<8x1xf32> to vector<8x32xf32>
    %20 = arith.subf %3, %19 : vector<8x32xf32>
    %cst_11 = arith.constant 9.99999974E-6 : f32
    %21 = vector.broadcast %cst_11 : f32 to vector<8x1xf32>
    %22 = arith.addf %18, %21 : vector<8x1xf32>
    %23 = math.rsqrt %22 : vector<8x1xf32>
    %24 = vector.broadcast %23 : vector<8x1xf32> to vector<8x32xf32>
    %25 = arith.mulf %20, %24 : vector<8x32xf32>
    %26 = vector.broadcast %5 : vector<1x32xf32> to vector<8x32xf32>
    %27 = arith.mulf %25, %26 : vector<8x32xf32>
    %28 = vector.broadcast %7 : vector<1x32xf32> to vector<8x32xf32>
    %29 = arith.addf %27, %28 : vector<8x32xf32>
    %c0_i32_12 = arith.constant 0 : i32
    %30 = arith.cmpi eq, %arg1, %c0_i32_12 : i32
    %31 = arith.select %30, %3, %29 : vector<8x32xf32>
    %32 = arith.truncf %31 : vector<8x32xf32> to vector<8x32xbf16>
    %cst_13 = arith.constant 0.000000e+00 : f32
    %33 = vector.broadcast %cst_13 : f32 to vector<8x32xf32>
    %c0_14 = arith.constant 0 : index
    %c0_15 = arith.constant 0 : index
    %c0_16 = arith.constant 0 : index
    %34 = vector.load %arg5[%c0_14, %c0_15, %c0_16] : memref<1x32x32xbf16, #tpu.memory_space<vmem>>, vector<1x8x32xbf16>
    %35 = vector.shape_cast %34 : vector<1x8x32xbf16> to vector<8x32xbf16>
    %cst_17 = arith.constant dense<0.000000e+00> : vector<8x8xf32>
    %36 = tpu.matmul %32, %35, %cst_17 {dimension_numbers = #tpu.dot_dimension_numbers<[1], [1], [0], [0], [0, 0, 1, 0], [], []>} : vector<8x32xbf16>, vector<8x32xbf16>, vector<8x8xf32> -> vector<8x8xf32>
    %c0_18 = arith.constant 0 : index
    %c0_19 = arith.constant 0 : index
    %c0_20 = arith.constant 0 : index
    %37 = vector.load %arg6[%c0_18, %c0_19, %c0_20] : memref<1x32x32xbf16, #tpu.memory_space<vmem>>, vector<1x8x32xbf16>
    %38 = vector.shape_cast %37 : vector<1x8x32xbf16> to vector<8x32xbf16>
    %cst_21 = arith.constant dense<0.000000e+00> : vector<8x8xf32>
    %39 = tpu.matmul %32, %38, %cst_21 {dimension_numbers = #tpu.dot_dimension_numbers<[1], [1], [0], [0], [0, 0, 1, 0], [], []>} : vector<8x32xbf16>, vector<8x32xbf16>, vector<8x8xf32> -> vector<8x8xf32>
    %c0_22 = arith.constant 0 : index
    %c0_23 = arith.constant 0 : index
    %c0_24 = arith.constant 0 : index
    %40 = vector.load %arg7[%c0_22, %c0_23, %c0_24] : memref<1x32x32xbf16, #tpu.memory_space<vmem>>, vector<1x8x32xbf16>
    %41 = vector.shape_cast %40 : vector<1x8x32xbf16> to vector<8x32xbf16>
    %cst_25 = arith.constant dense<0.000000e+00> : vector<8x8xf32>
    %42 = tpu.matmul %32, %41, %cst_25 {dimension_numbers = #tpu.dot_dimension_numbers<[1], [1], [0], [0], [0, 0, 1, 0], [], []>} : vector<8x32xbf16>, vector<8x32xbf16>, vector<8x8xf32> -> vector<8x8xf32>
    %43 = vector.shape_cast %36 : vector<8x8xf32> to vector<1x8x8xf32>
    %44 = arith.truncf %43 : vector<1x8x8xf32> to vector<1x8x8xbf16>
    %45 = vector.shape_cast %39 : vector<8x8xf32> to vector<1x8x8xf32>
    %46 = arith.truncf %45 : vector<1x8x8xf32> to vector<1x8x8xbf16>
    %47 = vector.shape_cast %42 : vector<8x8xf32> to vector<1x8x8xf32>
    %48 = arith.truncf %47 : vector<1x8x8xf32> to vector<1x8x8xbf16>
    "tpu.trace_start"() <{level = 10 : i32, message = "bqd,bkd->bqk"}> : () -> ()
    %cst_26 = arith.constant dense<0.000000e+00> : vector<1x8x8xf32>
    %49 = tpu.matmul %44, %46, %cst_26 {dimension_numbers = #tpu.dot_dimension_numbers<[2], [2], [1], [1], [0, 0, 0, 1, 1, 1], [0], [0]>} : vector<1x8x8xbf16>, vector<1x8x8xbf16>, vector<1x8x8xf32> -> vector<1x8x8xf32>
    "tpu.trace_stop"() : () -> ()
    %cst_27 = arith.constant dense<0xFF800000> : vector<1x8xf32>
    %50 = vector.multi_reduction <maximumf>, %49, %cst_27 [2] : vector<1x8x8xf32> to vector<1x8xf32>
    %51 = vector.shape_cast %50 : vector<1x8xf32> to vector<1x8x1xf32>
    %52 = vector.broadcast %51 : vector<1x8x1xf32> to vector<1x8x8xf32>
    %53 = arith.subf %49, %52 : vector<1x8x8xf32>
    %54 = math.exp %53 : vector<1x8x8xf32>
    %cst_28 = arith.constant dense<0.000000e+00> : vector<1x8xf32>
    %55 = vector.multi_reduction <add>, %54, %cst_28 [2] : vector<1x8x8xf32> to vector<1x8xf32>
    %56 = vector.shape_cast %55 : vector<1x8xf32> to vector<1x8x1xf32>
    %57 = tpu.reciprocal %56 {approx = true} : vector<1x8x1xf32> -> vector<1x8x1xf32>
    %58 = vector.broadcast %57 : vector<1x8x1xf32> to vector<1x8x8xf32>
    %59 = arith.mulf %54, %58 : vector<1x8x8xf32>
    %60 = arith.truncf %59 : vector<1x8x8xf32> to vector<1x8x8xbf16>
    "tpu.trace_start"() <{level = 10 : i32, message = "bqk,bkd->bqd"}> : () -> ()
    %cst_29 = arith.constant dense<0.000000e+00> : vector<1x8x8xf32>
    %61 = tpu.matmul %60, %48, %cst_29 {dimension_numbers = #tpu.dot_dimension_numbers<[2], [1], [1], [2], [0, 0, 0, 1, 1, 2], [0], [0]>} : vector<1x8x8xbf16>, vector<1x8x8xbf16>, vector<1x8x8xf32> -> vector<1x8x8xf32>
    "tpu.trace_stop"() : () -> ()
    %62 = vector.shape_cast %61 : vector<1x8x8xf32> to vector<8x8xf32>
    %63 = arith.truncf %62 : vector<8x8xf32> to vector<8x8xbf16>
    %c0_30 = arith.constant 0 : index
    %c0_31 = arith.constant 0 : index
    %c0_32 = arith.constant 0 : index
    %64 = vector.load %arg8[%c0_30, %c0_31, %c0_32] : memref<1x32x32xbf16, #tpu.memory_space<vmem>>, vector<1x8x32xbf16>
    %65 = vector.shape_cast %64 : vector<1x8x32xbf16> to vector<8x32xbf16>
    %cst_33 = arith.constant dense<0.000000e+00> : vector<8x32xf32>
    %66 = tpu.matmul %63, %65, %cst_33 {dimension_numbers = #tpu.dot_dimension_numbers<[1], [0], [0], [1], [0, 0, 1, 1], [], []>} : vector<8x8xbf16>, vector<8x32xbf16>, vector<8x32xf32> -> vector<8x32xf32>
    %67 = arith.addf %33, %66 : vector<8x32xf32>
    %c0_34 = arith.constant 0 : index
    %c8 = arith.constant 8 : index
    %c0_35 = arith.constant 0 : index
    %68 = vector.load %arg5[%c0_34, %c8, %c0_35] : memref<1x32x32xbf16, #tpu.memory_space<vmem>>, vector<1x8x32xbf16>
    %69 = vector.shape_cast %68 : vector<1x8x32xbf16> to vector<8x32xbf16>
    %cst_36 = arith.constant dense<0.000000e+00> : vector<8x8xf32>
    %70 = tpu.matmul %32, %69, %cst_36 {dimension_numbers = #tpu.dot_dimension_numbers<[1], [1], [0], [0], [0, 0, 1, 0], [], []>} : vector<8x32xbf16>, vector<8x32xbf16>, vector<8x8xf32> -> vector<8x8xf32>
    %c0_37 = arith.constant 0 : index
    %c8_38 = arith.constant 8 : index
    %c0_39 = arith.constant 0 : index
    %71 = vector.load %arg6[%c0_37, %c8_38, %c0_39] : memref<1x32x32xbf16, #tpu.memory_space<vmem>>, vector<1x8x32xbf16>
    %72 = vector.shape_cast %71 : vector<1x8x32xbf16> to vector<8x32xbf16>
    %cst_40 = arith.constant dense<0.000000e+00> : vector<8x8xf32>
    %73 = tpu.matmul %32, %72, %cst_40 {dimension_numbers = #tpu.dot_dimension_numbers<[1], [1], [0], [0], [0, 0, 1, 0], [], []>} : vector<8x32xbf16>, vector<8x32xbf16>, vector<8x8xf32> -> vector<8x8xf32>
    %c0_41 = arith.constant 0 : index
    %c8_42 = arith.constant 8 : index
    %c0_43 = arith.constant 0 : index
    %74 = vector.load %arg7[%c0_41, %c8_42, %c0_43] : memref<1x32x32xbf16, #tpu.memory_space<vmem>>, vector<1x8x32xbf16>
    %75 = vector.shape_cast %74 : vector<1x8x32xbf16> to vector<8x32xbf16>
    %cst_44 = arith.constant dense<0.000000e+00> : vector<8x8xf32>
    %76 = tpu.matmul %32, %75, %cst_44 {dimension_numbers = #tpu.dot_dimension_numbers<[1], [1], [0], [0], [0, 0, 1, 0], [], []>} : vector<8x32xbf16>, vector<8x32xbf16>, vector<8x8xf32> -> vector<8x8xf32>
    %77 = vector.shape_cast %70 : vector<8x8xf32> to vector<1x8x8xf32>
    %78 = arith.truncf %77 : vector<1x8x8xf32> to vector<1x8x8xbf16>
    %79 = vector.shape_cast %73 : vector<8x8xf32> to vector<1x8x8xf32>
    %80 = arith.truncf %79 : vector<1x8x8xf32> to vector<1x8x8xbf16>
    %81 = vector.shape_cast %76 : vector<8x8xf32> to vector<1x8x8xf32>
    %82 = arith.truncf %81 : vector<1x8x8xf32> to vector<1x8x8xbf16>
    "tpu.trace_start"() <{level = 10 : i32, message = "bqd,bkd->bqk"}> : () -> ()
    %cst_45 = arith.constant dense<0.000000e+00> : vector<1x8x8xf32>
    %83 = tpu.matmul %78, %80, %cst_45 {dimension_numbers = #tpu.dot_dimension_numbers<[2], [2], [1], [1], [0, 0, 0, 1, 1, 1], [0], [0]>} : vector<1x8x8xbf16>, vector<1x8x8xbf16>, vector<1x8x8xf32> -> vector<1x8x8xf32>
    "tpu.trace_stop"() : () -> ()
    %cst_46 = arith.constant dense<0xFF800000> : vector<1x8xf32>
    %84 = vector.multi_reduction <maximumf>, %83, %cst_46 [2] : vector<1x8x8xf32> to vector<1x8xf32>
    %85 = vector.shape_cast %84 : vector<1x8xf32> to vector<1x8x1xf32>
    %86 = vector.broadcast %85 : vector<1x8x1xf32> to vector<1x8x8xf32>
    %87 = arith.subf %83, %86 : vector<1x8x8xf32>
    %88 = math.exp %87 : vector<1x8x8xf32>
    %cst_47 = arith.constant dense<0.000000e+00> : vector<1x8xf32>
    %89 = vector.multi_reduction <add>, %88, %cst_47 [2] : vector<1x8x8xf32> to vector<1x8xf32>
    %90 = vector.shape_cast %89 : vector<1x8xf32> to vector<1x8x1xf32>
    %91 = tpu.reciprocal %90 {approx = true} : vector<1x8x1xf32> -> vector<1x8x1xf32>
    %92 = vector.broadcast %91 : vector<1x8x1xf32> to vector<1x8x8xf32>
    %93 = arith.mulf %88, %92 : vector<1x8x8xf32>
    %94 = arith.truncf %93 : vector<1x8x8xf32> to vector<1x8x8xbf16>
    "tpu.trace_start"() <{level = 10 : i32, message = "bqk,bkd->bqd"}> : () -> ()
    %cst_48 = arith.constant dense<0.000000e+00> : vector<1x8x8xf32>
    %95 = tpu.matmul %94, %82, %cst_48 {dimension_numbers = #tpu.dot_dimension_numbers<[2], [1], [1], [2], [0, 0, 0, 1, 1, 2], [0], [0]>} : vector<1x8x8xbf16>, vector<1x8x8xbf16>, vector<1x8x8xf32> -> vector<1x8x8xf32>
    "tpu.trace_stop"() : () -> ()
    %96 = vector.shape_cast %95 : vector<1x8x8xf32> to vector<8x8xf32>
    %97 = arith.truncf %96 : vector<8x8xf32> to vector<8x8xbf16>
    %c0_49 = arith.constant 0 : index
    %c8_50 = arith.constant 8 : index
    %c0_51 = arith.constant 0 : index
    %98 = vector.load %arg8[%c0_49, %c8_50, %c0_51] : memref<1x32x32xbf16, #tpu.memory_space<vmem>>, vector<1x8x32xbf16>
    %99 = vector.shape_cast %98 : vector<1x8x32xbf16> to vector<8x32xbf16>
    %cst_52 = arith.constant dense<0.000000e+00> : vector<8x32xf32>
    %100 = tpu.matmul %97, %99, %cst_52 {dimension_numbers = #tpu.dot_dimension_numbers<[1], [0], [0], [1], [0, 0, 1, 1], [], []>} : vector<8x8xbf16>, vector<8x32xbf16>, vector<8x32xf32> -> vector<8x32xf32>
    %101 = arith.addf %67, %100 : vector<8x32xf32>
    %c0_53 = arith.constant 0 : index
    %c16 = arith.constant 16 : index
    %c0_54 = arith.constant 0 : index
    %102 = vector.load %arg5[%c0_53, %c16, %c0_54] : memref<1x32x32xbf16, #tpu.memory_space<vmem>>, vector<1x8x32xbf16>
    %103 = vector.shape_cast %102 : vector<1x8x32xbf16> to vector<8x32xbf16>
    %cst_55 = arith.constant dense<0.000000e+00> : vector<8x8xf32>
    %104 = tpu.matmul %32, %103, %cst_55 {dimension_numbers = #tpu.dot_dimension_numbers<[1], [1], [0], [0], [0, 0, 1, 0], [], []>} : vector<8x32xbf16>, vector<8x32xbf16>, vector<8x8xf32> -> vector<8x8xf32>
    %c0_56 = arith.constant 0 : index
    %c16_57 = arith.constant 16 : index
    %c0_58 = arith.constant 0 : index
    %105 = vector.load %arg6[%c0_56, %c16_57, %c0_58] : memref<1x32x32xbf16, #tpu.memory_space<vmem>>, vector<1x8x32xbf16>
    %106 = vector.shape_cast %105 : vector<1x8x32xbf16> to vector<8x32xbf16>
    %cst_59 = arith.constant dense<0.000000e+00> : vector<8x8xf32>
    %107 = tpu.matmul %32, %106, %cst_59 {dimension_numbers = #tpu.dot_dimension_numbers<[1], [1], [0], [0], [0, 0, 1, 0], [], []>} : vector<8x32xbf16>, vector<8x32xbf16>, vector<8x8xf32> -> vector<8x8xf32>
    %c0_60 = arith.constant 0 : index
    %c16_61 = arith.constant 16 : index
    %c0_62 = arith.constant 0 : index
    %108 = vector.load %arg7[%c0_60, %c16_61, %c0_62] : memref<1x32x32xbf16, #tpu.memory_space<vmem>>, vector<1x8x32xbf16>
    %109 = vector.shape_cast %108 : vector<1x8x32xbf16> to vector<8x32xbf16>
    %cst_63 = arith.constant dense<0.000000e+00> : vector<8x8xf32>
    %110 = tpu.matmul %32, %109, %cst_63 {dimension_numbers = #tpu.dot_dimension_numbers<[1], [1], [0], [0], [0, 0, 1, 0], [], []>} : vector<8x32xbf16>, vector<8x32xbf16>, vector<8x8xf32> -> vector<8x8xf32>
    %111 = vector.shape_cast %104 : vector<8x8xf32> to vector<1x8x8xf32>
    %112 = arith.truncf %111 : vector<1x8x8xf32> to vector<1x8x8xbf16>
    %113 = vector.shape_cast %107 : vector<8x8xf32> to vector<1x8x8xf32>
    %114 = arith.truncf %113 : vector<1x8x8xf32> to vector<1x8x8xbf16>
    %115 = vector.shape_cast %110 : vector<8x8xf32> to vector<1x8x8xf32>
    %116 = arith.truncf %115 : vector<1x8x8xf32> to vector<1x8x8xbf16>
    "tpu.trace_start"() <{level = 10 : i32, message = "bqd,bkd->bqk"}> : () -> ()
    %cst_64 = arith.constant dense<0.000000e+00> : vector<1x8x8xf32>
    %117 = tpu.matmul %112, %114, %cst_64 {dimension_numbers = #tpu.dot_dimension_numbers<[2], [2], [1], [1], [0, 0, 0, 1, 1, 1], [0], [0]>} : vector<1x8x8xbf16>, vector<1x8x8xbf16>, vector<1x8x8xf32> -> vector<1x8x8xf32>
    "tpu.trace_stop"() : () -> ()
    %cst_65 = arith.constant dense<0xFF800000> : vector<1x8xf32>
    %118 = vector.multi_reduction <maximumf>, %117, %cst_65 [2] : vector<1x8x8xf32> to vector<1x8xf32>
    %119 = vector.shape_cast %118 : vector<1x8xf32> to vector<1x8x1xf32>
    %120 = vector.broadcast %119 : vector<1x8x1xf32> to vector<1x8x8xf32>
    %121 = arith.subf %117, %120 : vector<1x8x8xf32>
    %122 = math.exp %121 : vector<1x8x8xf32>
    %cst_66 = arith.constant dense<0.000000e+00> : vector<1x8xf32>
    %123 = vector.multi_reduction <add>, %122, %cst_66 [2] : vector<1x8x8xf32> to vector<1x8xf32>
    %124 = vector.shape_cast %123 : vector<1x8xf32> to vector<1x8x1xf32>
    %125 = tpu.reciprocal %124 {approx = true} : vector<1x8x1xf32> -> vector<1x8x1xf32>
    %126 = vector.broadcast %125 : vector<1x8x1xf32> to vector<1x8x8xf32>
    %127 = arith.mulf %122, %126 : vector<1x8x8xf32>
    %128 = arith.truncf %127 : vector<1x8x8xf32> to vector<1x8x8xbf16>
    "tpu.trace_start"() <{level = 10 : i32, message = "bqk,bkd->bqd"}> : () -> ()
    %cst_67 = arith.constant dense<0.000000e+00> : vector<1x8x8xf32>
    %129 = tpu.matmul %128, %116, %cst_67 {dimension_numbers = #tpu.dot_dimension_numbers<[2], [1], [1], [2], [0, 0, 0, 1, 1, 2], [0], [0]>} : vector<1x8x8xbf16>, vector<1x8x8xbf16>, vector<1x8x8xf32> -> vector<1x8x8xf32>
    "tpu.trace_stop"() : () -> ()
    %130 = vector.shape_cast %129 : vector<1x8x8xf32> to vector<8x8xf32>
    %131 = arith.truncf %130 : vector<8x8xf32> to vector<8x8xbf16>
    %c0_68 = arith.constant 0 : index
    %c16_69 = arith.constant 16 : index
    %c0_70 = arith.constant 0 : index
    %132 = vector.load %arg8[%c0_68, %c16_69, %c0_70] : memref<1x32x32xbf16, #tpu.memory_space<vmem>>, vector<1x8x32xbf16>
    %133 = vector.shape_cast %132 : vector<1x8x32xbf16> to vector<8x32xbf16>
    %cst_71 = arith.constant dense<0.000000e+00> : vector<8x32xf32>
    %134 = tpu.matmul %131, %133, %cst_71 {dimension_numbers = #tpu.dot_dimension_numbers<[1], [0], [0], [1], [0, 0, 1, 1], [], []>} : vector<8x8xbf16>, vector<8x32xbf16>, vector<8x32xf32> -> vector<8x32xf32>
    %135 = arith.addf %101, %134 : vector<8x32xf32>
    %c0_72 = arith.constant 0 : index
    %c24 = arith.constant 24 : index
    %c0_73 = arith.constant 0 : index
    %136 = vector.load %arg5[%c0_72, %c24, %c0_73] : memref<1x32x32xbf16, #tpu.memory_space<vmem>>, vector<1x8x32xbf16>
    %137 = vector.shape_cast %136 : vector<1x8x32xbf16> to vector<8x32xbf16>
    %cst_74 = arith.constant dense<0.000000e+00> : vector<8x8xf32>
    %138 = tpu.matmul %32, %137, %cst_74 {dimension_numbers = #tpu.dot_dimension_numbers<[1], [1], [0], [0], [0, 0, 1, 0], [], []>} : vector<8x32xbf16>, vector<8x32xbf16>, vector<8x8xf32> -> vector<8x8xf32>
    %c0_75 = arith.constant 0 : index
    %c24_76 = arith.constant 24 : index
    %c0_77 = arith.constant 0 : index
    %139 = vector.load %arg6[%c0_75, %c24_76, %c0_77] : memref<1x32x32xbf16, #tpu.memory_space<vmem>>, vector<1x8x32xbf16>
    %140 = vector.shape_cast %139 : vector<1x8x32xbf16> to vector<8x32xbf16>
    %cst_78 = arith.constant dense<0.000000e+00> : vector<8x8xf32>
    %141 = tpu.matmul %32, %140, %cst_78 {dimension_numbers = #tpu.dot_dimension_numbers<[1], [1], [0], [0], [0, 0, 1, 0], [], []>} : vector<8x32xbf16>, vector<8x32xbf16>, vector<8x8xf32> -> vector<8x8xf32>
    %c0_79 = arith.constant 0 : index
    %c24_80 = arith.constant 24 : index
    %c0_81 = arith.constant 0 : index
    %142 = vector.load %arg7[%c0_79, %c24_80, %c0_81] : memref<1x32x32xbf16, #tpu.memory_space<vmem>>, vector<1x8x32xbf16>
    %143 = vector.shape_cast %142 : vector<1x8x32xbf16> to vector<8x32xbf16>
    %cst_82 = arith.constant dense<0.000000e+00> : vector<8x8xf32>
    %144 = tpu.matmul %32, %143, %cst_82 {dimension_numbers = #tpu.dot_dimension_numbers<[1], [1], [0], [0], [0, 0, 1, 0], [], []>} : vector<8x32xbf16>, vector<8x32xbf16>, vector<8x8xf32> -> vector<8x8xf32>
    %145 = vector.shape_cast %138 : vector<8x8xf32> to vector<1x8x8xf32>
    %146 = arith.truncf %145 : vector<1x8x8xf32> to vector<1x8x8xbf16>
    %147 = vector.shape_cast %141 : vector<8x8xf32> to vector<1x8x8xf32>
    %148 = arith.truncf %147 : vector<1x8x8xf32> to vector<1x8x8xbf16>
    %149 = vector.shape_cast %144 : vector<8x8xf32> to vector<1x8x8xf32>
    %150 = arith.truncf %149 : vector<1x8x8xf32> to vector<1x8x8xbf16>
    "tpu.trace_start"() <{level = 10 : i32, message = "bqd,bkd->bqk"}> : () -> ()
    %cst_83 = arith.constant dense<0.000000e+00> : vector<1x8x8xf32>
    %151 = tpu.matmul %146, %148, %cst_83 {dimension_numbers = #tpu.dot_dimension_numbers<[2], [2], [1], [1], [0, 0, 0, 1, 1, 1], [0], [0]>} : vector<1x8x8xbf16>, vector<1x8x8xbf16>, vector<1x8x8xf32> -> vector<1x8x8xf32>
    "tpu.trace_stop"() : () -> ()
    %cst_84 = arith.constant dense<0xFF800000> : vector<1x8xf32>
    %152 = vector.multi_reduction <maximumf>, %151, %cst_84 [2] : vector<1x8x8xf32> to vector<1x8xf32>
    %153 = vector.shape_cast %152 : vector<1x8xf32> to vector<1x8x1xf32>
    %154 = vector.broadcast %153 : vector<1x8x1xf32> to vector<1x8x8xf32>
    %155 = arith.subf %151, %154 : vector<1x8x8xf32>
    %156 = math.exp %155 : vector<1x8x8xf32>
    %cst_85 = arith.constant dense<0.000000e+00> : vector<1x8xf32>
    %157 = vector.multi_reduction <add>, %156, %cst_85 [2] : vector<1x8x8xf32> to vector<1x8xf32>
    %158 = vector.shape_cast %157 : vector<1x8xf32> to vector<1x8x1xf32>
    %159 = tpu.reciprocal %158 {approx = true} : vector<1x8x1xf32> -> vector<1x8x1xf32>
    %160 = vector.broadcast %159 : vector<1x8x1xf32> to vector<1x8x8xf32>
    %161 = arith.mulf %156, %160 : vector<1x8x8xf32>
    %162 = arith.truncf %161 : vector<1x8x8xf32> to vector<1x8x8xbf16>
    "tpu.trace_start"() <{level = 10 : i32, message = "bqk,bkd->bqd"}> : () -> ()
    %cst_86 = arith.constant dense<0.000000e+00> : vector<1x8x8xf32>
    %163 = tpu.matmul %162, %150, %cst_86 {dimension_numbers = #tpu.dot_dimension_numbers<[2], [1], [1], [2], [0, 0, 0, 1, 1, 2], [0], [0]>} : vector<1x8x8xbf16>, vector<1x8x8xbf16>, vector<1x8x8xf32> -> vector<1x8x8xf32>
    "tpu.trace_stop"() : () -> ()
    %164 = vector.shape_cast %163 : vector<1x8x8xf32> to vector<8x8xf32>
    %165 = arith.truncf %164 : vector<8x8xf32> to vector<8x8xbf16>
    %c0_87 = arith.constant 0 : index
    %c24_88 = arith.constant 24 : index
    %c0_89 = arith.constant 0 : index
    %166 = vector.load %arg8[%c0_87, %c24_88, %c0_89] : memref<1x32x32xbf16, #tpu.memory_space<vmem>>, vector<1x8x32xbf16>
    %167 = vector.shape_cast %166 : vector<1x8x32xbf16> to vector<8x32xbf16>
    %cst_90 = arith.constant dense<0.000000e+00> : vector<8x32xf32>
    %168 = tpu.matmul %165, %167, %cst_90 {dimension_numbers = #tpu.dot_dimension_numbers<[1], [0], [0], [1], [0, 0, 1, 1], [], []>} : vector<8x8xbf16>, vector<8x32xbf16>, vector<8x32xf32> -> vector<8x32xf32>
    %169 = arith.addf %135, %168 : vector<8x32xf32>
    %170 = arith.addf %3, %169 : vector<8x32xf32>
    %c0_91 = arith.constant 0 : index
    %c0_92 = arith.constant 0 : index
    %c0_93 = arith.constant 0 : index
    %171 = vector.load %arg9[%c0_91, %c0_92, %c0_93] : memref<1x1x32xf32, #tpu.memory_space<vmem>>, vector<1x1x32xf32>
    %172 = vector.shape_cast %171 : vector<1x1x32xf32> to vector<1x32xf32>
    %c0_94 = arith.constant 0 : index
    %c0_95 = arith.constant 0 : index
    %c0_96 = arith.constant 0 : index
    %173 = vector.load %arg10[%c0_94, %c0_95, %c0_96] : memref<1x1x32xf32, #tpu.memory_space<vmem>>, vector<1x1x32xf32>
    %174 = vector.shape_cast %173 : vector<1x1x32xf32> to vector<1x32xf32>
    %cst_97 = arith.constant dense<0.000000e+00> : vector<8xf32>
    %175 = vector.multi_reduction <add>, %170, %cst_97 [1] : vector<8x32xf32> to vector<8xf32>
    %176 = vector.shape_cast %175 : vector<8xf32> to vector<8x1xf32>
    %cst_98 = arith.constant 3.200000e+01 : f32
    %177 = vector.broadcast %cst_98 : f32 to vector<8x1xf32>
    %178 = arith.divf %176, %177 : vector<8x1xf32>
    %179 = vector.broadcast %178 : vector<8x1xf32> to vector<8x32xf32>
    %180 = arith.subf %170, %179 : vector<8x32xf32>
    %181 = arith.mulf %180, %180 : vector<8x32xf32>
    %cst_99 = arith.constant dense<0.000000e+00> : vector<8xf32>
    %182 = vector.multi_reduction <add>, %181, %cst_99 [1] : vector<8x32xf32> to vector<8xf32>
    %183 = vector.shape_cast %182 : vector<8xf32> to vector<8x1xf32>
    %cst_100 = arith.constant 3.200000e+01 : f32
    %184 = vector.broadcast %cst_100 : f32 to vector<8x1xf32>
    %185 = arith.divf %183, %184 : vector<8x1xf32>
    %186 = vector.broadcast %178 : vector<8x1xf32> to vector<8x32xf32>
    %187 = arith.subf %170, %186 : vector<8x32xf32>
    %cst_101 = arith.constant 9.99999974E-6 : f32
    %188 = vector.broadcast %cst_101 : f32 to vector<8x1xf32>
    %189 = arith.addf %185, %188 : vector<8x1xf32>
    %190 = math.rsqrt %189 : vector<8x1xf32>
    %191 = vector.broadcast %190 : vector<8x1xf32> to vector<8x32xf32>
    %192 = arith.mulf %187, %191 : vector<8x32xf32>
    %193 = vector.broadcast %172 : vector<1x32xf32> to vector<8x32xf32>
    %194 = arith.mulf %192, %193 : vector<8x32xf32>
    %195 = vector.broadcast %174 : vector<1x32xf32> to vector<8x32xf32>
    %196 = arith.addf %194, %195 : vector<8x32xf32>
    %197 = arith.truncf %196 : vector<8x32xf32> to vector<8x32xbf16>
    %c0_102 = arith.constant 0 : index
    %c0_103 = arith.constant 0 : index
    %c0_104 = arith.constant 0 : index
    %198 = vector.load %arg11[%c0_102, %c0_103, %c0_104] : memref<1x128x32xbf16, #tpu.memory_space<vmem>>, vector<1x128x32xbf16>
    %199 = vector.shape_cast %198 : vector<1x128x32xbf16> to vector<128x32xbf16>
    %cst_105 = arith.constant dense<0.000000e+00> : vector<8x128xf32>
    %200 = tpu.matmul %197, %199, %cst_105 {dimension_numbers = #tpu.dot_dimension_numbers<[1], [1], [0], [0], [0, 0, 1, 0], [], []>} : vector<8x32xbf16>, vector<128x32xbf16>, vector<8x128xf32> -> vector<8x128xf32>
    %c0_106 = arith.constant 0 : index
    %c0_107 = arith.constant 0 : index
    %c0_108 = arith.constant 0 : index
    %201 = vector.load %arg12[%c0_106, %c0_107, %c0_108] : memref<1x1x128xf32, #tpu.memory_space<vmem>>, vector<1x1x128xf32>
    %202 = vector.shape_cast %201 : vector<1x1x128xf32> to vector<1x128xf32>
    %203 = vector.broadcast %202 : vector<1x128xf32> to vector<8x128xf32>
    %204 = arith.addf %200, %203 : vector<8x128xf32>
    %cst_109 = arith.constant 0.000000e+00 : f32
    %205 = vector.broadcast %cst_109 : f32 to vector<8x128xf32>
    %206 = arith.maximumf %204, %205 : vector<8x128xf32>
    %207 = arith.truncf %206 : vector<8x128xf32> to vector<8x128xbf16>
    %c0_110 = arith.constant 0 : index
    %c0_111 = arith.constant 0 : index
    %c0_112 = arith.constant 0 : index
    %208 = vector.load %arg13[%c0_110, %c0_111, %c0_112] : memref<1x32x128xbf16, #tpu.memory_space<vmem>>, vector<1x32x128xbf16>
    %209 = vector.shape_cast %208 : vector<1x32x128xbf16> to vector<32x128xbf16>
    %cst_113 = arith.constant dense<0.000000e+00> : vector<8x32xf32>
    %210 = tpu.matmul %207, %209, %cst_113 {dimension_numbers = #tpu.dot_dimension_numbers<[1], [1], [0], [0], [0, 0, 1, 0], [], []>} : vector<8x128xbf16>, vector<32x128xbf16>, vector<8x32xf32> -> vector<8x32xf32>
    %c0_114 = arith.constant 0 : index
    %c0_115 = arith.constant 0 : index
    %c0_116 = arith.constant 0 : index
    %211 = vector.load %arg14[%c0_114, %c0_115, %c0_116] : memref<1x1x32xf32, #tpu.memory_space<vmem>>, vector<1x1x32xf32>
    %212 = vector.shape_cast %211 : vector<1x1x32xf32> to vector<1x32xf32>
    %213 = vector.broadcast %212 : vector<1x32xf32> to vector<8x32xf32>
    %214 = arith.addf %210, %213 : vector<8x32xf32>
    %215 = arith.addf %170, %214 : vector<8x32xf32>
    %c0_117 = arith.constant 0 : index
    %c0_118 = arith.constant 0 : index
    %216 = vector.load %arg18[%c0_117, %c0_118] : memref<8x32xf32, #tpu.memory_space<vmem>>, vector<8x32xf32>
    tpu.vector_store %arg18[%c0_117, %c0_118], %215 {strides = array<i32>} : memref<8x32xf32, #tpu.memory_space<vmem>>, vector<8x32xf32>,
    %c1_i32 = arith.constant 1 : i32
    %217 = arith.cmpi eq, %arg1, %c1_i32 : i32
    %218 = arith.extui %217 : i1 to i32
    %c0_i32_119 = arith.constant 0 : i32
    %219 = arith.cmpi ne, %218, %c0_i32_119 : i32
    scf.if %219 {
      %c0_120 = arith.constant 0 : index
      %c0_121 = arith.constant 0 : index
      %220 = vector.load %arg15[%c0_120, %c0_121] : memref<1x32xf32, #tpu.memory_space<vmem>>, vector<1x32xf32>
      %c0_122 = arith.constant 0 : index
      %c0_123 = arith.constant 0 : index
      %221 = vector.load %arg16[%c0_122, %c0_123] : memref<1x32xf32, #tpu.memory_space<vmem>>, vector<1x32xf32>
      %cst_124 = arith.constant dense<0.000000e+00> : vector<8xf32>
      %222 = vector.multi_reduction <add>, %215, %cst_124 [1] : vector<8x32xf32> to vector<8xf32>
      %223 = vector.shape_cast %222 : vector<8xf32> to vector<8x1xf32>
      %cst_125 = arith.constant 3.200000e+01 : f32
      %224 = vector.broadcast %cst_125 : f32 to vector<8x1xf32>
      %225 = arith.divf %223, %224 : vector<8x1xf32>
      %226 = vector.broadcast %225 : vector<8x1xf32> to vector<8x32xf32>
      %227 = arith.subf %215, %226 : vector<8x32xf32>
      %228 = arith.mulf %227, %227 : vector<8x32xf32>
      %cst_126 = arith.constant dense<0.000000e+00> : vector<8xf32>
      %229 = vector.multi_reduction <add>, %228, %cst_126 [1] : vector<8x32xf32> to vector<8xf32>
      %230 = vector.shape_cast %229 : vector<8xf32> to vector<8x1xf32>
      %cst_127 = arith.constant 3.200000e+01 : f32
      %231 = vector.broadcast %cst_127 : f32 to vector<8x1xf32>
      %232 = arith.divf %230, %231 : vector<8x1xf32>
      %233 = vector.broadcast %225 : vector<8x1xf32> to vector<8x32xf32>
      %234 = arith.subf %215, %233 : vector<8x32xf32>
      %cst_128 = arith.constant 9.99999974E-6 : f32
      %235 = vector.broadcast %cst_128 : f32 to vector<8x1xf32>
      %236 = arith.addf %232, %235 : vector<8x1xf32>
      %237 = math.rsqrt %236 : vector<8x1xf32>
      %238 = vector.broadcast %237 : vector<8x1xf32> to vector<8x32xf32>
      %239 = arith.mulf %234, %238 : vector<8x32xf32>
      %240 = vector.broadcast %220 : vector<1x32xf32> to vector<8x32xf32>
      %241 = arith.mulf %239, %240 : vector<8x32xf32>
      %242 = vector.broadcast %221 : vector<1x32xf32> to vector<8x32xf32>
      %243 = arith.addf %241, %242 : vector<8x32xf32>
      %244 = vector.shape_cast %243 : vector<8x32xf32> to vector<1x8x32xf32>
      %c0_129 = arith.constant 0 : index
      %c0_130 = arith.constant 0 : index
      %c0_131 = arith.constant 0 : index
      %245 = vector.load %arg17[%c0_129, %c0_130, %c0_131] : memref<1x8x32xf32, #tpu.memory_space<vmem>>, vector<1x8x32xf32>
      tpu.vector_store %arg17[%c0_129, %c0_130, %c0_131], %244 {strides = array<i32>} : memref<1x8x32xf32, #tpu.memory_space<vmem>>, vector<1x8x32xf32>,
    } else {
    }
    return
  }
  func.func @transform_0(%arg0: i32, %arg1: i32) -> (i32, i32, i32) {
    %c0_i32 = arith.constant 0 : i32
    %c0_i32_0 = arith.constant 0 : i32
    %c0_i32_1 = arith.constant 0 : i32
    return %arg0, %c0_i32, %c0_i32_0 : i32, i32, i32
  }
  func.func @transform_1(%arg0: i32, %arg1: i32) -> (i32, i32, i32) {
    %c0_i32 = arith.constant 0 : i32
    %c0_i32_0 = arith.constant 0 : i32
    %c0_i32_1 = arith.constant 0 : i32
    return %arg1, %c0_i32, %c0_i32_0 : i32, i32, i32
  }
  func.func @transform_2(%arg0: i32, %arg1: i32) -> (i32, i32, i32) {
    %c0_i32 = arith.constant 0 : i32
    %c0_i32_0 = arith.constant 0 : i32
    %c0_i32_1 = arith.constant 0 : i32
    return %arg1, %c0_i32, %c0_i32_0 : i32, i32, i32
  }
  func.func @transform_3(%arg0: i32, %arg1: i32) -> (i32, i32, i32) {
    %c0_i32 = arith.constant 0 : i32
    %c0_i32_0 = arith.constant 0 : i32
    %c0_i32_1 = arith.constant 0 : i32
    return %arg1, %c0_i32, %c0_i32_0 : i32, i32, i32
  }
  func.func @transform_4(%arg0: i32, %arg1: i32) -> (i32, i32, i32) {
    %c0_i32 = arith.constant 0 : i32
    %c0_i32_0 = arith.constant 0 : i32
    %c0_i32_1 = arith.constant 0 : i32
    return %arg1, %c0_i32, %c0_i32_0 : i32, i32, i32
  }
  func.func @transform_5(%arg0: i32, %arg1: i32) -> (i32, i32, i32) {
    %c0_i32 = arith.constant 0 : i32
    %c0_i32_0 = arith.constant 0 : i32
    %c0_i32_1 = arith.constant 0 : i32
    return %arg1, %c0_i32, %c0_i32_0 : i32, i32, i32
  }
  func.func @transform_6(%arg0: i32, %arg1: i32) -> (i32, i32, i32) {
    %c0_i32 = arith.constant 0 : i32
    %c0_i32_0 = arith.constant 0 : i32
    %c0_i32_1 = arith.constant 0 : i32
    return %arg1, %c0_i32, %c0_i32_0 : i32, i32, i32
  }
  func.func @transform_7(%arg0: i32, %arg1: i32) -> (i32, i32, i32) {
    %c0_i32 = arith.constant 0 : i32
    %c0_i32_0 = arith.constant 0 : i32
    %c0_i32_1 = arith.constant 0 : i32
    return %arg1, %c0_i32, %c0_i32_0 : i32, i32, i32
  }
  func.func @transform_8(%arg0: i32, %arg1: i32) -> (i32, i32, i32) {
    %c0_i32 = arith.constant 0 : i32
    %c0_i32_0 = arith.constant 0 : i32
    %c0_i32_1 = arith.constant 0 : i32
    return %arg1, %c0_i32, %c0_i32_0 : i32, i32, i32
  }
  func.func @transform_9(%arg0: i32, %arg1: i32) -> (i32, i32, i32) {
    %c0_i32 = arith.constant 0 : i32
    %c0_i32_0 = arith.constant 0 : i32
    %c0_i32_1 = arith.constant 0 : i32
    return %arg1, %c0_i32, %c0_i32_0 : i32, i32, i32
  }
  func.func @transform_10(%arg0: i32, %arg1: i32) -> (i32, i32, i32) {
    %c0_i32 = arith.constant 0 : i32
    %c0_i32_0 = arith.constant 0 : i32
    %c0_i32_1 = arith.constant 0 : i32
    return %arg1, %c0_i32, %c0_i32_0 : i32, i32, i32
  }
  func.func @transform_11(%arg0: i32, %arg1: i32) -> (i32, i32, i32) {
    %c0_i32 = arith.constant 0 : i32
    %c0_i32_0 = arith.constant 0 : i32
    %c0_i32_1 = arith.constant 0 : i32
    return %arg1, %c0_i32, %c0_i32_0 : i32, i32, i32
  }
  func.func @transform_12(%arg0: i32, %arg1: i32) -> (i32, i32, i32) {
    %c0_i32 = arith.constant 0 : i32
    %c0_i32_0 = arith.constant 0 : i32
    %c0_i32_1 = arith.constant 0 : i32
    return %arg1, %c0_i32, %c0_i32_0 : i32, i32, i32
  }
  func.func @transform_13(%arg0: i32, %arg1: i32) -> (i32, i32) {
    %c0_i32 = arith.constant 0 : i32
    %c0_i32_0 = arith.constant 0 : i32
    %c0_i32_1 = arith.constant 0 : i32
    return %c0_i32, %c0_i32_0 : i32, i32
  }
  func.func @transform_14(%arg0: i32, %arg1: i32) -> (i32, i32) {
    %c0_i32 = arith.constant 0 : i32
    %c0_i32_0 = arith.constant 0 : i32
    %c0_i32_1 = arith.constant 0 : i32
    return %c0_i32, %c0_i32_0 : i32, i32
  }
  func.func @transform_15(%arg0: i32, %arg1: i32) -> (i32, i32, i32) {
    %c0_i32 = arith.constant 0 : i32
    %c0_i32_0 = arith.constant 0 : i32
    %c0_i32_1 = arith.constant 0 : i32
    return %arg0, %c0_i32, %c0_i32_0 : i32, i32, i32
  }
}

</mosaic_0001>

<llo_original>
// kernel: tpu_custom_call.1
$region0: #{tpu_custom_call.1}
  #allocation0 [shape = 'u32[]', space=smem, size = 0x4, offset = 0x4, fixed_abs, tag = 'smem constant byte address 0x4 - core index']
  #allocation1 [shape = 'u32[144,128]{1,0:T(1,128)}', space=vmem, size = 0x12000, scoped, tag = 'internal scratch']
  #allocation2 [shape = 'f32[8,32]{1,0:T(8,128)}', space=vmem, size = 0x1000, scoped, tag = 'scratch operand']
  %s0 = inlined_call_operand.hbm [shape: f32[2,8,32], index: 0, kind: input, shape index: {}]
  %s1 = inlined_call_operand.hbm [shape: f32[2,1,32], index: 1, kind: input, shape index: {}]
  %s2 = inlined_call_operand.vmem [shape: f32[2,1,32], index: 2, kind: input, shape index: {}]
  %s3 = inlined_call_operand.vmem [shape: bf16[2,32,32], index: 3, kind: input, shape index: {}]
  %s4 = inlined_call_operand.vmem [shape: bf16[2,32,32], index: 4, kind: input, shape index: {}]
  %s5 = inlined_call_operand.vmem [shape: bf16[2,32,32], index: 5, kind: input, shape index: {}]
  %s6 = inlined_call_operand.vmem [shape: bf16[2,32,32], index: 6, kind: input, shape index: {}]
  %s7 = inlined_call_operand.vmem [shape: f32[2,1,32], index: 7, kind: input, shape index: {}]
  %s8 = inlined_call_operand.vmem [shape: f32[2,1,32], index: 8, kind: input, shape index: {}]
  %s9 = inlined_call_operand.vmem [shape: bf16[2,128,32], index: 9, kind: input, shape index: {}]
  %s10 = inlined_call_operand.vmem [shape: f32[2,1,128], index: 10, kind: input, shape index: {}]
  %s11 = inlined_call_operand.vmem [shape: bf16[2,32,128], index: 11, kind: input, shape index: {}]
  %s12 = inlined_call_operand.vmem [shape: f32[2,1,32], index: 12, kind: input, shape index: {}]
  %s13 = inlined_call_operand.vmem [shape: f32[1,32], index: 13, kind: input, shape index: {}]
  %s14 = inlined_call_operand.vmem [shape: f32[1,32], index: 14, kind: input, shape index: {}]
  %s15 = inlined_call_operand.hbm [shape: f32[2,8,32], index: 15, kind: output, shape index: {}]
  %s16 = sld [smem:[#allocation0]]
  $region109: #{tpu_custom_call.1} parent=0
    _
  %s18 = ssub.s32 1, %s16
  %s19 = scalar_select 0, %s18, %s16
  $region1: #{tpu_custom_call.1} parent=0
    #allocation3 [shape = 'u8[8192]{0}', space=vmem, size = 0x2000, scoped, tag = 'input window, operand 0']
    #allocation4 [shape = 's32[2]{0}', space=sflag, size = 0x8, scoped, tag = 'scoped memory for tpu_custom_call.1']
    #allocation5 [shape = 's32[2]{0}', space=sflag, size = 0x8, scoped, tag = 'scoped memory for tpu_custom_call.1']
    #allocation6 [shape = 'u8[1024]{0}', space=vmem, size = 0x400, scoped, tag = 'input window, operand 1']
    #allocation7 [shape = 's32[2]{0}', space=sflag, size = 0x8, scoped, tag = 'scoped memory for tpu_custom_call.1']
    #allocation8 [shape = 'u8[8192]{0}', space=vmem, size = 0x2000, scoped, tag = 'output window, operand 0']
    %20 = vsyncpa [#allocation4], 0
    %s21 = scalar_lea.sflag [#allocation4], 1
    %22 = vsyncpa %s21, 0
    %23 = vsyncpa [#allocation7], 0
    %s24 = scalar_lea.sflag [#allocation7], 1
    %25 = vsyncpa %s24, 0
    %26 = vsyncpa [#allocation5], 0
    %s27 = scalar_lea.sflag [#allocation5], 1
    %28 = vsyncpa %s27, 0
    loop: start=0, step=1, limit=6
    $region2: #{tpu_custom_call.1} parent=1 // loop_pre_header
      _
    $region3: #{tpu_custom_call.1} parent=1 // loop_header
      %s30 = sphi 0, %s34
      %p31 = scmp.ge.s32.totalorder %s30, 6
      %s37 = sphi 0, %s49
      %s38 = sphi 0, %s45
      %s39 = sphi 0, %s37
      %s40 = sphi 0, %s38
      %s41 = sphi 0, %s39
      %s42 = sphi 0, %s40
      %s52 = sphi 0, %s54
      %s55 = sphi 0, %s52
      %s56 = sphi 0, %s55
      %s72 = sphi 0, %s56
      %s78 = sphi 0, %s80
      %s81 = sphi 0, %s78
      %s82 = sphi 0, %s81
      %s98 = sphi 0, %s82
      %s104 = sphi 0, %s106
      %s107 = sphi 0, %s104
      %s108 = sphi 0, %s107
      %s124 = sphi 0, %s108
      %s130 = sphi 0, %s132
      %s133 = sphi 0, %s130
      %s134 = sphi 0, %s133
      %s150 = sphi 0, %s134
      %s156 = sphi 0, %s158
      %s159 = sphi 0, %s156
      %s160 = sphi 0, %s159
      %s176 = sphi 0, %s160
      %s182 = sphi 0, %s184
      %s185 = sphi 0, %s182
      %s186 = sphi 0, %s185
      %s202 = sphi 0, %s186
      %s208 = sphi 0, %s210
      %s211 = sphi 0, %s208
      %s212 = sphi 0, %s211
      %s228 = sphi 0, %s212
      %s234 = sphi 0, %s236
      %s237 = sphi 0, %s234
      %s238 = sphi 0, %s237
      %s254 = sphi 0, %s238
      %s260 = sphi 0, %s262
      %s263 = sphi 0, %s260
      %s264 = sphi 0, %s263
      %s280 = sphi 0, %s264
      %s286 = sphi 0, %s288
      %s289 = sphi 0, %s286
      %s290 = sphi 0, %s289
      %s306 = sphi 0, %s290
      %s312 = sphi 0, %s314
      %s315 = sphi 0, %s312
      %s316 = sphi 0, %s315
      %s332 = sphi 0, %s316
      %s338 = sphi 0, %s340
      %s341 = sphi 0, %s338
      %s342 = sphi 0, %s341
      %s358 = sphi 0, %s342
      %s364 = sphi 0, %s366
      %s367 = sphi 0, %s364
      %s368 = sphi 0, %s367
      %s384 = sphi 0, %s368
      %s388 = sphi 0, %s388
      %s390 = sphi 0, %s388
      %s391 = sphi 0, %s390
      %s405 = sphi 0, %s391
      %s409 = sphi 0, %s409
      %s411 = sphi 0, %s409
      %s412 = sphi 0, %s411
      %s426 = sphi 0, %s412
      %s432 = sphi 0, %s434
      %s435 = sphi 0, %s432
      %s436 = sphi 0, %s435
      %s452 = sphi 0, %s436
    $region4: #{tpu_custom_call.1} parent=1 // loop_header_branch
      %33 = sbr.rel (%p31) target = $region8
    $region5: #{tpu_custom_call.1} parent=1 // loop_body
      %s35 = ssub.s32 %s30, 1
      %s36 = ssub.s32 %s30, 2
      %s43 = sadd.s32 1, %s38
      %p44 = scmp.ge.s32.totalorder %s43, 2
      %s45 = scalar_select %p44, 0, %s43
      %s46 = sadd.s32 1, %s37
      %s47 = scalar_select %p44, %s46, %s37
      %p48 = scmp.ge.s32.totalorder %s47, 2
      %s49 = scalar_select %p48, 0, %s47
      %s50 = ssub.s32 %s37, %s49
      %p51 = scmp.eq.s32.totalorder %s50, 0
      %s53 = sadd.s32 %s52, 1
      %s54 = scalar_select %p51, %s52, %s53
      %p57 = pneg %p51
      %p58 = scmp.eq.s32.totalorder %s30, 3
      %p59 = por %p57, %p58
      %p60 = scmp.ne.s32.totalorder %s52, %s55
      %p61 = scmp.eq.s32.totalorder %s30, 0
      %p62 = por %p60, %p61
      %p63 = scmp.ne.s32.totalorder %s52, %s55
      %p64 = scmp.eq.s32.totalorder %s35, 3
      %p65 = por %p63, %p64
      %p66 = scmp.ne.s32.totalorder %s55, %s56
      %p67 = scmp.eq.s32.totalorder %s35, 0
      %p68 = por %p66, %p67
      %p69 = scmp.ne.s32.totalorder %s55, %s56
      %p70 = scmp.eq.s32.totalorder %s36, 3
      %p71 = por %p69, %p70
      %p73 = scmp.ne.s32.totalorder %s56, %s72
      %p74 = scmp.eq.s32.totalorder %s36, 0
      %p75 = por %p73, %p74
      %s76 = ssub.s32 %s38, %s45
      %p77 = scmp.eq.s32.totalorder %s76, 0
      %s79 = sadd.s32 %s78, 1
      %s80 = scalar_select %p77, %s78, %s79
      %p83 = pneg %p77
      %p84 = scmp.eq.s32.totalorder %s30, 3
      %p85 = por %p83, %p84
      %p86 = scmp.ne.s32.totalorder %s78, %s81
      %p87 = scmp.eq.s32.totalorder %s30, 0
      %p88 = por %p86, %p87
      %p89 = scmp.ne.s32.totalorder %s78, %s81
      %p90 = scmp.eq.s32.totalorder %s35, 3
      %p91 = por %p89, %p90
      %p92 = scmp.ne.s32.totalorder %s81, %s82
      %p93 = scmp.eq.s32.totalorder %s35, 0
      %p94 = por %p92, %p93
      %p95 = scmp.ne.s32.totalorder %s81, %s82
      %p96 = scmp.eq.s32.totalorder %s36, 3
      %p97 = por %p95, %p96
      %p99 = scmp.ne.s32.totalorder %s82, %s98
      %p100 = scmp.eq.s32.totalorder %s36, 0
      %p101 = por %p99, %p100
      %s102 = ssub.s32 %s38, %s45
      %p103 = scmp.eq.s32.totalorder %s102, 0
      %s105 = sadd.s32 %s104, 1
      %s106 = scalar_select %p103, %s104, %s105
      %p109 = pneg %p103
      %p110 = scmp.eq.s32.totalorder %s30, 3
      %p111 = por %p109, %p110
      %p112 = scmp.ne.s32.totalorder %s104, %s107
      %p113 = scmp.eq.s32.totalorder %s30, 0
      %p114 = por %p112, %p113
      %p115 = scmp.ne.s32.totalorder %s104, %s107
      %p116 = scmp.eq.s32.totalorder %s35, 3
      %p117 = por %p115, %p116
      %p118 = scmp.ne.s32.totalorder %s107, %s108
      %p119 = scmp.eq.s32.totalorder %s35, 0
      %p120 = por %p118, %p119
      %p121 = scmp.ne.s32.totalorder %s107, %s108
      %p122 = scmp.eq.s32.totalorder %s36, 3
      %p123 = por %p121, %p122
      %p125 = scmp.ne.s32.totalorder %s108, %s124
      %p126 = scmp.eq.s32.totalorder %s36, 0
      %p127 = por %p125, %p126
      %s128 = ssub.s32 %s38, %s45
      %p129 = scmp.eq.s32.totalorder %s128, 0
      %s131 = sadd.s32 %s130, 1
      %s132 = scalar_select %p129, %s130, %s131
      %p135 = pneg %p129
      %p136 = scmp.eq.s32.totalorder %s30, 3
      %p137 = por %p135, %p136
      %p138 = scmp.ne.s32.totalorder %s130, %s133
      %p139 = scmp.eq.s32.totalorder %s30, 0
      %p140 = por %p138, %p139
      %p141 = scmp.ne.s32.totalorder %s130, %s133
      %p142 = scmp.eq.s32.totalorder %s35, 3
      %p143 = por %p141, %p142
      %p144 = scmp.ne.s32.totalorder %s133, %s134
      %p145 = scmp.eq.s32.totalorder %s35, 0
      %p146 = por %p144, %p145
      %p147 = scmp.ne.s32.totalorder %s133, %s134
      %p148 = scmp.eq.s32.totalorder %s36, 3
      %p149 = por %p147, %p148
      %p151 = scmp.ne.s32.totalorder %s134, %s150
      %p152 = scmp.eq.s32.totalorder %s36, 0
      %p153 = por %p151, %p152
      %s154 = ssub.s32 %s38, %s45
      %p155 = scmp.eq.s32.totalorder %s154, 0
      %s157 = sadd.s32 %s156, 1
      %s158 = scalar_select %p155, %s156, %s157
      %p161 = pneg %p155
      %p162 = scmp.eq.s32.totalorder %s30, 3
      %p163 = por %p161, %p162
      %p164 = scmp.ne.s32.totalorder %s156, %s159
      %p165 = scmp.eq.s32.totalorder %s30, 0
      %p166 = por %p164, %p165
      %p167 = scmp.ne.s32.totalorder %s156, %s159
      %p168 = scmp.eq.s32.totalorder %s35, 3
      %p169 = por %p167, %p168
      %p170 = scmp.ne.s32.totalorder %s159, %s160
      %p171 = scmp.eq.s32.totalorder %s35, 0
      %p172 = por %p170, %p171
      %p173 = scmp.ne.s32.totalorder %s159, %s160
      %p174 = scmp.eq.s32.totalorder %s36, 3
      %p175 = por %p173, %p174
      %p177 = scmp.ne.s32.totalorder %s160, %s176
      %p178 = scmp.eq.s32.totalorder %s36, 0
      %p179 = por %p177, %p178
      %s180 = ssub.s32 %s38, %s45
      %p181 = scmp.eq.s32.totalorder %s180, 0
      %s183 = sadd.s32 %s182, 1
      %s184 = scalar_select %p181, %s182, %s183
      %p187 = pneg %p181
      %p188 = scmp.eq.s32.totalorder %s30, 3
      %p189 = por %p187, %p188
      %p190 = scmp.ne.s32.totalorder %s182, %s185
      %p191 = scmp.eq.s32.totalorder %s30, 0
      %p192 = por %p190, %p191
      %p193 = scmp.ne.s32.totalorder %s182, %s185
      %p194 = scmp.eq.s32.totalorder %s35, 3
      %p195 = por %p193, %p194
      %p196 = scmp.ne.s32.totalorder %s185, %s186
      %p197 = scmp.eq.s32.totalorder %s35, 0
      %p198 = por %p196, %p197
      %p199 = scmp.ne.s32.totalorder %s185, %s186
      %p200 = scmp.eq.s32.totalorder %s36, 3
      %p201 = por %p199, %p200
      %p203 = scmp.ne.s32.totalorder %s186, %s202
      %p204 = scmp.eq.s32.totalorder %s36, 0
      %p205 = por %p203, %p204
      %s206 = ssub.s32 %s38, %s45
      %p207 = scmp.eq.s32.totalorder %s206, 0
      %s209 = sadd.s32 %s208, 1
      %s210 = scalar_select %p207, %s208, %s209
      %p213 = pneg %p207
      %p214 = scmp.eq.s32.totalorder %s30, 3
      %p215 = por %p213, %p214
      %p216 = scmp.ne.s32.totalorder %s208, %s211
      %p217 = scmp.eq.s32.totalorder %s30, 0
      %p218 = por %p216, %p217
      %p219 = scmp.ne.s32.totalorder %s208, %s211
      %p220 = scmp.eq.s32.totalorder %s35, 3
      %p221 = por %p219, %p220
      %p222 = scmp.ne.s32.totalorder %s211, %s212
      %p223 = scmp.eq.s32.totalorder %s35, 0
      %p224 = por %p222, %p223
      %p225 = scmp.ne.s32.totalorder %s211, %s212
      %p226 = scmp.eq.s32.totalorder %s36, 3
      %p227 = por %p225, %p226
      %p229 = scmp.ne.s32.totalorder %s212, %s228
      %p230 = scmp.eq.s32.totalorder %s36, 0
      %p231 = por %p229, %p230
      %s232 = ssub.s32 %s38, %s45
      %p233 = scmp.eq.s32.totalorder %s232, 0
      %s235 = sadd.s32 %s234, 1
      %s236 = scalar_select %p233, %s234, %s235
      %p239 = pneg %p233
      %p240 = scmp.eq.s32.totalorder %s30, 3
      %p241 = por %p239, %p240
      %p242 = scmp.ne.s32.totalorder %s234, %s237
      %p243 = scmp.eq.s32.totalorder %s30, 0
      %p244 = por %p242, %p243
      %p245 = scmp.ne.s32.totalorder %s234, %s237
      %p246 = scmp.eq.s32.totalorder %s35, 3
      %p247 = por %p245, %p246
      %p248 = scmp.ne.s32.totalorder %s237, %s238
      %p249 = scmp.eq.s32.totalorder %s35, 0
      %p250 = por %p248, %p249
      %p251 = scmp.ne.s32.totalorder %s237, %s238
      %p252 = scmp.eq.s32.totalorder %s36, 3
      %p253 = por %p251, %p252
      %p255 = scmp.ne.s32.totalorder %s238, %s254
      %p256 = scmp.eq.s32.totalorder %s36, 0
      %p257 = por %p255, %p256
      %s258 = ssub.s32 %s38, %s45
      %p259 = scmp.eq.s32.totalorder %s258, 0
      %s261 = sadd.s32 %s260, 1
      %s262 = scalar_select %p259, %s260, %s261
      %p265 = pneg %p259
      %p266 = scmp.eq.s32.totalorder %s30, 3
      %p267 = por %p265, %p266
      %p268 = scmp.ne.s32.totalorder %s260, %s263
      %p269 = scmp.eq.s32.totalorder %s30, 0
      %p270 = por %p268, %p269
      %p271 = scmp.ne.s32.totalorder %s260, %s263
      %p272 = scmp.eq.s32.totalorder %s35, 3
      %p273 = por %p271, %p272
      %p274 = scmp.ne.s32.totalorder %s263, %s264
      %p275 = scmp.eq.s32.totalorder %s35, 0
      %p276 = por %p274, %p275
      %p277 = scmp.ne.s32.totalorder %s263, %s264
      %p278 = scmp.eq.s32.totalorder %s36, 3
      %p279 = por %p277, %p278
      %p281 = scmp.ne.s32.totalorder %s264, %s280
      %p282 = scmp.eq.s32.totalorder %s36, 0
      %p283 = por %p281, %p282
      %s284 = ssub.s32 %s38, %s45
      %p285 = scmp.eq.s32.totalorder %s284, 0
      %s287 = sadd.s32 %s286, 1
      %s288 = scalar_select %p285, %s286, %s287
      %p291 = pneg %p285
      %p292 = scmp.eq.s32.totalorder %s30, 3
      %p293 = por %p291, %p292
      %p294 = scmp.ne.s32.totalorder %s286, %s289
      %p295 = scmp.eq.s32.totalorder %s30, 0
      %p296 = por %p294, %p295
      %p297 = scmp.ne.s32.totalorder %s286, %s289
      %p298 = scmp.eq.s32.totalorder %s35, 3
      %p299 = por %p297, %p298
      %p300 = scmp.ne.s32.totalorder %s289, %s290
      %p301 = scmp.eq.s32.totalorder %s35, 0
      %p302 = por %p300, %p301
      %p303 = scmp.ne.s32.totalorder %s289, %s290
      %p304 = scmp.eq.s32.totalorder %s36, 3
      %p305 = por %p303, %p304
      %p307 = scmp.ne.s32.totalorder %s290, %s306
      %p308 = scmp.eq.s32.totalorder %s36, 0
      %p309 = por %p307, %p308
      %s310 = ssub.s32 %s38, %s45
      %p311 = scmp.eq.s32.totalorder %s310, 0
      %s313 = sadd.s32 %s312, 1
      %s314 = scalar_select %p311, %s312, %s313
      %p317 = pneg %p311
      %p318 = scmp.eq.s32.totalorder %s30, 3
      %p319 = por %p317, %p318
      %p320 = scmp.ne.s32.totalorder %s312, %s315
      %p321 = scmp.eq.s32.totalorder %s30, 0
      %p322 = por %p320, %p321
      %p323 = scmp.ne.s32.totalorder %s312, %s315
      %p324 = scmp.eq.s32.totalorder %s35, 3
      %p325 = por %p323, %p324
      %p326 = scmp.ne.s32.totalorder %s315, %s316
      %p327 = scmp.eq.s32.totalorder %s35, 0
      %p328 = por %p326, %p327
      %p329 = scmp.ne.s32.totalorder %s315, %s316
      %p330 = scmp.eq.s32.totalorder %s36, 3
      %p331 = por %p329, %p330
      %p333 = scmp.ne.s32.totalorder %s316, %s332
      %p334 = scmp.eq.s32.totalorder %s36, 0
      %p335 = por %p333, %p334
      %s336 = ssub.s32 %s38, %s45
      %p337 = scmp.eq.s32.totalorder %s336, 0
      %s339 = sadd.s32 %s338, 1
      %s340 = scalar_select %p337, %s338, %s339
      %p343 = pneg %p337
      %p344 = scmp.eq.s32.totalorder %s30, 3
      %p345 = por %p343, %p344
      %p346 = scmp.ne.s32.totalorder %s338, %s341
      %p347 = scmp.eq.s32.totalorder %s30, 0
      %p348 = por %p346, %p347
      %p349 = scmp.ne.s32.totalorder %s338, %s341
      %p350 = scmp.eq.s32.totalorder %s35, 3
      %p351 = por %p349, %p350
      %p352 = scmp.ne.s32.totalorder %s341, %s342
      %p353 = scmp.eq.s32.totalorder %s35, 0
      %p354 = por %p352, %p353
      %p355 = scmp.ne.s32.totalorder %s341, %s342
      %p356 = scmp.eq.s32.totalorder %s36, 3
      %p357 = por %p355, %p356
      %p359 = scmp.ne.s32.totalorder %s342, %s358
      %p360 = scmp.eq.s32.totalorder %s36, 0
      %p361 = por %p359, %p360
      %s362 = ssub.s32 %s38, %s45
      %p363 = scmp.eq.s32.totalorder %s362, 0
      %s365 = sadd.s32 %s364, 1
      %s366 = scalar_select %p363, %s364, %s365
      %p369 = pneg %p363
      %p370 = scmp.eq.s32.totalorder %s30, 3
      %p371 = por %p369, %p370
      %p372 = scmp.ne.s32.totalorder %s364, %s367
      %p373 = scmp.eq.s32.totalorder %s30, 0
      %p374 = por %p372, %p373
      %p375 = scmp.ne.s32.totalorder %s364, %s367
      %p376 = scmp.eq.s32.totalorder %s35, 3
      %p377 = por %p375, %p376
      %p378 = scmp.ne.s32.totalorder %s367, %s368
      %p379 = scmp.eq.s32.totalorder %s35, 0
      %p380 = por %p378, %p379
      %p381 = scmp.ne.s32.totalorder %s367, %s368
      %p382 = scmp.eq.s32.totalorder %s36, 3
      %p383 = por %p381, %p382
      %p385 = scmp.ne.s32.totalorder %s368, %s384
      %p386 = scmp.eq.s32.totalorder %s36, 0
      %p387 = por %p385, %p386
      %s389 = sadd.s32 %s388, 1
      %p392 = scmp.eq.s32.totalorder %s30, 3
      %p393 = scmp.ne.s32.totalorder %s388, %s390
      %p394 = scmp.eq.s32.totalorder %s30, 0
      %p395 = por %p393, %p394
      %p396 = scmp.ne.s32.totalorder %s388, %s390
      %p397 = scmp.eq.s32.totalorder %s35, 3
      %p398 = por %p396, %p397
      %p399 = scmp.ne.s32.totalorder %s390, %s391
      %p400 = scmp.eq.s32.totalorder %s35, 0
      %p401 = por %p399, %p400
      %p402 = scmp.ne.s32.totalorder %s390, %s391
      %p403 = scmp.eq.s32.totalorder %s36, 3
      %p404 = por %p402, %p403
      %p406 = scmp.ne.s32.totalorder %s391, %s405
      %p407 = scmp.eq.s32.totalorder %s36, 0
      %p408 = por %p406, %p407
      %s410 = sadd.s32 %s409, 1
      %p413 = scmp.eq.s32.totalorder %s30, 3
      %p414 = scmp.ne.s32.totalorder %s409, %s411
      %p415 = scmp.eq.s32.totalorder %s30, 0
      %p416 = por %p414, %p415
      %p417 = scmp.ne.s32.totalorder %s409, %s411
      %p418 = scmp.eq.s32.totalorder %s35, 3
      %p419 = por %p417, %p418
      %p420 = scmp.ne.s32.totalorder %s411, %s412
      %p421 = scmp.eq.s32.totalorder %s35, 0
      %p422 = por %p420, %p421
      %p423 = scmp.ne.s32.totalorder %s411, %s412
      %p424 = scmp.eq.s32.totalorder %s36, 3
      %p425 = por %p423, %p424
      %p427 = scmp.ne.s32.totalorder %s412, %s426
      %p428 = scmp.eq.s32.totalorder %s36, 0
      %p429 = por %p427, %p428
      %s430 = ssub.s32 %s37, %s49
      %p431 = scmp.eq.s32.totalorder %s430, 0
      %s433 = sadd.s32 %s432, 1
      %s434 = scalar_select %p431, %s432, %s433
      %p437 = pneg %p431
      %p438 = scmp.eq.s32.totalorder %s30, 3
      %p439 = por %p437, %p438
      %p440 = scmp.ne.s32.totalorder %s432, %s435
      %p441 = scmp.eq.s32.totalorder %s30, 0
      %p442 = por %p440, %p441
      %p443 = scmp.ne.s32.totalorder %s432, %s435
      %p444 = scmp.eq.s32.totalorder %s35, 3
      %p445 = por %p443, %p444
      %p446 = scmp.ne.s32.totalorder %s435, %s436
      %p447 = scmp.eq.s32.totalorder %s35, 0
      %p448 = por %p446, %p447
      %p449 = scmp.ne.s32.totalorder %s435, %s436
      %p450 = scmp.eq.s32.totalorder %s36, 3
      %p451 = por %p449, %p450
      %p453 = scmp.ne.s32.totalorder %s436, %s452
      %p454 = scmp.eq.s32.totalorder %s36, 0
      %p455 = por %p453, %p454
      %p456 = scmp.le.s32.totalorder 1, %s30
      %p457 = scmp.lt.s32.totalorder %s30, 5
      %p458 = pnand %p456, %p457
      %p459 = pneg %p458
      // Predicated region
      $region9: #{tpu_custom_call.1} parent=5 // pred_check
        _
      $region10: #{tpu_custom_call.1} parent=5 // pred_check_branch
        %461 = sbr.rel (%p458) target = $region12
      $region11: #{tpu_custom_call.1} parent=5 // pred_region
        %s462 = ssub.s32 %s30, 1
        // Predicated region
        $region13: #{tpu_custom_call.1} parent=11 // pred_check
          %p463 = pneg %p401
        $region14: #{tpu_custom_call.1} parent=11 // pred_check_branch
          %465 = sbr.rel (%p463) target = $region16
        $region15: #{tpu_custom_call.1} parent=11 // pred_region
          _
        $region16: #{tpu_custom_call.1} parent=11 // pred_fallthru
          _
        // Predicated region
        $region17: #{tpu_custom_call.1} parent=11 // pred_check
          %p466 = pneg %p422
        $region18: #{tpu_custom_call.1} parent=11 // pred_check_branch
          %468 = sbr.rel (%p466) target = $region20
        $region19: #{tpu_custom_call.1} parent=11 // pred_region
          _
        $region20: #{tpu_custom_call.1} parent=11 // pred_fallthru
          _
      $region12: #{tpu_custom_call.1} parent=5 // pred_fallthru
        _
      %p469 = scmp.lt.s32.totalorder %s30, 4
      // Predicated region
      $region21: #{tpu_custom_call.1} parent=5 // pred_check
        %p470 = pneg %p469
      $region22: #{tpu_custom_call.1} parent=5 // pred_check_branch
        %472 = sbr.rel (%p470) target = $region24
      $region23: #{tpu_custom_call.1} parent=5 // pred_region
        // Predicated region
        $region25: #{tpu_custom_call.1} parent=23 // pred_check
          %p473 = pneg %p62
        $region26: #{tpu_custom_call.1} parent=23 // pred_check_branch
          %475 = sbr.rel (%p473) target = $region28
        $region27: #{tpu_custom_call.1} parent=23 // pred_region
          %s476 = sand.u32 %s52, 1
          %s477 = scalar_lea.sflag [#allocation4], %s476
          %s478 = sand.u32 %s52, 1
          %s479 = smul.addr %s478, 8
          %s480 = scalar_lea.vmem [#allocation3], %s479
          %s482 = ssub.s32 128, 128
          %483 = vsyncadd %s477, %s482
          %s484 = smul.addr %s37, 128
          %s485 = scalar_lea.hbm %s0, %s484
          %s487 = sshll.u32 %s480, 4
          %s488 = int_to_ptr.vmem [resolvable:$true] %s487
          %490 = dma.hbm_to_vmem [thread:$0]  %s485, 128, %s488, %s477
        $region28: #{tpu_custom_call.1} parent=23 // pred_fallthru
          _
        // Predicated region
        $region29: #{tpu_custom_call.1} parent=23 // pred_check
          %p491 = pneg %p88
        $region30: #{tpu_custom_call.1} parent=23 // pred_check_branch
          %493 = sbr.rel (%p491) target = $region32
        $region31: #{tpu_custom_call.1} parent=23 // pred_region
          %s494 = sand.u32 %s78, 1
          %s495 = scalar_lea.sflag [#allocation7], %s494
          %s496 = sand.u32 %s78, 1
          %s497 = scalar_lea.vmem [#allocation6], %s496
          %s499 = ssub.s32 16, 16
          %500 = vsyncadd %s495, %s499
          %s501 = smul.addr %s38, 16
          %s502 = scalar_lea.hbm %s1, %s501
          %s504 = sshll.u32 %s497, 4
          %s505 = int_to_ptr.vmem [resolvable:$true] %s504
          %507 = dma.hbm_to_vmem [thread:$0]  %s502, 16, %s505, %s495
        $region32: #{tpu_custom_call.1} parent=23 // pred_fallthru
          _
        // Predicated region
        $region33: #{tpu_custom_call.1} parent=23 // pred_check
          %p508 = pneg %p114
        $region34: #{tpu_custom_call.1} parent=23 // pred_check_branch
          %510 = sbr.rel (%p508) target = $region36
        $region35: #{tpu_custom_call.1} parent=23 // pred_region
          %p511 = scmp.lt.s32.totalorder %s38, 1
          %s512 = scalar_select %p511, %s38, 1
          %s513 = scalar_lea.vmem %s2, %s512
        $region36: #{tpu_custom_call.1} parent=23 // pred_fallthru
          _
        // Predicated region
        $region37: #{tpu_custom_call.1} parent=23 // pred_check
          %p514 = pneg %p140
        $region38: #{tpu_custom_call.1} parent=23 // pred_check_branch
          %516 = sbr.rel (%p514) target = $region40
        $region39: #{tpu_custom_call.1} parent=23 // pred_region
          %p517 = scmp.lt.s32.totalorder %s38, 1
          %s518 = scalar_select %p517, %s38, 1
          %s519 = smul.addr %s518, 4
          %s520 = smul.addr %s519, 4
          %s521 = scalar_lea.vmem %s3, %s520
        $region40: #{tpu_custom_call.1} parent=23 // pred_fallthru
          _
        // Predicated region
        $region41: #{tpu_custom_call.1} parent=23 // pred_check
          %p522 = pneg %p166
        $region42: #{tpu_custom_call.1} parent=23 // pred_check_branch
          %524 = sbr.rel (%p522) target = $region44
        $region43: #{tpu_custom_call.1} parent=23 // pred_region
          %p525 = scmp.lt.s32.totalorder %s38, 1
          %s526 = scalar_select %p525, %s38, 1
          %s527 = smul.addr %s526, 4
          %s528 = smul.addr %s527, 4
          %s529 = scalar_lea.vmem %s4, %s528
        $region44: #{tpu_custom_call.1} parent=23 // pred_fallthru
          _
        // Predicated region
        $region45: #{tpu_custom_call.1} parent=23 // pred_check
          %p530 = pneg %p192
        $region46: #{tpu_custom_call.1} parent=23 // pred_check_branch
          %532 = sbr.rel (%p530) target = $region48
        $region47: #{tpu_custom_call.1} parent=23 // pred_region
          %p533 = scmp.lt.s32.totalorder %s38, 1
          %s534 = scalar_select %p533, %s38, 1
          %s535 = smul.addr %s534, 4
          %s536 = smul.addr %s535, 4
          %s537 = scalar_lea.vmem %s5, %s536
        $region48: #{tpu_custom_call.1} parent=23 // pred_fallthru
          _
        // Predicated region
        $region49: #{tpu_custom_call.1} parent=23 // pred_check
          %p538 = pneg %p218
        $region50: #{tpu_custom_call.1} parent=23 // pred_check_branch
          %540 = sbr.rel (%p538) target = $region52
        $region51: #{tpu_custom_call.1} parent=23 // pred_region
          %p541 = scmp.lt.s32.totalorder %s38, 1
          %s542 = scalar_select %p541, %s38, 1
          %s543 = smul.addr %s542, 4
          %s544 = smul.addr %s543, 4
          %s545 = scalar_lea.vmem %s6, %s544
        $region52: #{tpu_custom_call.1} parent=23 // pred_fallthru
          _
        // Predicated region
        $region53: #{tpu_custom_call.1} parent=23 // pred_check
          %p546 = pneg %p244
        $region54: #{tpu_custom_call.1} parent=23 // pred_check_branch
          %548 = sbr.rel (%p546) target = $region56
        $region55: #{tpu_custom_call.1} parent=23 // pred_region
          %p549 = scmp.lt.s32.totalorder %s38, 1
          %s550 = scalar_select %p549, %s38, 1
          %s551 = scalar_lea.vmem %s7, %s550
        $region56: #{tpu_custom_call.1} parent=23 // pred_fallthru
          _
        // Predicated region
        $region57: #{tpu_custom_call.1} parent=23 // pred_check
          %p552 = pneg %p270
        $region58: #{tpu_custom_call.1} parent=23 // pred_check_branch
          %554 = sbr.rel (%p552) target = $region60
        $region59: #{tpu_custom_call.1} parent=23 // pred_region
          %p555 = scmp.lt.s32.totalorder %s38, 1
          %s556 = scalar_select %p555, %s38, 1
          %s557 = scalar_lea.vmem %s8, %s556
        $region60: #{tpu_custom_call.1} parent=23 // pred_fallthru
          _
        // Predicated region
        $region61: #{tpu_custom_call.1} parent=23 // pred_check
          %p558 = pneg %p296
        $region62: #{tpu_custom_call.1} parent=23 // pred_check_branch
          %560 = sbr.rel (%p558) target = $region64
        $region63: #{tpu_custom_call.1} parent=23 // pred_region
          %p561 = scmp.lt.s32.totalorder %s38, 1
          %s562 = scalar_select %p561, %s38, 1
          %s563 = smul.addr %s562, 16
          %s564 = smul.addr %s563, 4
          %s565 = scalar_lea.vmem %s9, %s564
        $region64: #{tpu_custom_call.1} parent=23 // pred_fallthru
          _
        // Predicated region
        $region65: #{tpu_custom_call.1} parent=23 // pred_check
          %p566 = pneg %p322
        $region66: #{tpu_custom_call.1} parent=23 // pred_check_branch
          %568 = sbr.rel (%p566) target = $region68
        $region67: #{tpu_custom_call.1} parent=23 // pred_region
          %p569 = scmp.lt.s32.totalorder %s38, 1
          %s570 = scalar_select %p569, %s38, 1
          %s571 = scalar_lea.vmem %s10, %s570
        $region68: #{tpu_custom_call.1} parent=23 // pred_fallthru
          _
        // Predicated region
        $region69: #{tpu_custom_call.1} parent=23 // pred_check
          %p572 = pneg %p348
        $region70: #{tpu_custom_call.1} parent=23 // pred_check_branch
          %574 = sbr.rel (%p572) target = $region72
        $region71: #{tpu_custom_call.1} parent=23 // pred_region
          %p575 = scmp.lt.s32.totalorder %s38, 1
          %s576 = scalar_select %p575, %s38, 1
          %s577 = smul.addr %s576, 4
          %s578 = smul.addr %s577, 4
          %s579 = scalar_lea.vmem %s11, %s578
        $region72: #{tpu_custom_call.1} parent=23 // pred_fallthru
          _
        // Predicated region
        $region73: #{tpu_custom_call.1} parent=23 // pred_check
          %p580 = pneg %p374
        $region74: #{tpu_custom_call.1} parent=23 // pred_check_branch
          %582 = sbr.rel (%p580) target = $region76
        $region75: #{tpu_custom_call.1} parent=23 // pred_region
          %p583 = scmp.lt.s32.totalorder %s38, 1
          %s584 = scalar_select %p583, %s38, 1
          %s585 = scalar_lea.vmem %s12, %s584
        $region76: #{tpu_custom_call.1} parent=23 // pred_fallthru
          _
      $region24: #{tpu_custom_call.1} parent=5 // pred_fallthru
        _
      %p586 = scmp.le.s32.totalorder 1, %s30
      %p587 = scmp.lt.s32.totalorder %s30, 5
      %p588 = pnand %p586, %p587
      %p589 = pneg %p588
      // Predicated region
      $region77: #{tpu_custom_call.1} parent=5 // pred_check
        _
      $region78: #{tpu_custom_call.1} parent=5 // pred_check_branch
        %591 = sbr.rel (%p588) target = $region80
      $region79: #{tpu_custom_call.1} parent=5 // pred_region
        %s592 = ssub.s32 %s30, 1
        %s593 = sand.u32 %s55, 1
        %s594 = scalar_lea.sflag [#allocation4], %s593
        %s595 = sand.u32 %s55, 1
        %s596 = smul.addr %s595, 8
        %s597 = scalar_lea.vmem [#allocation3], %s596
        // Predicated region
        $region81: #{tpu_custom_call.1} parent=79 // pred_check
          %p598 = pneg %p68
        $region82: #{tpu_custom_call.1} parent=79 // pred_check_branch
          %600 = sbr.rel (%p598) target = $region84
        $region83: #{tpu_custom_call.1} parent=79 // pred_region
          %601 = dma.done %s594, 128
        $region84: #{tpu_custom_call.1} parent=79 // pred_fallthru
          _
        %s602 = sand.u32 %s81, 1
        %s603 = scalar_lea.sflag [#allocation7], %s602
        %s604 = sand.u32 %s81, 1
        %s605 = scalar_lea.vmem [#allocation6], %s604
        // Predicated region
        $region85: #{tpu_custom_call.1} parent=79 // pred_check
          %p606 = pneg %p94
        $region86: #{tpu_custom_call.1} parent=79 // pred_check_branch
          %608 = sbr.rel (%p606) target = $region88
        $region87: #{tpu_custom_call.1} parent=79 // pred_region
          %609 = dma.done %s603, 16
        $region88: #{tpu_custom_call.1} parent=79 // pred_fallthru
          _
        %s610 = sand.u32 %s55, 1
        %s611 = scalar_lea.sflag [#allocation4], %s610
        %s612 = sand.u32 %s55, 1
        %s613 = smul.addr %s612, 8
        %s614 = scalar_lea.vmem [#allocation3], %s613
        %p615 = pneg %p68
        %p616 = pneg %p65
        %s617 = sand.u32 %s81, 1
        %s618 = scalar_lea.sflag [#allocation7], %s617
        %s619 = sand.u32 %s81, 1
        %s620 = scalar_lea.vmem [#allocation6], %s619
        %p621 = pneg %p94
        %p622 = pneg %p91
        %p623 = scmp.lt.s32.totalorder %s40, 1
        %s624 = scalar_select %p623, %s40, 1
        %s625 = scalar_lea.vmem %s2, %s624
        %p626 = pneg %p120
        %p627 = pneg %p117
        %p628 = scmp.lt.s32.totalorder %s40, 1
        %s629 = scalar_select %p628, %s40, 1
        %s630 = smul.addr %s629, 4
        %s631 = smul.addr %s630, 4
        %s632 = scalar_lea.vmem %s3, %s631
        %p633 = pneg %p146
        %p634 = pneg %p143
        %p635 = scmp.lt.s32.totalorder %s40, 1
        %s636 = scalar_select %p635, %s40, 1
        %s637 = smul.addr %s636, 4
        %s638 = smul.addr %s637, 4
        %s639 = scalar_lea.vmem %s4, %s638
        %p640 = pneg %p172
        %p641 = pneg %p169
        %p642 = scmp.lt.s32.totalorder %s40, 1
        %s643 = scalar_select %p642, %s40, 1
        %s644 = smul.addr %s643, 4
        %s645 = smul.addr %s644, 4
        %s646 = scalar_lea.vmem %s5, %s645
        %p647 = pneg %p198
        %p648 = pneg %p195
        %p649 = scmp.lt.s32.totalorder %s40, 1
        %s650 = scalar_select %p649, %s40, 1
        %s651 = smul.addr %s650, 4
        %s652 = smul.addr %s651, 4
        %s653 = scalar_lea.vmem %s6, %s652
        %p654 = pneg %p224
        %p655 = pneg %p221
        %p656 = scmp.lt.s32.totalorder %s40, 1
        %s657 = scalar_select %p656, %s40, 1
        %s658 = scalar_lea.vmem %s7, %s657
        %p659 = pneg %p250
        %p660 = pneg %p247
        %p661 = scmp.lt.s32.totalorder %s40, 1
        %s662 = scalar_select %p661, %s40, 1
        %s663 = scalar_lea.vmem %s8, %s662
        %p664 = pneg %p276
        %p665 = pneg %p273
        %p666 = scmp.lt.s32.totalorder %s40, 1
        %s667 = scalar_select %p666, %s40, 1
        %s668 = smul.addr %s667, 16
        %s669 = smul.addr %s668, 4
        %s670 = scalar_lea.vmem %s9, %s669
        %p671 = pneg %p302
        %p672 = pneg %p299
        %p673 = scmp.lt.s32.totalorder %s40, 1
        %s674 = scalar_select %p673, %s40, 1
        %s675 = scalar_lea.vmem %s10, %s674
        %p676 = pneg %p328
        %p677 = pneg %p325
        %p678 = scmp.lt.s32.totalorder %s40, 1
        %s679 = scalar_select %p678, %s40, 1
        %s680 = smul.addr %s679, 4
        %s681 = smul.addr %s680, 4
        %s682 = scalar_lea.vmem %s11, %s681
        %p683 = pneg %p354
        %p684 = pneg %p351
        %p685 = scmp.lt.s32.totalorder %s40, 1
        %s686 = scalar_select %p685, %s40, 1
        %s687 = scalar_lea.vmem %s12, %s686
        %p688 = pneg %p380
        %p689 = pneg %p377
        %p690 = pneg %p401
        %p691 = pneg %p398
        %p692 = pneg %p422
        %p693 = pneg %p419
        %p694 = pneg %p448
        %p695 = pneg %p445
        %s696 = sand.u32 %s435, 1
        %s697 = scalar_lea.sflag [#allocation5], %s696
        %s698 = sand.u32 %s435, 1
        %s699 = smul.addr %s698, 8
        %s700 = scalar_lea.vmem [#allocation8], %s699
        %p701 = scmp.lt.s32.totalorder %s40, 1
        %s702 = scalar_select %p701, %s40, 1
        %s703 = scalar_lea.vmem %s2, %s702
        %p704 = scmp.lt.s32.totalorder %s40, 1
        %s705 = scalar_select %p704, %s40, 1
        %s706 = smul.addr %s705, 4
        %s707 = smul.addr %s706, 4
        %s708 = scalar_lea.vmem %s3, %s707
        %p709 = scmp.lt.s32.totalorder %s40, 1
        %s710 = scalar_select %p709, %s40, 1
        %s711 = smul.addr %s710, 4
        %s712 = smul.addr %s711, 4
        %s713 = scalar_lea.vmem %s4, %s712
        %p714 = scmp.lt.s32.totalorder %s40, 1
        %s715 = scalar_select %p714, %s40, 1
        %s716 = smul.addr %s715, 4
        %s717 = smul.addr %s716, 4
        %s718 = scalar_lea.vmem %s5, %s717
        %p719 = scmp.lt.s32.totalorder %s40, 1
        %s720 = scalar_select %p719, %s40, 1
        %s721 = smul.addr %s720, 4
        %s722 = smul.addr %s721, 4
        %s723 = scalar_lea.vmem %s6, %s722
        %p724 = scmp.lt.s32.totalorder %s40, 1
        %s725 = scalar_select %p724, %s40, 1
        %s726 = scalar_lea.vmem %s7, %s725
        %p727 = scmp.lt.s32.totalorder %s40, 1
        %s728 = scalar_select %p727, %s40, 1
        %s729 = scalar_lea.vmem %s8, %s728
        %p730 = scmp.lt.s32.totalorder %s40, 1
        %s731 = scalar_select %p730, %s40, 1
        %s732 = smul.addr %s731, 16
        %s733 = smul.addr %s732, 4
        %s734 = scalar_lea.vmem %s9, %s733
        %p735 = scmp.lt.s32.totalorder %s40, 1
        %s736 = scalar_select %p735, %s40, 1
        %s737 = scalar_lea.vmem %s10, %s736
        %p738 = scmp.lt.s32.totalorder %s40, 1
        %s739 = scalar_select %p738, %s40, 1
        %s740 = smul.addr %s739, 4
        %s741 = smul.addr %s740, 4
        %s742 = scalar_lea.vmem %s11, %s741
        %p743 = scmp.lt.s32.totalorder %s40, 1
        %s744 = scalar_select %p743, %s40, 1
        %s745 = scalar_lea.vmem %s12, %s744
        %p747 = scmp.eq.s32.totalorder %s40, 0
        // Predicated region
        $region89: #{tpu_custom_call.1} parent=79 // pred_check
          %p748 = pneg %p747
        $region90: #{tpu_custom_call.1} parent=79 // pred_check_branch
          %750 = sbr.rel (%p748) target = $region92
        $region91: #{tpu_custom_call.1} parent=79 // pred_region
          %v751 = vld [vmem:[%s597] sm:$0xff]
          %v752 = vld [vmem:[%s605] sm:$0x1]
          %v753 = vld [vmem:[%s703] sm:$0x1]
          %vm754 = vcmask 261120
          %v755 = vsel %vm754, %v751, 0.0
          %756 = vadd.xlane.f32.xlu0 %v755
          %v757 = vpop.xlane.xlu0 %756
          %v758 = vrcp.pop 32.0
          %v759 = vmul.f32 %v757, %v758
          %v760 = vsub.f32 %v751, %v759
          %v761 = vmul.f32 %v760, %v760
          %v762 = vsel %vm754, %v761, 0.0
          %763 = vadd.xlane.f32.xlu0 %v762
          %v764 = vpop.xlane.xlu0 %763
          %v765 = vmul.f32 %v764, %v758
          %v766 = vadd.f32 %v765, 1e-05
          %v767 = vrsqrt.pop %v766
          %v768 = vmul.f32 %v760, %v767
          %v770 = vlaneseq
          %v771 = vshrl.u32 %v770, 7
          %v772 = vsub.s32 0, %v771
          %v773 = vrot.slane %v752, %v772
          %v775 = vmul.f32 %v768, %v773
          %v777 = vlaneseq
          %v778 = vshrl.u32 %v777, 7
          %v779 = vsub.s32 0, %v778
          %v780 = vrot.slane %v753, %v779
          %v782 = vadd.f32 %v775, %v780
          %783 = vst.msk [vmem:[#allocation2] sm:$0xff] %vm754, %v782
        $region92: #{tpu_custom_call.1} parent=79 // pred_fallthru
          _
        %v784 = vld [vmem:[#allocation2] sm:$0xff]
        %v785 = vld [vmem:[%s605] sm:$0x1]
        %v786 = vld [vmem:[%s703] sm:$0x1]
        %vm787 = vcmask 261120
        %v788 = vsel %vm787, %v784, 0.0
        %789 = vadd.xlane.f32.xlu0 %v788
        %v790 = vpop.xlane.xlu0 %789
        %v791 = vrcp.pop 32.0
        %v792 = vmul.f32 %v790, %v791
        %v793 = vsub.f32 %v784, %v792
        %v794 = vmul.f32 %v793, %v793
        %v795 = vsel %vm787, %v794, 0.0
        %796 = vadd.xlane.f32.xlu0 %v795
        %v797 = vpop.xlane.xlu0 %796
        %v798 = vmul.f32 %v797, %v791
        %v799 = vadd.f32 %v798, 1e-05
        %v800 = vrsqrt.pop %v799
        %v801 = vmul.f32 %v793, %v800
        %v803 = vlaneseq
        %v804 = vshrl.u32 %v803, 7
        %v805 = vsub.s32 0, %v804
        %v806 = vrot.slane %v785, %v805
        %v808 = vmul.f32 %v801, %v806
        %v810 = vlaneseq
        %v811 = vshrl.u32 %v810, 7
        %v812 = vsub.s32 0, %v811
        %v813 = vrot.slane %v786, %v812
        %v815 = vadd.f32 %v808, %v813
        %s816 = scalar_select %p747, 1, 0
        %v817 = vstv %s816
        %vm818 = vcmp.eq.s32.totalorder %v817, 1
        %v819 = vsel %vm818, %v784, %v815
        %v820 = vpack.c.bf16 %v819, %v819
        %v821 = vld [vmem:[%s708] sm:$0xf]
        %v823 = vsel %vm787, %v820, 0
        %v826 = vsel %vm787, %v821, 0
        %828 = vmatprep.subr.bf16.mxu0 0
        %829 = vmatpush1.bf16.xpose.msra.mxu0 0
        %830 = vmatprep.subr.bf16.mxu0 0
        %831 = vmatpush1.bf16.xpose.msra.mxu0 0
        %832 = vmatprep.subr.bf16.mxu0 0
        %833 = vmatpush1.bf16.xpose.msra.mxu0 0
        %834 = vmatprep.subr.bf16.mxu0 0
        %835 = vmatpush1.bf16.xpose.msra.mxu0 0
        %836 = vmatprep.subr.bf16.mxu0 0
        %837 = vmatpush1.bf16.xpose.msra.mxu0 0
        %838 = vmatprep.subr.bf16.mxu0 0
        %839 = vmatpush1.bf16.xpose.msra.mxu0 0
        %840 = vmatprep.subr.bf16.mxu0 0
        %841 = vmatpush1.bf16.xpose.msra.mxu0 0
        %842 = vmatprep.subr.bf16.mxu0 0
        %843 = vmatpush1.bf16.xpose.msra.mxu0 %v826
        %844 = vmatprep.subr.bf16.mxu0 0
        %845 = vmatpush2.bf16.xpose.msra.mxu0 0
        %846 = vmatprep.subr.bf16.mxu0 0
        %847 = vmatpush2.bf16.xpose.msra.mxu0 0
        %848 = vmatprep.subr.bf16.mxu0 0
        %849 = vmatpush2.bf16.xpose.msra.mxu0 0
        %850 = vmatprep.subr.bf16.mxu0 0
        %851 = vmatpush2.bf16.xpose.msra.mxu0 0
        %852 = vmatprep.subr.bf16.mxu0 0
        %853 = vmatpush2.bf16.xpose.msra.mxu0 0
        %854 = vmatprep.subr.bf16.mxu0 0
        %855 = vmatpush2.bf16.xpose.msra.mxu0 0
        %856 = vmatprep.subr.bf16.mxu0 0
        %857 = vmatpush2.bf16.xpose.msra.mxu0 0
        %858 = vmatprep.subr.bf16.mxu0 0
        %859 = vmatpush2.bf16.xpose.msra.mxu0 0
        %860 = vmatprep.mubr.bf16.mxu0 0
        %861 = vmatmul.mubr.bf16.gmra.mxu0 %v823
        %v862 = vpop.f32.mrf.mxu0
        %v863 = vadd.f32 0.0, %v862
        %v864 = vpop.f32.mrf.mxu0
        %v865 = vpop.f32.mrf.mxu0
        %v866 = vpop.f32.mrf.mxu0
        %867 = vdwg.mxu0
        %v868 = vld [vmem:[%s713] sm:$0xf]
        %v870 = vsel %vm787, %v868, 0
        %872 = vmatprep.subr.bf16.mxu0 0
        %873 = vmatpush1.bf16.xpose.msra.mxu0 0
        %874 = vmatprep.subr.bf16.mxu0 0
        %875 = vmatpush1.bf16.xpose.msra.mxu0 0
        %876 = vmatprep.subr.bf16.mxu0 0
        %877 = vmatpush1.bf16.xpose.msra.mxu0 0
        %878 = vmatprep.subr.bf16.mxu0 0
        %879 = vmatpush1.bf16.xpose.msra.mxu0 0
        %880 = vmatprep.subr.bf16.mxu0 0
        %881 = vmatpush1.bf16.xpose.msra.mxu0 0
        %882 = vmatprep.subr.bf16.mxu0 0
        %883 = vmatpush1.bf16.xpose.msra.mxu0 0
        %884 = vmatprep.subr.bf16.mxu0 0
        %885 = vmatpush1.bf16.xpose.msra.mxu0 0
        %886 = vmatprep.subr.bf16.mxu0 0
        %887 = vmatpush1.bf16.xpose.msra.mxu0 %v870
        %888 = vmatprep.subr.bf16.mxu0 0
        %889 = vmatpush2.bf16.xpose.msra.mxu0 0
        %890 = vmatprep.subr.bf16.mxu0 0
        %891 = vmatpush2.bf16.xpose.msra.mxu0 0
        %892 = vmatprep.subr.bf16.mxu0 0
        %893 = vmatpush2.bf16.xpose.msra.mxu0 0
        %894 = vmatprep.subr.bf16.mxu0 0
        %895 = vmatpush2.bf16.xpose.msra.mxu0 0
        %896 = vmatprep.subr.bf16.mxu0 0
        %897 = vmatpush2.bf16.xpose.msra.mxu0 0
        %898 = vmatprep.subr.bf16.mxu0 0
        %899 = vmatpush2.bf16.xpose.msra.mxu0 0
        %900 = vmatprep.subr.bf16.mxu0 0
        %901 = vmatpush2.bf16.xpose.msra.mxu0 0
        %902 = vmatprep.subr.bf16.mxu0 0
        %903 = vmatpush2.bf16.xpose.msra.mxu0 0
        %904 = vmatprep.mubr.bf16.mxu0 0
        %905 = vmatmul.mubr.bf16.gmra.mxu0 %v823
        %v906 = vpop.f32.mrf.mxu0
        %v907 = vadd.f32 0.0, %v906
        %v908 = vpop.f32.mrf.mxu0
        %v909 = vpop.f32.mrf.mxu0
        %v910 = vpop.f32.mrf.mxu0
        %911 = vdwg.mxu0
        %v912 = vld [vmem:[%s718] sm:$0xf]
        %v914 = vsel %vm787, %v912, 0
        %916 = vmatprep.subr.bf16.mxu0 0
        %917 = vmatpush1.bf16.xpose.msra.mxu0 0
        %918 = vmatprep.subr.bf16.mxu0 0
        %919 = vmatpush1.bf16.xpose.msra.mxu0 0
        %920 = vmatprep.subr.bf16.mxu0 0
        %921 = vmatpush1.bf16.xpose.msra.mxu0 0
        %922 = vmatprep.subr.bf16.mxu0 0
        %923 = vmatpush1.bf16.xpose.msra.mxu0 0
        %924 = vmatprep.subr.bf16.mxu0 0
        %925 = vmatpush1.bf16.xpose.msra.mxu0 0
        %926 = vmatprep.subr.bf16.mxu0 0
        %927 = vmatpush1.bf16.xpose.msra.mxu0 0
        %928 = vmatprep.subr.bf16.mxu0 0
        %929 = vmatpush1.bf16.xpose.msra.mxu0 0
        %930 = vmatprep.subr.bf16.mxu0 0
        %931 = vmatpush1.bf16.xpose.msra.mxu0 %v914
        %932 = vmatprep.subr.bf16.mxu0 0
        %933 = vmatpush2.bf16.xpose.msra.mxu0 0
        %934 = vmatprep.subr.bf16.mxu0 0
        %935 = vmatpush2.bf16.xpose.msra.mxu0 0
        %936 = vmatprep.subr.bf16.mxu0 0
        %937 = vmatpush2.bf16.xpose.msra.mxu0 0
        %938 = vmatprep.subr.bf16.mxu0 0
        %939 = vmatpush2.bf16.xpose.msra.mxu0 0
        %940 = vmatprep.subr.bf16.mxu0 0
        %941 = vmatpush2.bf16.xpose.msra.mxu0 0
        %942 = vmatprep.subr.bf16.mxu0 0
        %943 = vmatpush2.bf16.xpose.msra.mxu0 0
        %944 = vmatprep.subr.bf16.mxu0 0
        %945 = vmatpush2.bf16.xpose.msra.mxu0 0
        %946 = vmatprep.subr.bf16.mxu0 0
        %947 = vmatpush2.bf16.xpose.msra.mxu0 0
        %948 = vmatprep.mubr.bf16.mxu0 0
        %949 = vmatmul.mubr.bf16.gmra.mxu0 %v823
        %v950 = vpop.f32.mrf.mxu0
        %v951 = vadd.f32 0.0, %v950
        %v952 = vpop.f32.mrf.mxu0
        %v953 = vpop.f32.mrf.mxu0
        %v954 = vpop.f32.mrf.mxu0
        %955 = vdwg.mxu0
        %v956 = vpack.c.bf16 %v863, %v863
        %v957 = vpack.c.bf16 %v907, %v907
        %v958 = vpack.c.bf16 %v951, %v951
        %vm959 = vcmask 64512
        %v961 = vsel %vm959, %v956, 0
        %v964 = vsel %vm959, %v957, 0
        %966 = vmatprep.subr.bf16.mxu0 0
        %967 = vmatpush1.bf16.xpose.msra.mxu0 0
        %968 = vmatprep.subr.bf16.mxu0 0
        %969 = vmatpush1.bf16.xpose.msra.mxu0 0
        %970 = vmatprep.subr.bf16.mxu0 0
        %971 = vmatpush1.bf16.xpose.msra.mxu0 0
        %972 = vmatprep.subr.bf16.mxu0 0
        %973 = vmatpush1.bf16.xpose.msra.mxu0 0
        %974 = vmatprep.subr.bf16.mxu0 0
        %975 = vmatpush1.bf16.xpose.msra.mxu0 0
        %976 = vmatprep.subr.bf16.mxu0 0
        %977 = vmatpush1.bf16.xpose.msra.mxu0 0
        %978 = vmatprep.subr.bf16.mxu0 0
        %979 = vmatpush1.bf16.xpose.msra.mxu0 0
        %980 = vmatprep.subr.bf16.mxu0 0
        %981 = vmatpush1.bf16.xpose.msra.mxu0 %v964
        %982 = vmatprep.subr.bf16.mxu0 0
        %983 = vmatpush2.bf16.xpose.msra.mxu0 0
        %984 = vmatprep.subr.bf16.mxu0 0
        %985 = vmatpush2.bf16.xpose.msra.mxu0 0
        %986 = vmatprep.subr.bf16.mxu0 0
        %987 = vmatpush2.bf16.xpose.msra.mxu0 0
        %988 = vmatprep.subr.bf16.mxu0 0
        %989 = vmatpush2.bf16.xpose.msra.mxu0 0
        %990 = vmatprep.subr.bf16.mxu0 0
        %991 = vmatpush2.bf16.xpose.msra.mxu0 0
        %992 = vmatprep.subr.bf16.mxu0 0
        %993 = vmatpush2.bf16.xpose.msra.mxu0 0
        %994 = vmatprep.subr.bf16.mxu0 0
        %995 = vmatpush2.bf16.xpose.msra.mxu0 0
        %996 = vmatprep.subr.bf16.mxu0 0
        %997 = vmatpush2.bf16.xpose.msra.mxu0 0
        %998 = vmatprep.mubr.bf16.mxu0 0
        %999 = vmatmul.mubr.bf16.gmra.mxu0 %v961
        %v1000 = vpop.f32.mrf.mxu0
        %v1001 = vadd.f32 0.0, %v1000
        %v1002 = vpop.f32.mrf.mxu0
        %v1003 = vpop.f32.mrf.mxu0
        %v1004 = vpop.f32.mrf.mxu0
        %1005 = vdwg.mxu0
        %v1006 = vsel %vm959, %v1001, -inf
        %1007 = vmax.xlane.f32.xlu0 %v1006
        %v1008 = vpop.xlane.xlu0 %1007
        %v1009 = vsub.f32 %v1001, %v1008
        %v1010 = vmul.f32 %v1009, 1.442695
        %v1011 = vpow.pop %v1010
        %v1012 = vsel %vm959, %v1011, 0.0
        %1013 = vadd.xlane.f32.xlu0 %v1012
        %v1014 = vpop.xlane.xlu0 %1013
        %v1015 = vrcp.pop %v1014
        %v1016 = vmul.f32 %v1011, %v1015
        %v1017 = vpack.c.bf16 %v1016, %v1016
        %v1019 = vsel %vm959, %v1017, 0
        %vm1021 = vcmask 1043456
        %v1023 = vsel %vm1021, %v958, 0
        %1025 = vmatprep.subr.bf16.mxu0 0
        %1026 = vmatpush1.bf16.msra.mxu0 0
        %1027 = vmatprep.subr.bf16.mxu0 0
        %1028 = vmatpush1.bf16.msra.mxu0 0
        %1029 = vmatprep.subr.bf16.mxu0 0
        %1030 = vmatpush1.bf16.msra.mxu0 0
        %1031 = vmatprep.subr.bf16.mxu0 0
        %1032 = vmatpush1.bf16.msra.mxu0 0
        %1033 = vmatprep.subr.bf16.mxu0 0
        %1034 = vmatpush1.bf16.msra.mxu0 0
        %1035 = vmatprep.subr.bf16.mxu0 0
        %1036 = vmatpush1.bf16.msra.mxu0 0
        %1037 = vmatprep.subr.bf16.mxu0 0
        %1038 = vmatpush1.bf16.msra.mxu0 0
        %1039 = vmatprep.subr.bf16.mxu0 0
        %1040 = vmatpush1.bf16.msra.mxu0 %v1023
        %1041 = vmatprep.subr.bf16.mxu0 0
        %1042 = vmatpush2.bf16.msra.mxu0 0
        %1043 = vmatprep.subr.bf16.mxu0 0
        %1044 = vmatpush2.bf16.msra.mxu0 0
        %1045 = vmatprep.subr.bf16.mxu0 0
        %1046 = vmatpush2.bf16.msra.mxu0 0
        %1047 = vmatprep.subr.bf16.mxu0 0
        %1048 = vmatpush2.bf16.msra.mxu0 0
        %1049 = vmatprep.subr.bf16.mxu0 0
        %1050 = vmatpush2.bf16.msra.mxu0 0
        %1051 = vmatprep.subr.bf16.mxu0 0
        %1052 = vmatpush2.bf16.msra.mxu0 0
        %1053 = vmatprep.subr.bf16.mxu0 0
        %1054 = vmatpush2.bf16.msra.mxu0 0
        %1055 = vmatprep.subr.bf16.mxu0 0
        %1056 = vmatpush2.bf16.msra.mxu0 0
        %1057 = vmatprep.mubr.bf16.mxu0 0
        %1058 = vmatmul.mubr.bf16.gmra.mxu0 %v1019
        %v1059 = vpop.f32.mrf.mxu0
        %v1060 = vadd.f32 0.0, %v1059
        %v1061 = vpop.f32.mrf.mxu0
        %v1062 = vpop.f32.mrf.mxu0
        %v1063 = vpop.f32.mrf.mxu0
        %1064 = vdwg.mxu0
        %v1065 = vpack.c.bf16 %v1060, %v1060
        %v1066 = vld [vmem:[%s723] sm:$0xf]
        %v1067 = vld [vmem:[%s708 + $0x4] sm:$0xf]
        %v1069 = vsel %vm787, %v1067, 0
        %1071 = vmatprep.subr.bf16.mxu0 0
        %1072 = vmatpush1.bf16.xpose.msra.mxu0 0
        %1073 = vmatprep.subr.bf16.mxu0 0
        %1074 = vmatpush1.bf16.xpose.msra.mxu0 0
        %1075 = vmatprep.subr.bf16.mxu0 0
        %1076 = vmatpush1.bf16.xpose.msra.mxu0 0
        %1077 = vmatprep.subr.bf16.mxu0 0
        %1078 = vmatpush1.bf16.xpose.msra.mxu0 0
        %1079 = vmatprep.subr.bf16.mxu0 0
        %1080 = vmatpush1.bf16.xpose.msra.mxu0 0
        %1081 = vmatprep.subr.bf16.mxu0 0
        %1082 = vmatpush1.bf16.xpose.msra.mxu0 0
        %1083 = vmatprep.subr.bf16.mxu0 0
        %1084 = vmatpush1.bf16.xpose.msra.mxu0 0
        %1085 = vmatprep.subr.bf16.mxu0 0
        %1086 = vmatpush1.bf16.xpose.msra.mxu0 %v1069
        %1087 = vmatprep.subr.bf16.mxu0 0
        %1088 = vmatpush2.bf16.xpose.msra.mxu0 0
        %1089 = vmatprep.subr.bf16.mxu0 0
        %1090 = vmatpush2.bf16.xpose.msra.mxu0 0
        %1091 = vmatprep.subr.bf16.mxu0 0
        %1092 = vmatpush2.bf16.xpose.msra.mxu0 0
        %1093 = vmatprep.subr.bf16.mxu0 0
        %1094 = vmatpush2.bf16.xpose.msra.mxu0 0
        %1095 = vmatprep.subr.bf16.mxu0 0
        %1096 = vmatpush2.bf16.xpose.msra.mxu0 0
        %1097 = vmatprep.subr.bf16.mxu0 0
        %1098 = vmatpush2.bf16.xpose.msra.mxu0 0
        %1099 = vmatprep.subr.bf16.mxu0 0
        %1100 = vmatpush2.bf16.xpose.msra.mxu0 0
        %1101 = vmatprep.subr.bf16.mxu0 0
        %1102 = vmatpush2.bf16.xpose.msra.mxu0 0
        %1103 = vmatprep.mubr.bf16.mxu0 0
        %1104 = vmatmul.mubr.bf16.gmra.mxu0 %v823
        %v1105 = vpop.f32.mrf.mxu0
        %v1106 = vadd.f32 0.0, %v1105
        %v1107 = vpop.f32.mrf.mxu0
        %v1108 = vpop.f32.mrf.mxu0
        %v1109 = vpop.f32.mrf.mxu0
        %1110 = vdwg.mxu0
        %v1111 = vld [vmem:[%s713 + $0x4] sm:$0xf]
        %v1113 = vsel %vm787, %v1111, 0
        %1115 = vmatprep.subr.bf16.mxu0 0
        %1116 = vmatpush1.bf16.xpose.msra.mxu0 0
        %1117 = vmatprep.subr.bf16.mxu0 0
        %1118 = vmatpush1.bf16.xpose.msra.mxu0 0
        %1119 = vmatprep.subr.bf16.mxu0 0
        %1120 = vmatpush1.bf16.xpose.msra.mxu0 0
        %1121 = vmatprep.subr.bf16.mxu0 0
        %1122 = vmatpush1.bf16.xpose.msra.mxu0 0
        %1123 = vmatprep.subr.bf16.mxu0 0
        %1124 = vmatpush1.bf16.xpose.msra.mxu0 0
        %1125 = vmatprep.subr.bf16.mxu0 0
        %1126 = vmatpush1.bf16.xpose.msra.mxu0 0
        %1127 = vmatprep.subr.bf16.mxu0 0
        %1128 = vmatpush1.bf16.xpose.msra.mxu0 0
        %1129 = vmatprep.subr.bf16.mxu0 0
        %1130 = vmatpush1.bf16.xpose.msra.mxu0 %v1113
        %1131 = vmatprep.subr.bf16.mxu0 0
        %1132 = vmatpush2.bf16.xpose.msra.mxu0 0
        %1133 = vmatprep.subr.bf16.mxu0 0
        %1134 = vmatpush2.bf16.xpose.msra.mxu0 0
        %1135 = vmatprep.subr.bf16.mxu0 0
        %1136 = vmatpush2.bf16.xpose.msra.mxu0 0
        %1137 = vmatprep.subr.bf16.mxu0 0
        %1138 = vmatpush2.bf16.xpose.msra.mxu0 0
        %1139 = vmatprep.subr.bf16.mxu0 0
        %1140 = vmatpush2.bf16.xpose.msra.mxu0 0
        %1141 = vmatprep.subr.bf16.mxu0 0
        %1142 = vmatpush2.bf16.xpose.msra.mxu0 0
        %1143 = vmatprep.subr.bf16.mxu0 0
        %1144 = vmatpush2.bf16.xpose.msra.mxu0 0
        %1145 = vmatprep.subr.bf16.mxu0 0
        %1146 = vmatpush2.bf16.xpose.msra.mxu0 0
        %1147 = vmatprep.mubr.bf16.mxu0 0
        %1148 = vmatmul.mubr.bf16.gmra.mxu0 %v823
        %v1149 = vpop.f32.mrf.mxu0
        %v1150 = vadd.f32 0.0, %v1149
        %v1151 = vpop.f32.mrf.mxu0
        %v1152 = vpop.f32.mrf.mxu0
        %v1153 = vpop.f32.mrf.mxu0
        %1154 = vdwg.mxu0
        %v1155 = vld [vmem:[%s718 + $0x4] sm:$0xf]
        %v1157 = vsel %vm787, %v1155, 0
        %1159 = vmatprep.subr.bf16.mxu0 0
        %1160 = vmatpush1.bf16.xpose.msra.mxu0 0
        %1161 = vmatprep.subr.bf16.mxu0 0
        %1162 = vmatpush1.bf16.xpose.msra.mxu0 0
        %1163 = vmatprep.subr.bf16.mxu0 0
        %1164 = vmatpush1.bf16.xpose.msra.mxu0 0
        %1165 = vmatprep.subr.bf16.mxu0 0
        %1166 = vmatpush1.bf16.xpose.msra.mxu0 0
        %1167 = vmatprep.subr.bf16.mxu0 0
        %1168 = vmatpush1.bf16.xpose.msra.mxu0 0
        %1169 = vmatprep.subr.bf16.mxu0 0
        %1170 = vmatpush1.bf16.xpose.msra.mxu0 0
        %1171 = vmatprep.subr.bf16.mxu0 0
        %1172 = vmatpush1.bf16.xpose.msra.mxu0 0
        %1173 = vmatprep.subr.bf16.mxu0 0
        %1174 = vmatpush1.bf16.xpose.msra.mxu0 %v1157
        %1175 = vmatprep.subr.bf16.mxu0 0
        %1176 = vmatpush2.bf16.xpose.msra.mxu0 0
        %1177 = vmatprep.subr.bf16.mxu0 0
        %1178 = vmatpush2.bf16.xpose.msra.mxu0 0
        %1179 = vmatprep.subr.bf16.mxu0 0
        %1180 = vmatpush2.bf16.xpose.msra.mxu0 0
        %1181 = vmatprep.subr.bf16.mxu0 0
        %1182 = vmatpush2.bf16.xpose.msra.mxu0 0
        %1183 = vmatprep.subr.bf16.mxu0 0
        %1184 = vmatpush2.bf16.xpose.msra.mxu0 0
        %1185 = vmatprep.subr.bf16.mxu0 0
        %1186 = vmatpush2.bf16.xpose.msra.mxu0 0
        %1187 = vmatprep.subr.bf16.mxu0 0
        %1188 = vmatpush2.bf16.xpose.msra.mxu0 0
        %1189 = vmatprep.subr.bf16.mxu0 0
        %1190 = vmatpush2.bf16.xpose.msra.mxu0 0
        %1191 = vmatprep.mubr.bf16.mxu0 0
        %1192 = vmatmul.mubr.bf16.gmra.mxu0 %v823
        %v1193 = vpop.f32.mrf.mxu0
        %v1194 = vadd.f32 0.0, %v1193
        %v1195 = vpop.f32.mrf.mxu0
        %v1196 = vpop.f32.mrf.mxu0
        %v1197 = vpop.f32.mrf.mxu0
        %1198 = vdwg.mxu0
        %v1199 = vpack.c.bf16 %v1106, %v1106
        %v1200 = vpack.c.bf16 %v1150, %v1150
        %v1201 = vpack.c.bf16 %v1194, %v1194
        %v1203 = vsel %vm959, %v1199, 0
        %v1206 = vsel %vm959, %v1200, 0
        %1208 = vmatprep.subr.bf16.mxu0 0
        %1209 = vmatpush1.bf16.xpose.msra.mxu0 0
        %1210 = vmatprep.subr.bf16.mxu0 0
        %1211 = vmatpush1.bf16.xpose.msra.mxu0 0
        %1212 = vmatprep.subr.bf16.mxu0 0
        %1213 = vmatpush1.bf16.xpose.msra.mxu0 0
        %1214 = vmatprep.subr.bf16.mxu0 0
        %1215 = vmatpush1.bf16.xpose.msra.mxu0 0
        %1216 = vmatprep.subr.bf16.mxu0 0
        %1217 = vmatpush1.bf16.xpose.msra.mxu0 0
        %1218 = vmatprep.subr.bf16.mxu0 0
        %1219 = vmatpush1.bf16.xpose.msra.mxu0 0
        %1220 = vmatprep.subr.bf16.mxu0 0
        %1221 = vmatpush1.bf16.xpose.msra.mxu0 0
        %1222 = vmatprep.subr.bf16.mxu0 0
        %1223 = vmatpush1.bf16.xpose.msra.mxu0 %v1206
        %1224 = vmatprep.subr.bf16.mxu0 0
        %1225 = vmatpush2.bf16.xpose.msra.mxu0 0
        %1226 = vmatprep.subr.bf16.mxu0 0
        %1227 = vmatpush2.bf16.xpose.msra.mxu0 0
        %1228 = vmatprep.subr.bf16.mxu0 0
        %1229 = vmatpush2.bf16.xpose.msra.mxu0 0
        %1230 = vmatprep.subr.bf16.mxu0 0
        %1231 = vmatpush2.bf16.xpose.msra.mxu0 0
        %1232 = vmatprep.subr.bf16.mxu0 0
        %1233 = vmatpush2.bf16.xpose.msra.mxu0 0
        %1234 = vmatprep.subr.bf16.mxu0 0
        %1235 = vmatpush2.bf16.xpose.msra.mxu0 0
        %1236 = vmatprep.subr.bf16.mxu0 0
        %1237 = vmatpush2.bf16.xpose.msra.mxu0 0
        %1238 = vmatprep.subr.bf16.mxu0 0
        %1239 = vmatpush2.bf16.xpose.msra.mxu0 0
        %1240 = vmatprep.mubr.bf16.mxu0 0
        %1241 = vmatmul.mubr.bf16.gmra.mxu0 %v1203
        %v1242 = vpop.f32.mrf.mxu0
        %v1243 = vadd.f32 0.0, %v1242
        %v1244 = vpop.f32.mrf.mxu0
        %v1245 = vpop.f32.mrf.mxu0
        %v1246 = vpop.f32.mrf.mxu0
        %1247 = vdwg.mxu0
        %v1248 = vsel %vm959, %v1243, -inf
        %1249 = vmax.xlane.f32.xlu0 %v1248
        %v1250 = vpop.xlane.xlu0 %1249
        %v1251 = vsub.f32 %v1243, %v1250
        %v1252 = vmul.f32 %v1251, 1.442695
        %v1253 = vpow.pop %v1252
        %v1254 = vsel %vm959, %v1253, 0.0
        %1255 = vadd.xlane.f32.xlu0 %v1254
        %v1256 = vpop.xlane.xlu0 %1255
        %v1257 = vrcp.pop %v1256
        %v1258 = vmul.f32 %v1253, %v1257
        %v1259 = vpack.c.bf16 %v1258, %v1258
        %v1261 = vsel %vm959, %v1259, 0
        %v1264 = vsel %vm1021, %v1201, 0
        %1266 = vmatprep.subr.bf16.mxu0 0
        %1267 = vmatpush1.bf16.msra.mxu0 0
        %1268 = vmatprep.subr.bf16.mxu0 0
        %1269 = vmatpush1.bf16.msra.mxu0 0
        %1270 = vmatprep.subr.bf16.mxu0 0
        %1271 = vmatpush1.bf16.msra.mxu0 0
        %1272 = vmatprep.subr.bf16.mxu0 0
        %1273 = vmatpush1.bf16.msra.mxu0 0
        %1274 = vmatprep.subr.bf16.mxu0 0
        %1275 = vmatpush1.bf16.msra.mxu0 0
        %1276 = vmatprep.subr.bf16.mxu0 0
        %1277 = vmatpush1.bf16.msra.mxu0 0
        %1278 = vmatprep.subr.bf16.mxu0 0
        %1279 = vmatpush1.bf16.msra.mxu0 0
        %1280 = vmatprep.subr.bf16.mxu0 0
        %1281 = vmatpush1.bf16.msra.mxu0 %v1264
        %1282 = vmatprep.subr.bf16.mxu0 0
        %1283 = vmatpush2.bf16.msra.mxu0 0
        %1284 = vmatprep.subr.bf16.mxu0 0
        %1285 = vmatpush2.bf16.msra.mxu0 0
        %1286 = vmatprep.subr.bf16.mxu0 0
        %1287 = vmatpush2.bf16.msra.mxu0 0
        %1288 = vmatprep.subr.bf16.mxu0 0
        %1289 = vmatpush2.bf16.msra.mxu0 0
        %1290 = vmatprep.subr.bf16.mxu0 0
        %1291 = vmatpush2.bf16.msra.mxu0 0
        %1292 = vmatprep.subr.bf16.mxu0 0
        %1293 = vmatpush2.bf16.msra.mxu0 0
        %1294 = vmatprep.subr.bf16.mxu0 0
        %1295 = vmatpush2.bf16.msra.mxu0 0
        %1296 = vmatprep.subr.bf16.mxu0 0
        %1297 = vmatpush2.bf16.msra.mxu0 0
        %1298 = vmatprep.mubr.bf16.mxu0 0
        %1299 = vmatmul.mubr.bf16.gmra.mxu0 %v1261
        %v1300 = vpop.f32.mrf.mxu0
        %v1301 = vadd.f32 0.0, %v1300
        %v1302 = vpop.f32.mrf.mxu0
        %v1303 = vpop.f32.mrf.mxu0
        %v1304 = vpop.f32.mrf.mxu0
        %1305 = vdwg.mxu0
        %v1306 = vpack.c.bf16 %v1301, %v1301
        %v1307 = vld [vmem:[%s723 + $0x4] sm:$0xf]
        %v1309 = vsel %vm959, %v1306, 0
        %v1312 = vsel %vm1021, %v1307, 0
        %1314 = vmatprep.subr.bf16.mxu0 0
        %1315 = vmatpush1.bf16.msra.mxu0 0
        %1316 = vmatprep.subr.bf16.mxu0 0
        %1317 = vmatpush1.bf16.msra.mxu0 0
        %1318 = vmatprep.subr.bf16.mxu0 0
        %1319 = vmatpush1.bf16.msra.mxu0 0
        %1320 = vmatprep.subr.bf16.mxu0 0
        %1321 = vmatpush1.bf16.msra.mxu0 0
        %1322 = vmatprep.subr.bf16.mxu0 0
        %1323 = vmatpush1.bf16.msra.mxu0 0
        %1324 = vmatprep.subr.bf16.mxu0 0
        %1325 = vmatpush1.bf16.msra.mxu0 0
        %1326 = vmatprep.subr.bf16.mxu0 0
        %1327 = vmatpush1.bf16.msra.mxu0 0
        %1328 = vmatprep.subr.bf16.mxu0 0
        %1329 = vmatpush1.bf16.msra.mxu0 %v1312
        %1330 = vmatprep.subr.bf16.mxu0 0
        %1331 = vmatpush2.bf16.msra.mxu0 0
        %1332 = vmatprep.subr.bf16.mxu0 0
        %1333 = vmatpush2.bf16.msra.mxu0 0
        %1334 = vmatprep.subr.bf16.mxu0 0
        %1335 = vmatpush2.bf16.msra.mxu0 0
        %1336 = vmatprep.subr.bf16.mxu0 0
        %1337 = vmatpush2.bf16.msra.mxu0 0
        %1338 = vmatprep.subr.bf16.mxu0 0
        %1339 = vmatpush2.bf16.msra.mxu0 0
        %1340 = vmatprep.subr.bf16.mxu0 0
        %1341 = vmatpush2.bf16.msra.mxu0 0
        %1342 = vmatprep.subr.bf16.mxu0 0
        %1343 = vmatpush2.bf16.msra.mxu0 0
        %1344 = vmatprep.subr.bf16.mxu0 0
        %1345 = vmatpush2.bf16.msra.mxu0 0
        %1346 = vmatprep.mubr.bf16.mxu0 0
        %1347 = vmatmul.mubr.bf16.gmra.mxu0 %v1309
        %v1348 = vpop.f32.mrf.mxu0
        %v1349 = vadd.f32 0.0, %v1348
        %v1350 = vpop.f32.mrf.mxu0
        %v1351 = vpop.f32.mrf.mxu0
        %v1352 = vpop.f32.mrf.mxu0
        %1353 = vdwg.mxu0
        %v1355 = vsel %vm959, %v1065, 0
        %v1358 = vsel %vm1021, %v1066, 0
        %1360 = vmatprep.subr.bf16.mxu0 0
        %1361 = vmatpush1.bf16.msra.mxu0 0
        %1362 = vmatprep.subr.bf16.mxu0 0
        %1363 = vmatpush1.bf16.msra.mxu0 0
        %1364 = vmatprep.subr.bf16.mxu0 0
        %1365 = vmatpush1.bf16.msra.mxu0 0
        %1366 = vmatprep.subr.bf16.mxu0 0
        %1367 = vmatpush1.bf16.msra.mxu0 0
        %1368 = vmatprep.subr.bf16.mxu0 0
        %1369 = vmatpush1.bf16.msra.mxu0 0
        %1370 = vmatprep.subr.bf16.mxu0 0
        %1371 = vmatpush1.bf16.msra.mxu0 0
        %1372 = vmatprep.subr.bf16.mxu0 0
        %1373 = vmatpush1.bf16.msra.mxu0 0
        %1374 = vmatprep.subr.bf16.mxu0 0
        %1375 = vmatpush1.bf16.msra.mxu0 %v1358
        %1376 = vmatprep.subr.bf16.mxu0 0
        %1377 = vmatpush2.bf16.msra.mxu0 0
        %1378 = vmatprep.subr.bf16.mxu0 0
        %1379 = vmatpush2.bf16.msra.mxu0 0
        %1380 = vmatprep.subr.bf16.mxu0 0
        %1381 = vmatpush2.bf16.msra.mxu0 0
        %1382 = vmatprep.subr.bf16.mxu0 0
        %1383 = vmatpush2.bf16.msra.mxu0 0
        %1384 = vmatprep.subr.bf16.mxu0 0
        %1385 = vmatpush2.bf16.msra.mxu0 0
        %1386 = vmatprep.subr.bf16.mxu0 0
        %1387 = vmatpush2.bf16.msra.mxu0 0
        %1388 = vmatprep.subr.bf16.mxu0 0
        %1389 = vmatpush2.bf16.msra.mxu0 0
        %1390 = vmatprep.subr.bf16.mxu0 0
        %1391 = vmatpush2.bf16.msra.mxu0 0
        %1392 = vmatprep.mubr.bf16.mxu0 0
        %1393 = vmatmul.mubr.bf16.gmra.mxu0 %v1355
        %v1394 = vpop.f32.mrf.mxu0
        %v1395 = vadd.f32 %v1349, %v1394
        %v1396 = vpop.f32.mrf.mxu0
        %v1397 = vpop.f32.mrf.mxu0
        %v1398 = vpop.f32.mrf.mxu0
        %1399 = vdwg.mxu0
        %v1400 = vld [vmem:[%s708 + $0x8] sm:$0xf]
        %v1402 = vsel %vm787, %v1400, 0
        %1404 = vmatprep.subr.bf16.mxu0 0
        %1405 = vmatpush1.bf16.xpose.msra.mxu0 0
        %1406 = vmatprep.subr.bf16.mxu0 0
        %1407 = vmatpush1.bf16.xpose.msra.mxu0 0
        %1408 = vmatprep.subr.bf16.mxu0 0
        %1409 = vmatpush1.bf16.xpose.msra.mxu0 0
        %1410 = vmatprep.subr.bf16.mxu0 0
        %1411 = vmatpush1.bf16.xpose.msra.mxu0 0
        %1412 = vmatprep.subr.bf16.mxu0 0
        %1413 = vmatpush1.bf16.xpose.msra.mxu0 0
        %1414 = vmatprep.subr.bf16.mxu0 0
        %1415 = vmatpush1.bf16.xpose.msra.mxu0 0
        %1416 = vmatprep.subr.bf16.mxu0 0
        %1417 = vmatpush1.bf16.xpose.msra.mxu0 0
        %1418 = vmatprep.subr.bf16.mxu0 0
        %1419 = vmatpush1.bf16.xpose.msra.mxu0 %v1402
        %1420 = vmatprep.subr.bf16.mxu0 0
        %1421 = vmatpush2.bf16.xpose.msra.mxu0 0
        %1422 = vmatprep.subr.bf16.mxu0 0
        %1423 = vmatpush2.bf16.xpose.msra.mxu0 0
        %1424 = vmatprep.subr.bf16.mxu0 0
        %1425 = vmatpush2.bf16.xpose.msra.mxu0 0
        %1426 = vmatprep.subr.bf16.mxu0 0
        %1427 = vmatpush2.bf16.xpose.msra.mxu0 0
        %1428 = vmatprep.subr.bf16.mxu0 0
        %1429 = vmatpush2.bf16.xpose.msra.mxu0 0
        %1430 = vmatprep.subr.bf16.mxu0 0
        %1431 = vmatpush2.bf16.xpose.msra.mxu0 0
        %1432 = vmatprep.subr.bf16.mxu0 0
        %1433 = vmatpush2.bf16.xpose.msra.mxu0 0
        %1434 = vmatprep.subr.bf16.mxu0 0
        %1435 = vmatpush2.bf16.xpose.msra.mxu0 0
        %1436 = vmatprep.mubr.bf16.mxu0 0
        %1437 = vmatmul.mubr.bf16.gmra.mxu0 %v823
        %v1438 = vpop.f32.mrf.mxu0
        %v1439 = vadd.f32 0.0, %v1438
        %v1440 = vpop.f32.mrf.mxu0
        %v1441 = vpop.f32.mrf.mxu0
        %v1442 = vpop.f32.mrf.mxu0
        %1443 = vdwg.mxu0
        %v1444 = vld [vmem:[%s713 + $0x8] sm:$0xf]
        %v1446 = vsel %vm787, %v1444, 0
        %1448 = vmatprep.subr.bf16.mxu0 0
        %1449 = vmatpush1.bf16.xpose.msra.mxu0 0
        %1450 = vmatprep.subr.bf16.mxu0 0
        %1451 = vmatpush1.bf16.xpose.msra.mxu0 0
        %1452 = vmatprep.subr.bf16.mxu0 0
        %1453 = vmatpush1.bf16.xpose.msra.mxu0 0
        %1454 = vmatprep.subr.bf16.mxu0 0
        %1455 = vmatpush1.bf16.xpose.msra.mxu0 0
        %1456 = vmatprep.subr.bf16.mxu0 0
        %1457 = vmatpush1.bf16.xpose.msra.mxu0 0
        %1458 = vmatprep.subr.bf16.mxu0 0
        %1459 = vmatpush1.bf16.xpose.msra.mxu0 0
        %1460 = vmatprep.subr.bf16.mxu0 0
        %1461 = vmatpush1.bf16.xpose.msra.mxu0 0
        %1462 = vmatprep.subr.bf16.mxu0 0
        %1463 = vmatpush1.bf16.xpose.msra.mxu0 %v1446
        %1464 = vmatprep.subr.bf16.mxu0 0
        %1465 = vmatpush2.bf16.xpose.msra.mxu0 0
        %1466 = vmatprep.subr.bf16.mxu0 0
        %1467 = vmatpush2.bf16.xpose.msra.mxu0 0
        %1468 = vmatprep.subr.bf16.mxu0 0
        %1469 = vmatpush2.bf16.xpose.msra.mxu0 0
        %1470 = vmatprep.subr.bf16.mxu0 0
        %1471 = vmatpush2.bf16.xpose.msra.mxu0 0
        %1472 = vmatprep.subr.bf16.mxu0 0
        %1473 = vmatpush2.bf16.xpose.msra.mxu0 0
        %1474 = vmatprep.subr.bf16.mxu0 0
        %1475 = vmatpush2.bf16.xpose.msra.mxu0 0
        %1476 = vmatprep.subr.bf16.mxu0 0
        %1477 = vmatpush2.bf16.xpose.msra.mxu0 0
        %1478 = vmatprep.subr.bf16.mxu0 0
        %1479 = vmatpush2.bf16.xpose.msra.mxu0 0
        %1480 = vmatprep.mubr.bf16.mxu0 0
        %1481 = vmatmul.mubr.bf16.gmra.mxu0 %v823
        %v1482 = vpop.f32.mrf.mxu0
        %v1483 = vadd.f32 0.0, %v1482
        %v1484 = vpop.f32.mrf.mxu0
        %v1485 = vpop.f32.mrf.mxu0
        %v1486 = vpop.f32.mrf.mxu0
        %1487 = vdwg.mxu0
        %v1488 = vld [vmem:[%s718 + $0x8] sm:$0xf]
        %v1490 = vsel %vm787, %v1488, 0
        %1492 = vmatprep.subr.bf16.mxu0 0
        %1493 = vmatpush1.bf16.xpose.msra.mxu0 0
        %1494 = vmatprep.subr.bf16.mxu0 0
        %1495 = vmatpush1.bf16.xpose.msra.mxu0 0
        %1496 = vmatprep.subr.bf16.mxu0 0
        %1497 = vmatpush1.bf16.xpose.msra.mxu0 0
        %1498 = vmatprep.subr.bf16.mxu0 0
        %1499 = vmatpush1.bf16.xpose.msra.mxu0 0
        %1500 = vmatprep.subr.bf16.mxu0 0
        %1501 = vmatpush1.bf16.xpose.msra.mxu0 0
        %1502 = vmatprep.subr.bf16.mxu0 0
        %1503 = vmatpush1.bf16.xpose.msra.mxu0 0
        %1504 = vmatprep.subr.bf16.mxu0 0
        %1505 = vmatpush1.bf16.xpose.msra.mxu0 0
        %1506 = vmatprep.subr.bf16.mxu0 0
        %1507 = vmatpush1.bf16.xpose.msra.mxu0 %v1490
        %1508 = vmatprep.subr.bf16.mxu0 0
        %1509 = vmatpush2.bf16.xpose.msra.mxu0 0
        %1510 = vmatprep.subr.bf16.mxu0 0
        %1511 = vmatpush2.bf16.xpose.msra.mxu0 0
        %1512 = vmatprep.subr.bf16.mxu0 0
        %1513 = vmatpush2.bf16.xpose.msra.mxu0 0
        %1514 = vmatprep.subr.bf16.mxu0 0
        %1515 = vmatpush2.bf16.xpose.msra.mxu0 0
        %1516 = vmatprep.subr.bf16.mxu0 0
        %1517 = vmatpush2.bf16.xpose.msra.mxu0 0
        %1518 = vmatprep.subr.bf16.mxu0 0
        %1519 = vmatpush2.bf16.xpose.msra.mxu0 0
        %1520 = vmatprep.subr.bf16.mxu0 0
        %1521 = vmatpush2.bf16.xpose.msra.mxu0 0
        %1522 = vmatprep.subr.bf16.mxu0 0
        %1523 = vmatpush2.bf16.xpose.msra.mxu0 0
        %1524 = vmatprep.mubr.bf16.mxu0 0
        %1525 = vmatmul.mubr.bf16.gmra.mxu0 %v823
        %v1526 = vpop.f32.mrf.mxu0
        %v1527 = vadd.f32 0.0, %v1526
        %v1528 = vpop.f32.mrf.mxu0
        %v1529 = vpop.f32.mrf.mxu0
        %v1530 = vpop.f32.mrf.mxu0
        %1531 = vdwg.mxu0
        %v1532 = vpack.c.bf16 %v1439, %v1439
        %v1533 = vpack.c.bf16 %v1483, %v1483
        %v1534 = vpack.c.bf16 %v1527, %v1527
        %v1536 = vsel %vm959, %v1532, 0
        %v1539 = vsel %vm959, %v1533, 0
        %1541 = vmatprep.subr.bf16.mxu0 0
        %1542 = vmatpush1.bf16.xpose.msra.mxu0 0
        %1543 = vmatprep.subr.bf16.mxu0 0
        %1544 = vmatpush1.bf16.xpose.msra.mxu0 0
        %1545 = vmatprep.subr.bf16.mxu0 0
        %1546 = vmatpush1.bf16.xpose.msra.mxu0 0
        %1547 = vmatprep.subr.bf16.mxu0 0
        %1548 = vmatpush1.bf16.xpose.msra.mxu0 0
        %1549 = vmatprep.subr.bf16.mxu0 0
        %1550 = vmatpush1.bf16.xpose.msra.mxu0 0
        %1551 = vmatprep.subr.bf16.mxu0 0
        %1552 = vmatpush1.bf16.xpose.msra.mxu0 0
        %1553 = vmatprep.subr.bf16.mxu0 0
        %1554 = vmatpush1.bf16.xpose.msra.mxu0 0
        %1555 = vmatprep.subr.bf16.mxu0 0
        %1556 = vmatpush1.bf16.xpose.msra.mxu0 %v1539
        %1557 = vmatprep.subr.bf16.mxu0 0
        %1558 = vmatpush2.bf16.xpose.msra.mxu0 0
        %1559 = vmatprep.subr.bf16.mxu0 0
        %1560 = vmatpush2.bf16.xpose.msra.mxu0 0
        %1561 = vmatprep.subr.bf16.mxu0 0
        %1562 = vmatpush2.bf16.xpose.msra.mxu0 0
        %1563 = vmatprep.subr.bf16.mxu0 0
        %1564 = vmatpush2.bf16.xpose.msra.mxu0 0
        %1565 = vmatprep.subr.bf16.mxu0 0
        %1566 = vmatpush2.bf16.xpose.msra.mxu0 0
        %1567 = vmatprep.subr.bf16.mxu0 0
        %1568 = vmatpush2.bf16.xpose.msra.mxu0 0
        %1569 = vmatprep.subr.bf16.mxu0 0
        %1570 = vmatpush2.bf16.xpose.msra.mxu0 0
        %1571 = vmatprep.subr.bf16.mxu0 0
        %1572 = vmatpush2.bf16.xpose.msra.mxu0 0
        %1573 = vmatprep.mubr.bf16.mxu0 0
        %1574 = vmatmul.mubr.bf16.gmra.mxu0 %v1536
        %v1575 = vpop.f32.mrf.mxu0
        %v1576 = vadd.f32 0.0, %v1575
        %v1577 = vpop.f32.mrf.mxu0
        %v1578 = vpop.f32.mrf.mxu0
        %v1579 = vpop.f32.mrf.mxu0
        %1580 = vdwg.mxu0
        %v1581 = vsel %vm959, %v1576, -inf
        %1582 = vmax.xlane.f32.xlu0 %v1581
        %v1583 = vpop.xlane.xlu0 %1582
        %v1584 = vsub.f32 %v1576, %v1583
        %v1585 = vmul.f32 %v1584, 1.442695
        %v1586 = vpow.pop %v1585
        %v1587 = vsel %vm959, %v1586, 0.0
        %1588 = vadd.xlane.f32.xlu0 %v1587
        %v1589 = vpop.xlane.xlu0 %1588
        %v1590 = vrcp.pop %v1589
        %v1591 = vmul.f32 %v1586, %v1590
        %v1592 = vpack.c.bf16 %v1591, %v1591
        %v1594 = vsel %vm959, %v1592, 0
        %v1597 = vsel %vm1021, %v1534, 0
        %1599 = vmatprep.subr.bf16.mxu0 0
        %1600 = vmatpush1.bf16.msra.mxu0 0
        %1601 = vmatprep.subr.bf16.mxu0 0
        %1602 = vmatpush1.bf16.msra.mxu0 0
        %1603 = vmatprep.subr.bf16.mxu0 0
        %1604 = vmatpush1.bf16.msra.mxu0 0
        %1605 = vmatprep.subr.bf16.mxu0 0
        %1606 = vmatpush1.bf16.msra.mxu0 0
        %1607 = vmatprep.subr.bf16.mxu0 0
        %1608 = vmatpush1.bf16.msra.mxu0 0
        %1609 = vmatprep.subr.bf16.mxu0 0
        %1610 = vmatpush1.bf16.msra.mxu0 0
        %1611 = vmatprep.subr.bf16.mxu0 0
        %1612 = vmatpush1.bf16.msra.mxu0 0
        %1613 = vmatprep.subr.bf16.mxu0 0
        %1614 = vmatpush1.bf16.msra.mxu0 %v1597
        %1615 = vmatprep.subr.bf16.mxu0 0
        %1616 = vmatpush2.bf16.msra.mxu0 0
        %1617 = vmatprep.subr.bf16.mxu0 0
        %1618 = vmatpush2.bf16.msra.mxu0 0
        %1619 = vmatprep.subr.bf16.mxu0 0
        %1620 = vmatpush2.bf16.msra.mxu0 0
        %1621 = vmatprep.subr.bf16.mxu0 0
        %1622 = vmatpush2.bf16.msra.mxu0 0
        %1623 = vmatprep.subr.bf16.mxu0 0
        %1624 = vmatpush2.bf16.msra.mxu0 0
        %1625 = vmatprep.subr.bf16.mxu0 0
        %1626 = vmatpush2.bf16.msra.mxu0 0
        %1627 = vmatprep.subr.bf16.mxu0 0
        %1628 = vmatpush2.bf16.msra.mxu0 0
        %1629 = vmatprep.subr.bf16.mxu0 0
        %1630 = vmatpush2.bf16.msra.mxu0 0
        %1631 = vmatprep.mubr.bf16.mxu0 0
        %1632 = vmatmul.mubr.bf16.gmra.mxu0 %v1594
        %v1633 = vpop.f32.mrf.mxu0
        %v1634 = vadd.f32 0.0, %v1633
        %v1635 = vpop.f32.mrf.mxu0
        %v1636 = vpop.f32.mrf.mxu0
        %v1637 = vpop.f32.mrf.mxu0
        %1638 = vdwg.mxu0
        %v1639 = vpack.c.bf16 %v1634, %v1634
        %v1640 = vld [vmem:[%s723 + $0x8] sm:$0xf]
        %v1642 = vsel %vm959, %v1639, 0
        %v1645 = vsel %vm1021, %v1640, 0
        %1647 = vmatprep.subr.bf16.mxu0 0
        %1648 = vmatpush1.bf16.msra.mxu0 0
        %1649 = vmatprep.subr.bf16.mxu0 0
        %1650 = vmatpush1.bf16.msra.mxu0 0
        %1651 = vmatprep.subr.bf16.mxu0 0
        %1652 = vmatpush1.bf16.msra.mxu0 0
        %1653 = vmatprep.subr.bf16.mxu0 0
        %1654 = vmatpush1.bf16.msra.mxu0 0
        %1655 = vmatprep.subr.bf16.mxu0 0
        %1656 = vmatpush1.bf16.msra.mxu0 0
        %1657 = vmatprep.subr.bf16.mxu0 0
        %1658 = vmatpush1.bf16.msra.mxu0 0
        %1659 = vmatprep.subr.bf16.mxu0 0
        %1660 = vmatpush1.bf16.msra.mxu0 0
        %1661 = vmatprep.subr.bf16.mxu0 0
        %1662 = vmatpush1.bf16.msra.mxu0 %v1645
        %1663 = vmatprep.subr.bf16.mxu0 0
        %1664 = vmatpush2.bf16.msra.mxu0 0
        %1665 = vmatprep.subr.bf16.mxu0 0
        %1666 = vmatpush2.bf16.msra.mxu0 0
        %1667 = vmatprep.subr.bf16.mxu0 0
        %1668 = vmatpush2.bf16.msra.mxu0 0
        %1669 = vmatprep.subr.bf16.mxu0 0
        %1670 = vmatpush2.bf16.msra.mxu0 0
        %1671 = vmatprep.subr.bf16.mxu0 0
        %1672 = vmatpush2.bf16.msra.mxu0 0
        %1673 = vmatprep.subr.bf16.mxu0 0
        %1674 = vmatpush2.bf16.msra.mxu0 0
        %1675 = vmatprep.subr.bf16.mxu0 0
        %1676 = vmatpush2.bf16.msra.mxu0 0
        %1677 = vmatprep.subr.bf16.mxu0 0
        %1678 = vmatpush2.bf16.msra.mxu0 0
        %1679 = vmatprep.mubr.bf16.mxu0 0
        %1680 = vmatmul.mubr.bf16.gmra.mxu0 %v1642
        %v1681 = vpop.f32.mrf.mxu0
        %v1682 = vadd.f32 0.0, %v1681
        %v1683 = vpop.f32.mrf.mxu0
        %v1684 = vpop.f32.mrf.mxu0
        %v1685 = vpop.f32.mrf.mxu0
        %1686 = vdwg.mxu0
        %v1687 = vadd.f32 %v1395, %v1682
        %v1688 = vld [vmem:[%s708 + $0xc] sm:$0xf]
        %v1690 = vsel %vm787, %v1688, 0
        %1692 = vmatprep.subr.bf16.mxu0 0
        %1693 = vmatpush1.bf16.xpose.msra.mxu0 0
        %1694 = vmatprep.subr.bf16.mxu0 0
        %1695 = vmatpush1.bf16.xpose.msra.mxu0 0
        %1696 = vmatprep.subr.bf16.mxu0 0
        %1697 = vmatpush1.bf16.xpose.msra.mxu0 0
        %1698 = vmatprep.subr.bf16.mxu0 0
        %1699 = vmatpush1.bf16.xpose.msra.mxu0 0
        %1700 = vmatprep.subr.bf16.mxu0 0
        %1701 = vmatpush1.bf16.xpose.msra.mxu0 0
        %1702 = vmatprep.subr.bf16.mxu0 0
        %1703 = vmatpush1.bf16.xpose.msra.mxu0 0
        %1704 = vmatprep.subr.bf16.mxu0 0
        %1705 = vmatpush1.bf16.xpose.msra.mxu0 0
        %1706 = vmatprep.subr.bf16.mxu0 0
        %1707 = vmatpush1.bf16.xpose.msra.mxu0 %v1690
        %1708 = vmatprep.subr.bf16.mxu0 0
        %1709 = vmatpush2.bf16.xpose.msra.mxu0 0
        %1710 = vmatprep.subr.bf16.mxu0 0
        %1711 = vmatpush2.bf16.xpose.msra.mxu0 0
        %1712 = vmatprep.subr.bf16.mxu0 0
        %1713 = vmatpush2.bf16.xpose.msra.mxu0 0
        %1714 = vmatprep.subr.bf16.mxu0 0
        %1715 = vmatpush2.bf16.xpose.msra.mxu0 0
        %1716 = vmatprep.subr.bf16.mxu0 0
        %1717 = vmatpush2.bf16.xpose.msra.mxu0 0
        %1718 = vmatprep.subr.bf16.mxu0 0
        %1719 = vmatpush2.bf16.xpose.msra.mxu0 0
        %1720 = vmatprep.subr.bf16.mxu0 0
        %1721 = vmatpush2.bf16.xpose.msra.mxu0 0
        %1722 = vmatprep.subr.bf16.mxu0 0
        %1723 = vmatpush2.bf16.xpose.msra.mxu0 0
        %1724 = vmatprep.mubr.bf16.mxu0 0
        %1725 = vmatmul.mubr.bf16.gmra.mxu0 %v823
        %v1726 = vpop.f32.mrf.mxu0
        %v1727 = vadd.f32 0.0, %v1726
        %v1728 = vpop.f32.mrf.mxu0
        %v1729 = vpop.f32.mrf.mxu0
        %v1730 = vpop.f32.mrf.mxu0
        %1731 = vdwg.mxu0
        %v1732 = vld [vmem:[%s713 + $0xc] sm:$0xf]
        %v1734 = vsel %vm787, %v1732, 0
        %1736 = vmatprep.subr.bf16.mxu0 0
        %1737 = vmatpush1.bf16.xpose.msra.mxu0 0
        %1738 = vmatprep.subr.bf16.mxu0 0
        %1739 = vmatpush1.bf16.xpose.msra.mxu0 0
        %1740 = vmatprep.subr.bf16.mxu0 0
        %1741 = vmatpush1.bf16.xpose.msra.mxu0 0
        %1742 = vmatprep.subr.bf16.mxu0 0
        %1743 = vmatpush1.bf16.xpose.msra.mxu0 0
        %1744 = vmatprep.subr.bf16.mxu0 0
        %1745 = vmatpush1.bf16.xpose.msra.mxu0 0
        %1746 = vmatprep.subr.bf16.mxu0 0
        %1747 = vmatpush1.bf16.xpose.msra.mxu0 0
        %1748 = vmatprep.subr.bf16.mxu0 0
        %1749 = vmatpush1.bf16.xpose.msra.mxu0 0
        %1750 = vmatprep.subr.bf16.mxu0 0
        %1751 = vmatpush1.bf16.xpose.msra.mxu0 %v1734
        %1752 = vmatprep.subr.bf16.mxu0 0
        %1753 = vmatpush2.bf16.xpose.msra.mxu0 0
        %1754 = vmatprep.subr.bf16.mxu0 0
        %1755 = vmatpush2.bf16.xpose.msra.mxu0 0
        %1756 = vmatprep.subr.bf16.mxu0 0
        %1757 = vmatpush2.bf16.xpose.msra.mxu0 0
        %1758 = vmatprep.subr.bf16.mxu0 0
        %1759 = vmatpush2.bf16.xpose.msra.mxu0 0
        %1760 = vmatprep.subr.bf16.mxu0 0
        %1761 = vmatpush2.bf16.xpose.msra.mxu0 0
        %1762 = vmatprep.subr.bf16.mxu0 0
        %1763 = vmatpush2.bf16.xpose.msra.mxu0 0
        %1764 = vmatprep.subr.bf16.mxu0 0
        %1765 = vmatpush2.bf16.xpose.msra.mxu0 0
        %1766 = vmatprep.subr.bf16.mxu0 0
        %1767 = vmatpush2.bf16.xpose.msra.mxu0 0
        %1768 = vmatprep.mubr.bf16.mxu0 0
        %1769 = vmatmul.mubr.bf16.gmra.mxu0 %v823
        %v1770 = vpop.f32.mrf.mxu0
        %v1771 = vadd.f32 0.0, %v1770
        %v1772 = vpop.f32.mrf.mxu0
        %v1773 = vpop.f32.mrf.mxu0
        %v1774 = vpop.f32.mrf.mxu0
        %1775 = vdwg.mxu0
        %v1776 = vld [vmem:[%s718 + $0xc] sm:$0xf]
        %v1778 = vsel %vm787, %v1776, 0
        %1780 = vmatprep.subr.bf16.mxu0 0
        %1781 = vmatpush1.bf16.xpose.msra.mxu0 0
        %1782 = vmatprep.subr.bf16.mxu0 0
        %1783 = vmatpush1.bf16.xpose.msra.mxu0 0
        %1784 = vmatprep.subr.bf16.mxu0 0
        %1785 = vmatpush1.bf16.xpose.msra.mxu0 0
        %1786 = vmatprep.subr.bf16.mxu0 0
        %1787 = vmatpush1.bf16.xpose.msra.mxu0 0
        %1788 = vmatprep.subr.bf16.mxu0 0
        %1789 = vmatpush1.bf16.xpose.msra.mxu0 0
        %1790 = vmatprep.subr.bf16.mxu0 0
        %1791 = vmatpush1.bf16.xpose.msra.mxu0 0
        %1792 = vmatprep.subr.bf16.mxu0 0
        %1793 = vmatpush1.bf16.xpose.msra.mxu0 0
        %1794 = vmatprep.subr.bf16.mxu0 0
        %1795 = vmatpush1.bf16.xpose.msra.mxu0 %v1778
        %1796 = vmatprep.subr.bf16.mxu0 0
        %1797 = vmatpush2.bf16.xpose.msra.mxu0 0
        %1798 = vmatprep.subr.bf16.mxu0 0
        %1799 = vmatpush2.bf16.xpose.msra.mxu0 0
        %1800 = vmatprep.subr.bf16.mxu0 0
        %1801 = vmatpush2.bf16.xpose.msra.mxu0 0
        %1802 = vmatprep.subr.bf16.mxu0 0
        %1803 = vmatpush2.bf16.xpose.msra.mxu0 0
        %1804 = vmatprep.subr.bf16.mxu0 0
        %1805 = vmatpush2.bf16.xpose.msra.mxu0 0
        %1806 = vmatprep.subr.bf16.mxu0 0
        %1807 = vmatpush2.bf16.xpose.msra.mxu0 0
        %1808 = vmatprep.subr.bf16.mxu0 0
        %1809 = vmatpush2.bf16.xpose.msra.mxu0 0
        %1810 = vmatprep.subr.bf16.mxu0 0
        %1811 = vmatpush2.bf16.xpose.msra.mxu0 0
        %1812 = vmatprep.mubr.bf16.mxu0 0
        %1813 = vmatmul.mubr.bf16.gmra.mxu0 %v823
        %v1814 = vpop.f32.mrf.mxu0
        %v1815 = vadd.f32 0.0, %v1814
        %v1816 = vpop.f32.mrf.mxu0
        %v1817 = vpop.f32.mrf.mxu0
        %v1818 = vpop.f32.mrf.mxu0
        %1819 = vdwg.mxu0
        %v1820 = vpack.c.bf16 %v1727, %v1727
        %v1821 = vpack.c.bf16 %v1771, %v1771
        %v1822 = vpack.c.bf16 %v1815, %v1815
        %v1824 = vsel %vm959, %v1820, 0
        %v1827 = vsel %vm959, %v1821, 0
        %1829 = vmatprep.subr.bf16.mxu0 0
        %1830 = vmatpush1.bf16.xpose.msra.mxu0 0
        %1831 = vmatprep.subr.bf16.mxu0 0
        %1832 = vmatpush1.bf16.xpose.msra.mxu0 0
        %1833 = vmatprep.subr.bf16.mxu0 0
        %1834 = vmatpush1.bf16.xpose.msra.mxu0 0
        %1835 = vmatprep.subr.bf16.mxu0 0
        %1836 = vmatpush1.bf16.xpose.msra.mxu0 0
        %1837 = vmatprep.subr.bf16.mxu0 0
        %1838 = vmatpush1.bf16.xpose.msra.mxu0 0
        %1839 = vmatprep.subr.bf16.mxu0 0
        %1840 = vmatpush1.bf16.xpose.msra.mxu0 0
        %1841 = vmatprep.subr.bf16.mxu0 0
        %1842 = vmatpush1.bf16.xpose.msra.mxu0 0
        %1843 = vmatprep.subr.bf16.mxu0 0
        %1844 = vmatpush1.bf16.xpose.msra.mxu0 %v1827
        %1845 = vmatprep.subr.bf16.mxu0 0
        %1846 = vmatpush2.bf16.xpose.msra.mxu0 0
        %1847 = vmatprep.subr.bf16.mxu0 0
        %1848 = vmatpush2.bf16.xpose.msra.mxu0 0
        %1849 = vmatprep.subr.bf16.mxu0 0
        %1850 = vmatpush2.bf16.xpose.msra.mxu0 0
        %1851 = vmatprep.subr.bf16.mxu0 0
        %1852 = vmatpush2.bf16.xpose.msra.mxu0 0
        %1853 = vmatprep.subr.bf16.mxu0 0
        %1854 = vmatpush2.bf16.xpose.msra.mxu0 0
        %1855 = vmatprep.subr.bf16.mxu0 0
        %1856 = vmatpush2.bf16.xpose.msra.mxu0 0
        %1857 = vmatprep.subr.bf16.mxu0 0
        %1858 = vmatpush2.bf16.xpose.msra.mxu0 0
        %1859 = vmatprep.subr.bf16.mxu0 0
        %1860 = vmatpush2.bf16.xpose.msra.mxu0 0
        %1861 = vmatprep.mubr.bf16.mxu0 0
        %1862 = vmatmul.mubr.bf16.gmra.mxu0 %v1824
        %v1863 = vpop.f32.mrf.mxu0
        %v1864 = vadd.f32 0.0, %v1863
        %v1865 = vpop.f32.mrf.mxu0
        %v1866 = vpop.f32.mrf.mxu0
        %v1867 = vpop.f32.mrf.mxu0
        %1868 = vdwg.mxu0
        %v1869 = vsel %vm959, %v1864, -inf
        %1870 = vmax.xlane.f32.xlu0 %v1869
        %v1871 = vpop.xlane.xlu0 %1870
        %v1872 = vsub.f32 %v1864, %v1871
        %v1873 = vmul.f32 %v1872, 1.442695
        %v1874 = vpow.pop %v1873
        %v1875 = vsel %vm959, %v1874, 0.0
        %1876 = vadd.xlane.f32.xlu0 %v1875
        %v1877 = vpop.xlane.xlu0 %1876
        %v1878 = vrcp.pop %v1877
        %v1879 = vmul.f32 %v1874, %v1878
        %v1880 = vpack.c.bf16 %v1879, %v1879
        %v1882 = vsel %vm959, %v1880, 0
        %v1885 = vsel %vm1021, %v1822, 0
        %1887 = vmatprep.subr.bf16.mxu0 0
        %1888 = vmatpush1.bf16.msra.mxu0 0
        %1889 = vmatprep.subr.bf16.mxu0 0
        %1890 = vmatpush1.bf16.msra.mxu0 0
        %1891 = vmatprep.subr.bf16.mxu0 0
        %1892 = vmatpush1.bf16.msra.mxu0 0
        %1893 = vmatprep.subr.bf16.mxu0 0
        %1894 = vmatpush1.bf16.msra.mxu0 0
        %1895 = vmatprep.subr.bf16.mxu0 0
        %1896 = vmatpush1.bf16.msra.mxu0 0
        %1897 = vmatprep.subr.bf16.mxu0 0
        %1898 = vmatpush1.bf16.msra.mxu0 0
        %1899 = vmatprep.subr.bf16.mxu0 0
        %1900 = vmatpush1.bf16.msra.mxu0 0
        %1901 = vmatprep.subr.bf16.mxu0 0
        %1902 = vmatpush1.bf16.msra.mxu0 %v1885
        %1903 = vmatprep.subr.bf16.mxu0 0
        %1904 = vmatpush2.bf16.msra.mxu0 0
        %1905 = vmatprep.subr.bf16.mxu0 0
        %1906 = vmatpush2.bf16.msra.mxu0 0
        %1907 = vmatprep.subr.bf16.mxu0 0
        %1908 = vmatpush2.bf16.msra.mxu0 0
        %1909 = vmatprep.subr.bf16.mxu0 0
        %1910 = vmatpush2.bf16.msra.mxu0 0
        %1911 = vmatprep.subr.bf16.mxu0 0
        %1912 = vmatpush2.bf16.msra.mxu0 0
        %1913 = vmatprep.subr.bf16.mxu0 0
        %1914 = vmatpush2.bf16.msra.mxu0 0
        %1915 = vmatprep.subr.bf16.mxu0 0
        %1916 = vmatpush2.bf16.msra.mxu0 0
        %1917 = vmatprep.subr.bf16.mxu0 0
        %1918 = vmatpush2.bf16.msra.mxu0 0
        %1919 = vmatprep.mubr.bf16.mxu0 0
        %1920 = vmatmul.mubr.bf16.gmra.mxu0 %v1882
        %v1921 = vpop.f32.mrf.mxu0
        %v1922 = vadd.f32 0.0, %v1921
        %v1923 = vpop.f32.mrf.mxu0
        %v1924 = vpop.f32.mrf.mxu0
        %v1925 = vpop.f32.mrf.mxu0
        %1926 = vdwg.mxu0
        %v1927 = vpack.c.bf16 %v1922, %v1922
        %v1928 = vld [vmem:[%s723 + $0xc] sm:$0xf]
        %v1930 = vsel %vm959, %v1927, 0
        %v1933 = vsel %vm1021, %v1928, 0
        %1935 = vmatprep.subr.bf16.mxu0 0
        %1936 = vmatpush1.bf16.msra.mxu0 0
        %1937 = vmatprep.subr.bf16.mxu0 0
        %1938 = vmatpush1.bf16.msra.mxu0 0
        %1939 = vmatprep.subr.bf16.mxu0 0
        %1940 = vmatpush1.bf16.msra.mxu0 0
        %1941 = vmatprep.subr.bf16.mxu0 0
        %1942 = vmatpush1.bf16.msra.mxu0 0
        %1943 = vmatprep.subr.bf16.mxu0 0
        %1944 = vmatpush1.bf16.msra.mxu0 0
        %1945 = vmatprep.subr.bf16.mxu0 0
        %1946 = vmatpush1.bf16.msra.mxu0 0
        %1947 = vmatprep.subr.bf16.mxu0 0
        %1948 = vmatpush1.bf16.msra.mxu0 0
        %1949 = vmatprep.subr.bf16.mxu0 0
        %1950 = vmatpush1.bf16.msra.mxu0 %v1933
        %1951 = vmatprep.subr.bf16.mxu0 0
        %1952 = vmatpush2.bf16.msra.mxu0 0
        %1953 = vmatprep.subr.bf16.mxu0 0
        %1954 = vmatpush2.bf16.msra.mxu0 0
        %1955 = vmatprep.subr.bf16.mxu0 0
        %1956 = vmatpush2.bf16.msra.mxu0 0
        %1957 = vmatprep.subr.bf16.mxu0 0
        %1958 = vmatpush2.bf16.msra.mxu0 0
        %1959 = vmatprep.subr.bf16.mxu0 0
        %1960 = vmatpush2.bf16.msra.mxu0 0
        %1961 = vmatprep.subr.bf16.mxu0 0
        %1962 = vmatpush2.bf16.msra.mxu0 0
        %1963 = vmatprep.subr.bf16.mxu0 0
        %1964 = vmatpush2.bf16.msra.mxu0 0
        %1965 = vmatprep.subr.bf16.mxu0 0
        %1966 = vmatpush2.bf16.msra.mxu0 0
        %1967 = vmatprep.mubr.bf16.mxu0 0
        %1968 = vmatmul.mubr.bf16.gmra.mxu0 %v1930
        %v1969 = vpop.f32.mrf.mxu0
        %v1970 = vadd.f32 0.0, %v1969
        %v1971 = vpop.f32.mrf.mxu0
        %v1972 = vpop.f32.mrf.mxu0
        %v1973 = vpop.f32.mrf.mxu0
        %1974 = vdwg.mxu0
        %v1975 = vadd.f32 %v1687, %v1970
        %v1976 = vadd.f32 %v784, %v1975
        %v1977 = vld [vmem:[%s726] sm:$0x1]
        %v1978 = vld [vmem:[%s729] sm:$0x1]
        %v1979 = vsel %vm787, %v1976, 0.0
        %1980 = vadd.xlane.f32.xlu0 %v1979
        %v1981 = vpop.xlane.xlu0 %1980
        %v1982 = vmul.f32 %v1981, %v791
        %v1983 = vsub.f32 %v1976, %v1982
        %v1984 = vmul.f32 %v1983, %v1983
        %v1985 = vsel %vm787, %v1984, 0.0
        %1986 = vadd.xlane.f32.xlu0 %v1985
        %v1987 = vpop.xlane.xlu0 %1986
        %v1988 = vmul.f32 %v1987, %v791
        %v1989 = vadd.f32 %v1988, 1e-05
        %v1990 = vrsqrt.pop %v1989
        %v1991 = vmul.f32 %v1983, %v1990
        %v1993 = vlaneseq
        %v1994 = vshrl.u32 %v1993, 7
        %v1995 = vsub.s32 0, %v1994
        %v1996 = vrot.slane %v1977, %v1995
        %v1998 = vmul.f32 %v1991, %v1996
        %v2000 = vlaneseq
        %v2001 = vshrl.u32 %v2000, 7
        %v2002 = vsub.s32 0, %v2001
        %v2003 = vrot.slane %v1978, %v2002
        %v2005 = vadd.f32 %v1998, %v2003
        %v2006 = vpack.c.bf16 %v2005, %v2005
        %v2007 = vld [vmem:[%s734] sm:$0xf]
        %v2008 = vld [vmem:[%s734 + $0x4] sm:$0xf]
        %v2009 = vld [vmem:[%s734 + $0x8] sm:$0xf]
        %v2010 = vld [vmem:[%s734 + $0xc] sm:$0xf]
        %v2011 = vld [vmem:[%s734 + $0x10] sm:$0xf]
        %v2012 = vld [vmem:[%s734 + $0x14] sm:$0xf]
        %v2013 = vld [vmem:[%s734 + $0x18] sm:$0xf]
        %v2014 = vld [vmem:[%s734 + $0x1c] sm:$0xf]
        %v2015 = vld [vmem:[%s734 + $0x20] sm:$0xf]
        %v2016 = vld [vmem:[%s734 + $0x24] sm:$0xf]
        %v2017 = vld [vmem:[%s734 + $0x28] sm:$0xf]
        %v2018 = vld [vmem:[%s734 + $0x2c] sm:$0xf]
        %v2019 = vld [vmem:[%s734 + $0x30] sm:$0xf]
        %v2020 = vld [vmem:[%s734 + $0x34] sm:$0xf]
        %v2021 = vld [vmem:[%s734 + $0x38] sm:$0xf]
        %v2022 = vld [vmem:[%s734 + $0x3c] sm:$0xf]
        %v2023 = vld [vmem:[%s737] sm:$0x1]
        %v2025 = vlaneseq
        %v2026 = vshrl.u32 %v2025, 7
        %v2027 = vsub.s32 0, %v2026
        %v2028 = vrot.slane %v2023, %v2027
        %v2046 = vunpack.c.l.b16 %v2007
        %v2047 = vunpack.c.l.b16 %v2008
        %v2048 = vunpack.c.l.b16 %v2009
        %v2049 = vunpack.c.l.b16 %v2010
        %v2050 = vunpack.c.l.b16 %v2011
        %v2051 = vunpack.c.l.b16 %v2012
        %v2052 = vunpack.c.l.b16 %v2013
        %v2053 = vunpack.c.l.b16 %v2014
        %v2054 = vunpack.c.l.b16 %v2015
        %v2055 = vunpack.c.l.b16 %v2016
        %v2056 = vunpack.c.l.b16 %v2017
        %v2057 = vunpack.c.l.b16 %v2018
        %v2058 = vunpack.c.l.b16 %v2019
        %v2059 = vunpack.c.l.b16 %v2020
        %v2060 = vunpack.c.l.b16 %v2021
        %v2061 = vunpack.c.l.b16 %v2022
        %v2062 = vpack.c.b16 %v2047, %v2046
        %v2063 = vpack.c.b16 %v2049, %v2048
        %v2064 = vpack.c.b16 %v2051, %v2050
        %v2065 = vpack.c.b16 %v2053, %v2052
        %v2066 = vpack.c.b16 %v2055, %v2054
        %v2067 = vpack.c.b16 %v2057, %v2056
        %v2068 = vpack.c.b16 %v2059, %v2058
        %v2069 = vpack.c.b16 %v2061, %v2060
        %v2071 = vsel %vm787, %v2006, 0
        %v2074 = vsel %vm787, %v2062, 0
        %v2077 = vsel %vm787, %v2063, 0
        %v2080 = vsel %vm787, %v2064, 0
        %v2083 = vsel %vm787, %v2065, 0
        %v2086 = vsel %vm787, %v2066, 0
        %v2089 = vsel %vm787, %v2067, 0
        %v2092 = vsel %vm787, %v2068, 0
        %v2095 = vsel %vm787, %v2069, 0
        %2097 = vmatprep.subr.bf16.mxu0 0
        %2098 = vmatpush1.bf16.xpose.msra.mxu0 %v2095
        %2099 = vmatprep.subr.bf16.mxu0 0
        %2100 = vmatpush1.bf16.xpose.msra.mxu0 %v2092
        %2101 = vmatprep.subr.bf16.mxu0 0
        %2102 = vmatpush1.bf16.xpose.msra.mxu0 %v2089
        %2103 = vmatprep.subr.bf16.mxu0 0
        %2104 = vmatpush1.bf16.xpose.msra.mxu0 %v2086
        %2105 = vmatprep.subr.bf16.mxu0 0
        %2106 = vmatpush1.bf16.xpose.msra.mxu0 %v2083
        %2107 = vmatprep.subr.bf16.mxu0 0
        %2108 = vmatpush1.bf16.xpose.msra.mxu0 %v2080
        %2109 = vmatprep.subr.bf16.mxu0 0
        %2110 = vmatpush1.bf16.xpose.msra.mxu0 %v2077
        %2111 = vmatprep.subr.bf16.mxu0 0
        %2112 = vmatpush1.bf16.xpose.msra.mxu0 %v2074
        %2113 = vmatprep.subr.bf16.mxu0 0
        %2114 = vmatpush2.bf16.xpose.msra.mxu0 0
        %2115 = vmatprep.subr.bf16.mxu0 0
        %2116 = vmatpush2.bf16.xpose.msra.mxu0 0
        %2117 = vmatprep.subr.bf16.mxu0 0
        %2118 = vmatpush2.bf16.xpose.msra.mxu0 0
        %2119 = vmatprep.subr.bf16.mxu0 0
        %2120 = vmatpush2.bf16.xpose.msra.mxu0 0
        %2121 = vmatprep.subr.bf16.mxu0 0
        %2122 = vmatpush2.bf16.xpose.msra.mxu0 0
        %2123 = vmatprep.subr.bf16.mxu0 0
        %2124 = vmatpush2.bf16.xpose.msra.mxu0 0
        %2125 = vmatprep.subr.bf16.mxu0 0
        %2126 = vmatpush2.bf16.xpose.msra.mxu0 0
        %2127 = vmatprep.subr.bf16.mxu0 0
        %2128 = vmatpush2.bf16.xpose.msra.mxu0 0
        %2129 = vmatprep.mubr.bf16.mxu0 0
        %2130 = vmatmul.mubr.bf16.gmra.mxu0 %v2071
        %v2131 = vpop.f32.mrf.mxu0
        %v2132 = vadd.f32 %v2028, %v2131
        %v2133 = vpop.f32.mrf.mxu0
        %v2134 = vpop.f32.mrf.mxu0
        %v2135 = vpop.f32.mrf.mxu0
        %2136 = vdwg.mxu0
        %v2137 = vmax.f32 %v2132, 0.0
        %v2138 = vpack.c.bf16 %v2137, %v2137
        %v2139 = vld [vmem:[%s742] sm:$0xf]
        %v2140 = vld [vmem:[%s742 + $0x4] sm:$0xf]
        %v2141 = vld [vmem:[%s742 + $0x8] sm:$0xf]
        %v2142 = vld [vmem:[%s742 + $0xc] sm:$0xf]
        %v2143 = vld [vmem:[%s745] sm:$0x1]
        %v2145 = vlaneseq
        %v2146 = vshrl.u32 %v2145, 7
        %v2147 = vsub.s32 0, %v2146
        %v2148 = vrot.slane %v2143, %v2147
        %v2154 = vunpack.c.l.b16 %v2139
        %v2155 = vunpack.c.l.b16 %v2140
        %v2156 = vunpack.c.l.b16 %v2141
        %v2157 = vunpack.c.l.b16 %v2142
        %v2158 = vpack.c.b16 %v2155, %v2154
        %v2159 = vpack.c.b16 %v2157, %v2156
        %2162 = vmatprep.subr.bf16.mxu0 0
        %2163 = vmatpush1.bf16.xpose.msra.mxu0 0
        %2164 = vmatprep.subr.bf16.mxu0 0
        %2165 = vmatpush1.bf16.xpose.msra.mxu0 0
        %2166 = vmatprep.subr.bf16.mxu0 0
        %2167 = vmatpush1.bf16.xpose.msra.mxu0 0
        %2168 = vmatprep.subr.bf16.mxu0 0
        %2169 = vmatpush1.bf16.xpose.msra.mxu0 0
        %2170 = vmatprep.subr.bf16.mxu0 0
        %2171 = vmatpush1.bf16.xpose.msra.mxu0 0
        %2172 = vmatprep.subr.bf16.mxu0 0
        %2173 = vmatpush1.bf16.xpose.msra.mxu0 0
        %2174 = vmatprep.subr.bf16.mxu0 0
        %2175 = vmatpush1.bf16.xpose.msra.mxu0 %v2159
        %2176 = vmatprep.subr.bf16.mxu0 0
        %2177 = vmatpush1.bf16.xpose.msra.mxu0 %v2158
        %2178 = vmatprep.subr.bf16.mxu0 0
        %2179 = vmatpush2.bf16.xpose.msra.mxu0 0
        %2180 = vmatprep.subr.bf16.mxu0 0
        %2181 = vmatpush2.bf16.xpose.msra.mxu0 0
        %2182 = vmatprep.subr.bf16.mxu0 0
        %2183 = vmatpush2.bf16.xpose.msra.mxu0 0
        %2184 = vmatprep.subr.bf16.mxu0 0
        %2185 = vmatpush2.bf16.xpose.msra.mxu0 0
        %2186 = vmatprep.subr.bf16.mxu0 0
        %2187 = vmatpush2.bf16.xpose.msra.mxu0 0
        %2188 = vmatprep.subr.bf16.mxu0 0
        %2189 = vmatpush2.bf16.xpose.msra.mxu0 0
        %2190 = vmatprep.subr.bf16.mxu0 0
        %2191 = vmatpush2.bf16.xpose.msra.mxu0 0
        %2192 = vmatprep.subr.bf16.mxu0 0
        %2193 = vmatpush2.bf16.xpose.msra.mxu0 0
        %2194 = vmatprep.mubr.bf16.mxu0 0
        %2195 = vmatmul.mubr.bf16.gmra.mxu0 %v2138
        %v2196 = vpop.f32.mrf.mxu0
        %v2197 = vadd.f32 %v2148, %v2196
        %v2198 = vpop.f32.mrf.mxu0
        %v2199 = vpop.f32.mrf.mxu0
        %v2200 = vpop.f32.mrf.mxu0
        %2201 = vdwg.mxu0
        %v2202 = vadd.f32 %v1976, %v2197
        %2203 = vst.msk [vmem:[#allocation2] sm:$0xff] %vm787, %v2202
        %p2204 = scmp.eq.s32.totalorder %s40, 1
        // Predicated region
        $region93: #{tpu_custom_call.1} parent=79 // pred_check
          %p2205 = pneg %p2204
        $region94: #{tpu_custom_call.1} parent=79 // pred_check_branch
          %2207 = sbr.rel (%p2205) target = $region96
        $region95: #{tpu_custom_call.1} parent=79 // pred_region
          %v2208 = vld [vmem:[%s13] sm:$0x1]
          %v2209 = vld [vmem:[%s14] sm:$0x1]
          %v2210 = vsel %vm787, %v2202, 0.0
          %2211 = vadd.xlane.f32.xlu0 %v2210
          %v2212 = vpop.xlane.xlu0 %2211
          %v2213 = vmul.f32 %v2212, %v791
          %v2214 = vsub.f32 %v2202, %v2213
          %v2215 = vmul.f32 %v2214, %v2214
          %v2216 = vsel %vm787, %v2215, 0.0
          %2217 = vadd.xlane.f32.xlu0 %v2216
          %v2218 = vpop.xlane.xlu0 %2217
          %v2219 = vmul.f32 %v2218, %v791
          %v2220 = vadd.f32 %v2219, 1e-05
          %v2221 = vrsqrt.pop %v2220
          %v2222 = vmul.f32 %v2214, %v2221
          %v2224 = vlaneseq
          %v2225 = vshrl.u32 %v2224, 7
          %v2226 = vsub.s32 0, %v2225
          %v2227 = vrot.slane %v2208, %v2226
          %v2229 = vmul.f32 %v2222, %v2227
          %v2231 = vlaneseq
          %v2232 = vshrl.u32 %v2231, 7
          %v2233 = vsub.s32 0, %v2232
          %v2234 = vrot.slane %v2209, %v2233
          %v2236 = vadd.f32 %v2229, %v2234
          %2237 = vst.msk [vmem:[%s700] sm:$0xff] %vm787, %v2236
        $region96: #{tpu_custom_call.1} parent=79 // pred_fallthru
          _
        %s2238 = sand.u32 %s435, 1
        %s2239 = scalar_lea.sflag [#allocation5], %s2238
        %s2240 = sand.u32 %s435, 1
        %s2241 = smul.addr %s2240, 8
        %s2242 = scalar_lea.vmem [#allocation8], %s2241
        // Predicated region
        $region97: #{tpu_custom_call.1} parent=79 // pred_check
          %p2243 = pneg %p445
        $region98: #{tpu_custom_call.1} parent=79 // pred_check_branch
          %2245 = sbr.rel (%p2243) target = $region100
        $region99: #{tpu_custom_call.1} parent=79 // pred_region
          %s2247 = ssub.s32 128, 128
          %2248 = vsyncadd %s2239, %s2247
          %s2249 = smul.addr %s39, 128
          %s2250 = scalar_lea.hbm %s15, %s2249
          %s2252 = sshll.u32 %s2242, 4
          %s2253 = int_to_ptr.vmem [resolvable:$true] %s2252
          %2255 = dma.vmem_to_hbm [thread:$0]  %s2253, 128, %s2250, %s2239
        $region100: #{tpu_custom_call.1} parent=79 // pred_fallthru
          _
      $region80: #{tpu_custom_call.1} parent=5 // pred_fallthru
        _
      %p2256 = scmp.le.s32.totalorder 2, %s30
      // Predicated region
      $region101: #{tpu_custom_call.1} parent=5 // pred_check
        %p2257 = pneg %p2256
      $region102: #{tpu_custom_call.1} parent=5 // pred_check_branch
        %2259 = sbr.rel (%p2257) target = $region104
      $region103: #{tpu_custom_call.1} parent=5 // pred_region
        %s2260 = ssub.s32 %s30, 2
        // Predicated region
        $region105: #{tpu_custom_call.1} parent=103 // pred_check
          %p2261 = pneg %p451
        $region106: #{tpu_custom_call.1} parent=103 // pred_check_branch
          %2263 = sbr.rel (%p2261) target = $region108
        $region107: #{tpu_custom_call.1} parent=103 // pred_region
          %s2264 = sand.u32 %s436, 1
          %s2265 = scalar_lea.sflag [#allocation5], %s2264
          %s2266 = sand.u32 %s436, 1
          %s2267 = smul.addr %s2266, 8
          %s2268 = scalar_lea.vmem [#allocation8], %s2267
          %2269 = dma.done %s2265, 128
        $region108: #{tpu_custom_call.1} parent=103 // pred_fallthru
          _
      $region104: #{tpu_custom_call.1} parent=5 // pred_fallthru
        _
    $region6: #{tpu_custom_call.1} parent=1 // loop_footer
      %s34 = sadd.s32 1, %s30
    $region7: #{tpu_custom_call.1} parent=1 // loop_footer_branch
      %29 = sbr.rel target = $region3
    $region8: #{tpu_custom_call.1} parent=1 // loop_exit
      _
    %2270 = vsyncpa [#allocation4], 1
    %s2271 = scalar_lea.sflag [#allocation4], 1
    %2272 = vsyncpa %s2271, 1
    %2273 = vsyncpa [#allocation7], 1
    %s2274 = scalar_lea.sflag [#allocation7], 1
    %2275 = vsyncpa %s2274, 1
    %2276 = vsyncpa [#allocation5], 1
    %s2277 = scalar_lea.sflag [#allocation5], 1
    %2278 = vsyncpa %s2277, 1

</llo_original>
